<compile_context>
chip_gen: v6e
topology: v6e:2x2x1
jax: 0.10.0
libtpu: 0.0.40
codegen_flags: <defaults>
</compile_context>

<pallas_src>
import functools

import jax
import jax.numpy as jnp
from jax.experimental import pallas as pl
from jax.experimental.pallas import tpu as pltpu

KD = KH = KW = 3
N_TAPS = KD * KH * KW   # 27
N_LAYERS = 6            # conv1 (2 layers) + 2 residual blocks x 2 layers


# ---------------------------------------------------------------------------
# Fused kernel: conv1 (2x conv+bn+relu) + 2 residual blocks, one batch element
# ---------------------------------------------------------------------------
def _fused_basic_kernel(x_ref, coords_ref, w0_ref, wr_ref, b_ref, o_ref, *,
                        D, H, W):
    """Shapes (n = D*H*W, lane-dense flattened spatial axis):
         x_ref      (1, Cin0, n)       f32
         coords_ref (3, 1, n)          i32   per-voxel (d, h, w) indices
         w0_ref     (3, Cout, 9*Cin0)  bf16  layer-0 weight, kd-grouped
         wr_ref     (5, 3, Cout, 9*C)  bf16  layers 1..5 weights
         b_ref      (6, Cout, 1)       f32   folded-BN biases
         o_ref      (1, Cout, n)       f32
    """
    n = D * H * W
    HW = H * W

    # ---- in-kernel boundary masks, hoisted once for all 6 conv layers ----
    d_idx = coords_ref[0]            # (1, n) i32
    h_idx = coords_ref[1]
    w_idx = coords_ref[2]
    ax_masks = {
        0: {-1: d_idx >= 1, 0: None, 1: d_idx < D - 1},
        1: {-1: h_idx >= 1, 0: None, 1: h_idx < H - 1},
        2: {-1: w_idx >= 1, 0: None, 1: w_idx < W - 1},
    }
    tap_masks = []                   # 27 x ((1, n) bool | None), tap-order
    for kd in (-1, 0, 1):
        for kh in (-1, 0, 1):
            for kw in (-1, 0, 1):
                m = None
                for mm in (ax_masks[0][kd], ax_masks[1][kh], ax_masks[2][kw]):
                    if mm is not None:
                        m = mm if m is None else (m & mm)
                tap_masks.append(m)

    def conv_bn(x_f32, w_l, b_l, relu):
        """3x3x3 conv + folded BN (+ReLU) on a (Cin, n) f32 activation.

        w_l: (3, Cout, 9*Cin) bf16, b_l: (Cout, 1) f32.  Grouped-dot
        accumulation: one K=9*Cin MXU dot per kd-plane, f32 accumulator,
        no full im2col materialisation.
        """
        acc = None
        t = 0
        for gi, kd in enumerate((-1, 0, 1)):
            pieces = []
            for kh in (-1, 0, 1):
                for kw in (-1, 0, 1):
                    off = kd * HW + kh * W + kw
                    # piece[:, p] = x[:, p + off]; wrapped elements zeroed below.
                    piece = x_f32 if off == 0 else pltpu.roll(x_f32, (-off) % n, 1)
                    if tap_masks[t] is not None:
                        piece = jnp.where(tap_masks[t], piece, 0.0)   # bitwise select
                    pieces.append(piece)
                    t += 1
            # (9*Cin, n): f32 8-row pieces are tile-aligned so the concat is
            # free; one cast per group feeds the bf16 MXU path.
            xg = jnp.concatenate(pieces, axis=0).astype(jnp.bfloat16)
            part = jnp.dot(w_l[gi], xg, preferred_element_type=jnp.float32)
            acc = part if acc is None else acc + part
        acc = acc + b_l                                   # (Cout, 1) lane broadcast
        return jnp.maximum(acc, 0.0) if relu else acc

    x0 = x_ref[0].astype(jnp.float32)                     # (Cin0, n)
    h = conv_bn(x0, w0_ref[...], b_ref[0], relu=True)     # conv1[0]
    h = conv_bn(h, wr_ref[0], b_ref[1], relu=True)        # conv1[1]
    for blk in range(2):                                  # two residual blocks
        y = conv_bn(h, wr_ref[1 + 2 * blk], b_ref[2 + 2 * blk], relu=True)
        z = conv_bn(y, wr_ref[2 + 2 * blk], b_ref[3 + 2 * blk], relu=False)
        h = (h + z) * 0.5                                 # (x + block(x)) / 2
    o_ref[0] = h.astype(o_ref.dtype)


# ---------------------------------------------------------------------------
# Wrapper
# ---------------------------------------------------------------------------
def _voxel_coords(D, H, W):
    """(3, 1, n) int32 (d, h, w) index vectors for the flattened volume."""
    n = D * H * W
    p = jnp.arange(n, dtype=jnp.int32)
    d = p // (H * W)
    h = (p // W) % H
    w = p % W
    return jnp.stack([d, h, w]).reshape(3, 1, n)


def _pack_weight(w):
    """(3,3,3,Cin,Cout) -> (3, Cout, 9*Cin) bf16, kd-grouped, (kh,kw,ci)-minor."""
    cout = w.shape[-1]
    wt = jnp.transpose(w, (0, 4, 1, 2, 3))        # (kd, Cout, kh, kw, Cin)
    return wt.reshape(KD, cout, -1).astype(jnp.bfloat16)


def basic_forward(x_ncdhw, params):
    N, Cin0, D, H, W = x_ncdhw.shape
    n = D * H * W
    layers = list(params["conv1"]) + [lb for blk in params["basics"] for lb in blk]
    assert len(layers) == N_LAYERS
    C = layers[0][0].shape[-1]

    x = x_ncdhw.reshape(N, Cin0, n)               # NCDHW -> (N, C, D*H*W): lane-dense
    coords = _voxel_coords(D, H, W)

    # Packed resident parameters: layer-0 weight kept separate because its Cin
    # (4*views) may differ from disp_channel; layers 1..5 share one array.
    w0 = _pack_weight(layers[0][0])                               # (3, C, 9*Cin0)
    w_rest = jnp.stack([_pack_weight(w) for w, _ in layers[1:]])  # (5, 3, C, 9*C)
    biases = jnp.stack([b.reshape(-1, 1) for _, b in layers]
                       ).astype(jnp.float32)                      # (6, C, 1)

    out = pl.pallas_call(
        functools.partial(_fused_basic_kernel, D=D, H=H, W=W),
        out_shape=jax.ShapeDtypeStruct((N, C, n), jnp.float32),
        grid_spec=pltpu.PrefetchScalarGridSpec(
            num_scalar_prefetch=0,
            grid=(N,),
            in_specs=[
                pl.BlockSpec((1, Cin0, n), lambda i: (i, 0, 0)),
                pl.BlockSpec(coords.shape, lambda i: (0, 0, 0)),
                pl.BlockSpec(w0.shape, lambda i: (0, 0, 0)),
                pl.BlockSpec(w_rest.shape, lambda i: (0, 0, 0, 0)),
                pl.BlockSpec(biases.shape, lambda i: (0, 0, 0)),
            ],
            out_specs=pl.BlockSpec((1, C, n), lambda i: (i, 0, 0)),
        ),
        compiler_params=pltpu.CompilerParams(
            dimension_semantics=("parallel",),
            vmem_limit_bytes=32 * 1024 * 1024),
    )(x, coords, w0, w_rest, biases)
    return out.reshape(N, C, D, H, W)


# ---------------------------------------------------------------------------
# Parameters (deterministic, BN folded in eval mode, bf16-rounded weights)
# ---------------------------------------------------------------------------
def _fold_bn(w, b, gamma, beta, mean, var, eps=1e-5):
    scale = gamma / jnp.sqrt(var + eps)                   # (Cout,)
    w_eff = w * scale[None, None, None, None, :]
    b_eff = beta + (b - mean) * scale
    # Store weights at bf16 precision (kernel feeds the MXU in bf16); the f32
    # reference uses the identical values so weight rounding cancels out.
    w_eff = w_eff.astype(jnp.bfloat16).astype(jnp.float32)
    return w_eff, b_eff


def _init_conv_bn(key, cin, cout):
    kw_, kb_, kg_, kbe_, km_, kv_ = jax.random.split(key, 6)
    w = 0.1 * jax.random.normal(kw_, (KD, KH, KW, cin, cout), jnp.float32)
    b = 0.1 * jax.random.normal(kb_, (cout,), jnp.float32)
    gamma = 1.0 + 0.1 * jax.random.normal(kg_, (cout,), jnp.float32)
    beta = 0.1 * jax.random.normal(kbe_, (cout,), jnp.float32)
    mean = 0.1 * jax.random.normal(km_, (cout,), jnp.float32)
    var = jax.random.uniform(kv_, (cout,), jnp.float32, minval=0.5, maxval=1.5)
    return _fold_bn(w, b, gamma, beta, mean, var)


def init_params(views, disp_channel, key):
    cin0 = 4 * views
    C = disp_channel
    keys = jax.random.split(key, 6)
    return {
        "conv1": [_init_conv_bn(keys[0], cin0, C),
                  _init_conv_bn(keys[1], C, C)],
        "basics": [
            [_init_conv_bn(keys[2], C, C), _init_conv_bn(keys[3], C, C)],
            [_init_conv_bn(keys[4], C, C), _init_conv_bn(keys[5], C, C)],
        ],
    }


# ---------------------------------------------------------------------------
# Pure-JAX reference (for checking the kernel)
# ---------------------------------------------------------------------------
def _ref_conv3d(x, w, b, relu, quantize):
    xin = x.astype(jnp.bfloat16).astype(jnp.float32) if quantize else x
    y = jax.lax.conv_general_dilated(
        xin, w, window_strides=(1, 1, 1), padding="SAME",
        dimension_numbers=("NDHWC", "DHWIO", "NDHWC"),
        precision=jax.lax.Precision.HIGHEST)
    y = y + b
    return jnp.maximum(y, 0.0) if relu else y


def ref_forward(x_ncdhw, params, quantize_activations=False):
    x = jnp.transpose(x_ncdhw, (0, 2, 3, 4, 1))           # NCDHW -> NDHWC
    (w1, b1), (w2, b2) = params["conv1"]
    x = _ref_conv3d(x, w1, b1, True, quantize_activations)
    x = _ref_conv3d(x, w2, b2, True, quantize_activations)
    for (wa, ba), (wb, bb) in params["basics"]:
        y = _ref_conv3d(x, wa, ba, True, quantize_activations)
        y = _ref_conv3d(y, wb, bb, False, quantize_activations)
        x = (x + y) / 2.0
    return jnp.transpose(x, (0, 4, 1, 2, 3))              # NDHWC -> NCDHW


if __name__ == "__main__":
    views, disp_channel = 2, 8
    N, D, H, W = 2, 4, 8, 8

    key = jax.random.PRNGKey(0)
    kx, kp = jax.random.split(key)
    x = jax.random.normal(kx, (N, 4 * views, D, H, W), jnp.float32)  # NCDHW
    params = init_params(views, disp_channel, kp)

    out = jax.block_until_ready(jax.jit(basic_forward)(x, params))
    assert out.shape == (N, disp_channel, D, H, W)

    # Check against a reference that quantizes each conv's input activations to
    # bf16 exactly like the kernel's MXU path: remaining difference is f32
    # accumulation-order noise only.
    ref_q = ref_forward(x, params, quantize_activations=True)
    err_q = jnp.max(jnp.abs(out - ref_q))
    assert err_q < 2e-2, f"kernel vs bf16-matched reference: max abs err {err_q}"

    # End-to-end check against the pure-f32 reference; bound reflects bf16
    # activation quantization accumulated through 6 conv layers.
    ref = ref_forward(x, params, quantize_activations=False)
    err = jnp.max(jnp.abs(out - ref))
    assert err < 1e-1, f"kernel vs f32 reference: max abs err {err}"

    print("KERNEL_OK")
</pallas_src>

<mosaic_0001>
module attributes {stable_mosaic.version = 11 : i64} {
  func.func @_fused_basic_kernel(%arg0: i32, %arg1: memref<1x8x256xf32, #tpu.memory_space<vmem>>, %arg2: memref<3x1x256xi32, #tpu.memory_space<vmem>>, %arg3: memref<3x8x72xbf16, #tpu.memory_space<vmem>>, %arg4: memref<5x3x8x72xbf16, #tpu.memory_space<vmem>>, %arg5: memref<6x8x1xf32, #tpu.memory_space<vmem>>, %arg6: memref<1x8x256xf32, #tpu.memory_space<vmem>>) attributes {dimension_semantics = [#tpu.dimension_semantics<parallel>], iteration_bounds = array<i64: 2>, scalar_prefetch = 0 : i64, scratch_operands = 0 : i64, tpu.core_type = #tpu.core_type<tc>, window_params = [{transform_indices = @transform_0, window_bounds = array<i64: 1, 8, 256>}, {pipeline_mode = #tpu.pipeline_mode<synchronous>, transform_indices = @transform_1, window_bounds = array<i64: 3, 1, 256>}, {pipeline_mode = #tpu.pipeline_mode<synchronous>, transform_indices = @transform_2, window_bounds = array<i64: 3, 8, 72>}, {pipeline_mode = #tpu.pipeline_mode<synchronous>, transform_indices = @transform_3, window_bounds = array<i64: 5, 3, 8, 72>}, {pipeline_mode = #tpu.pipeline_mode<synchronous>, transform_indices = @transform_4, window_bounds = array<i64: 6, 8, 1>}, {transform_indices = @transform_5, window_bounds = array<i64: 1, 8, 256>}]} {
    %c0 = arith.constant 0 : index
    %c0_0 = arith.constant 0 : index
    %c0_1 = arith.constant 0 : index
    %0 = vector.load %arg2[%c0, %c0_0, %c0_1] : memref<3x1x256xi32, #tpu.memory_space<vmem>>, vector<1x1x256xi32>
    %1 = vector.shape_cast %0 : vector<1x1x256xi32> to vector<1x256xi32>
    %c1 = arith.constant 1 : index
    %c0_2 = arith.constant 0 : index
    %c0_3 = arith.constant 0 : index
    %2 = vector.load %arg2[%c1, %c0_2, %c0_3] : memref<3x1x256xi32, #tpu.memory_space<vmem>>, vector<1x1x256xi32>
    %3 = vector.shape_cast %2 : vector<1x1x256xi32> to vector<1x256xi32>
    %c2 = arith.constant 2 : index
    %c0_4 = arith.constant 0 : index
    %c0_5 = arith.constant 0 : index
    %4 = vector.load %arg2[%c2, %c0_4, %c0_5] : memref<3x1x256xi32, #tpu.memory_space<vmem>>, vector<1x1x256xi32>
    %5 = vector.shape_cast %4 : vector<1x1x256xi32> to vector<1x256xi32>
    %c1_i32 = arith.constant 1 : i32
    %6 = vector.broadcast %c1_i32 : i32 to vector<1x256xi32>
    %7 = arith.cmpi sge, %1, %6 : vector<1x256xi32>
    %c3_i32 = arith.constant 3 : i32
    %8 = vector.broadcast %c3_i32 : i32 to vector<1x256xi32>
    %9 = arith.cmpi slt, %1, %8 : vector<1x256xi32>
    %c1_i32_6 = arith.constant 1 : i32
    %10 = vector.broadcast %c1_i32_6 : i32 to vector<1x256xi32>
    %11 = arith.cmpi sge, %3, %10 : vector<1x256xi32>
    %c7_i32 = arith.constant 7 : i32
    %12 = vector.broadcast %c7_i32 : i32 to vector<1x256xi32>
    %13 = arith.cmpi slt, %3, %12 : vector<1x256xi32>
    %c1_i32_7 = arith.constant 1 : i32
    %14 = vector.broadcast %c1_i32_7 : i32 to vector<1x256xi32>
    %15 = arith.cmpi sge, %5, %14 : vector<1x256xi32>
    %c7_i32_8 = arith.constant 7 : i32
    %16 = vector.broadcast %c7_i32_8 : i32 to vector<1x256xi32>
    %17 = arith.cmpi slt, %5, %16 : vector<1x256xi32>
    %18 = arith.andi %7, %11 : vector<1x256xi1>
    %19 = arith.andi %18, %15 : vector<1x256xi1>
    %20 = arith.andi %7, %11 : vector<1x256xi1>
    %21 = arith.andi %7, %11 : vector<1x256xi1>
    %22 = arith.andi %21, %17 : vector<1x256xi1>
    %23 = arith.andi %7, %15 : vector<1x256xi1>
    %24 = arith.andi %7, %17 : vector<1x256xi1>
    %25 = arith.andi %7, %13 : vector<1x256xi1>
    %26 = arith.andi %25, %15 : vector<1x256xi1>
    %27 = arith.andi %7, %13 : vector<1x256xi1>
    %28 = arith.andi %7, %13 : vector<1x256xi1>
    %29 = arith.andi %28, %17 : vector<1x256xi1>
    %30 = arith.andi %11, %15 : vector<1x256xi1>
    %31 = arith.andi %11, %17 : vector<1x256xi1>
    %32 = arith.andi %13, %15 : vector<1x256xi1>
    %33 = arith.andi %13, %17 : vector<1x256xi1>
    %34 = arith.andi %9, %11 : vector<1x256xi1>
    %35 = arith.andi %34, %15 : vector<1x256xi1>
    %36 = arith.andi %9, %11 : vector<1x256xi1>
    %37 = arith.andi %9, %11 : vector<1x256xi1>
    %38 = arith.andi %37, %17 : vector<1x256xi1>
    %39 = arith.andi %9, %15 : vector<1x256xi1>
    %40 = arith.andi %9, %17 : vector<1x256xi1>
    %41 = arith.andi %9, %13 : vector<1x256xi1>
    %42 = arith.andi %41, %15 : vector<1x256xi1>
    %43 = arith.andi %9, %13 : vector<1x256xi1>
    %44 = arith.andi %9, %13 : vector<1x256xi1>
    %45 = arith.andi %44, %17 : vector<1x256xi1>
    %c0_9 = arith.constant 0 : index
    %c0_10 = arith.constant 0 : index
    %c0_11 = arith.constant 0 : index
    %46 = vector.load %arg1[%c0_9, %c0_10, %c0_11] : memref<1x8x256xf32, #tpu.memory_space<vmem>>, vector<1x8x256xf32>
    %47 = vector.shape_cast %46 : vector<1x8x256xf32> to vector<8x256xf32>
    %c0_12 = arith.constant 0 : index
    %c0_13 = arith.constant 0 : index
    %c0_14 = arith.constant 0 : index
    %48 = vector.load %arg3[%c0_12, %c0_13, %c0_14] : memref<3x8x72xbf16, #tpu.memory_space<vmem>>, vector<3x8x72xbf16>
    %c0_15 = arith.constant 0 : index
    %c0_16 = arith.constant 0 : index
    %c0_17 = arith.constant 0 : index
    %49 = vector.load %arg5[%c0_15, %c0_16, %c0_17] : memref<6x8x1xf32, #tpu.memory_space<vmem>>, vector<1x8x1xf32>
    %50 = vector.shape_cast %49 : vector<1x8x1xf32> to vector<8x1xf32>
    %c73_i32 = arith.constant 73 : i32
    %51 = tpu.dynamic_rotate %47 by %c73_i32 dim 1 : vector<8x256xf32>, i32 -> vector<8x256xf32>
    %cst = arith.constant 0.000000e+00 : f32
    %52 = vector.shape_cast %19 : vector<1x256xi1> to vector<1x256xi1>
    %53 = vector.broadcast %52 : vector<1x256xi1> to vector<8x256xi1>
    %54 = vector.broadcast %cst : f32 to vector<8x256xf32>
    %55 = arith.select %53, %51, %54 : vector<8x256xi1>, vector<8x256xf32>
    %c72_i32 = arith.constant 72 : i32
    %56 = tpu.dynamic_rotate %47 by %c72_i32 dim 1 : vector<8x256xf32>, i32 -> vector<8x256xf32>
    %cst_18 = arith.constant 0.000000e+00 : f32
    %57 = vector.shape_cast %20 : vector<1x256xi1> to vector<1x256xi1>
    %58 = vector.broadcast %57 : vector<1x256xi1> to vector<8x256xi1>
    %59 = vector.broadcast %cst_18 : f32 to vector<8x256xf32>
    %60 = arith.select %58, %56, %59 : vector<8x256xi1>, vector<8x256xf32>
    %c71_i32 = arith.constant 71 : i32
    %61 = tpu.dynamic_rotate %47 by %c71_i32 dim 1 : vector<8x256xf32>, i32 -> vector<8x256xf32>
    %cst_19 = arith.constant 0.000000e+00 : f32
    %62 = vector.shape_cast %22 : vector<1x256xi1> to vector<1x256xi1>
    %63 = vector.broadcast %62 : vector<1x256xi1> to vector<8x256xi1>
    %64 = vector.broadcast %cst_19 : f32 to vector<8x256xf32>
    %65 = arith.select %63, %61, %64 : vector<8x256xi1>, vector<8x256xf32>
    %c65_i32 = arith.constant 65 : i32
    %66 = tpu.dynamic_rotate %47 by %c65_i32 dim 1 : vector<8x256xf32>, i32 -> vector<8x256xf32>
    %cst_20 = arith.constant 0.000000e+00 : f32
    %67 = vector.shape_cast %23 : vector<1x256xi1> to vector<1x256xi1>
    %68 = vector.broadcast %67 : vector<1x256xi1> to vector<8x256xi1>
    %69 = vector.broadcast %cst_20 : f32 to vector<8x256xf32>
    %70 = arith.select %68, %66, %69 : vector<8x256xi1>, vector<8x256xf32>
    %c64_i32 = arith.constant 64 : i32
    %71 = tpu.dynamic_rotate %47 by %c64_i32 dim 1 : vector<8x256xf32>, i32 -> vector<8x256xf32>
    %cst_21 = arith.constant 0.000000e+00 : f32
    %72 = vector.shape_cast %7 : vector<1x256xi1> to vector<1x256xi1>
    %73 = vector.broadcast %72 : vector<1x256xi1> to vector<8x256xi1>
    %74 = vector.broadcast %cst_21 : f32 to vector<8x256xf32>
    %75 = arith.select %73, %71, %74 : vector<8x256xi1>, vector<8x256xf32>
    %c63_i32 = arith.constant 63 : i32
    %76 = tpu.dynamic_rotate %47 by %c63_i32 dim 1 : vector<8x256xf32>, i32 -> vector<8x256xf32>
    %cst_22 = arith.constant 0.000000e+00 : f32
    %77 = vector.shape_cast %24 : vector<1x256xi1> to vector<1x256xi1>
    %78 = vector.broadcast %77 : vector<1x256xi1> to vector<8x256xi1>
    %79 = vector.broadcast %cst_22 : f32 to vector<8x256xf32>
    %80 = arith.select %78, %76, %79 : vector<8x256xi1>, vector<8x256xf32>
    %c57_i32 = arith.constant 57 : i32
    %81 = tpu.dynamic_rotate %47 by %c57_i32 dim 1 : vector<8x256xf32>, i32 -> vector<8x256xf32>
    %cst_23 = arith.constant 0.000000e+00 : f32
    %82 = vector.shape_cast %26 : vector<1x256xi1> to vector<1x256xi1>
    %83 = vector.broadcast %82 : vector<1x256xi1> to vector<8x256xi1>
    %84 = vector.broadcast %cst_23 : f32 to vector<8x256xf32>
    %85 = arith.select %83, %81, %84 : vector<8x256xi1>, vector<8x256xf32>
    %c56_i32 = arith.constant 56 : i32
    %86 = tpu.dynamic_rotate %47 by %c56_i32 dim 1 : vector<8x256xf32>, i32 -> vector<8x256xf32>
    %cst_24 = arith.constant 0.000000e+00 : f32
    %87 = vector.shape_cast %27 : vector<1x256xi1> to vector<1x256xi1>
    %88 = vector.broadcast %87 : vector<1x256xi1> to vector<8x256xi1>
    %89 = vector.broadcast %cst_24 : f32 to vector<8x256xf32>
    %90 = arith.select %88, %86, %89 : vector<8x256xi1>, vector<8x256xf32>
    %c55_i32 = arith.constant 55 : i32
    %91 = tpu.dynamic_rotate %47 by %c55_i32 dim 1 : vector<8x256xf32>, i32 -> vector<8x256xf32>
    %cst_25 = arith.constant 0.000000e+00 : f32
    %92 = vector.shape_cast %29 : vector<1x256xi1> to vector<1x256xi1>
    %93 = vector.broadcast %92 : vector<1x256xi1> to vector<8x256xi1>
    %94 = vector.broadcast %cst_25 : f32 to vector<8x256xf32>
    %95 = arith.select %93, %91, %94 : vector<8x256xi1>, vector<8x256xf32>
    %96 = tpu.concatenate %55, %60, %65, %70, %75, %80, %85, %90, %95 in 0 : vector<8x256xf32>, vector<8x256xf32>, vector<8x256xf32>, vector<8x256xf32>, vector<8x256xf32>, vector<8x256xf32>, vector<8x256xf32>, vector<8x256xf32>, vector<8x256xf32> -> vector<72x256xf32>
    %97 = arith.truncf %96 : vector<72x256xf32> to vector<72x256xbf16>
    %98 = vector.extract_strided_slice %48 {offsets = [0, 0, 0], sizes = [1, 8, 72], strides = [1, 1, 1]} : vector<3x8x72xbf16> to vector<1x8x72xbf16>
    %99 = vector.shape_cast %98 : vector<1x8x72xbf16> to vector<8x72xbf16>
    %cst_26 = arith.constant dense<0.000000e+00> : vector<8x256xf32>
    %100 = tpu.matmul %99, %97, %cst_26 {dimension_numbers = #tpu.dot_dimension_numbers<[1], [0], [0], [1], [0, 0, 1, 1], [], []>} : vector<8x72xbf16>, vector<72x256xbf16>, vector<8x256xf32> -> vector<8x256xf32>
    %c9_i32 = arith.constant 9 : i32
    %101 = tpu.dynamic_rotate %47 by %c9_i32 dim 1 : vector<8x256xf32>, i32 -> vector<8x256xf32>
    %cst_27 = arith.constant 0.000000e+00 : f32
    %102 = vector.shape_cast %30 : vector<1x256xi1> to vector<1x256xi1>
    %103 = vector.broadcast %102 : vector<1x256xi1> to vector<8x256xi1>
    %104 = vector.broadcast %cst_27 : f32 to vector<8x256xf32>
    %105 = arith.select %103, %101, %104 : vector<8x256xi1>, vector<8x256xf32>
    %c8_i32 = arith.constant 8 : i32
    %106 = tpu.dynamic_rotate %47 by %c8_i32 dim 1 : vector<8x256xf32>, i32 -> vector<8x256xf32>
    %cst_28 = arith.constant 0.000000e+00 : f32
    %107 = vector.shape_cast %11 : vector<1x256xi1> to vector<1x256xi1>
    %108 = vector.broadcast %107 : vector<1x256xi1> to vector<8x256xi1>
    %109 = vector.broadcast %cst_28 : f32 to vector<8x256xf32>
    %110 = arith.select %108, %106, %109 : vector<8x256xi1>, vector<8x256xf32>
    %c7_i32_29 = arith.constant 7 : i32
    %111 = tpu.dynamic_rotate %47 by %c7_i32_29 dim 1 : vector<8x256xf32>, i32 -> vector<8x256xf32>
    %cst_30 = arith.constant 0.000000e+00 : f32
    %112 = vector.shape_cast %31 : vector<1x256xi1> to vector<1x256xi1>
    %113 = vector.broadcast %112 : vector<1x256xi1> to vector<8x256xi1>
    %114 = vector.broadcast %cst_30 : f32 to vector<8x256xf32>
    %115 = arith.select %113, %111, %114 : vector<8x256xi1>, vector<8x256xf32>
    %c1_i32_31 = arith.constant 1 : i32
    %116 = tpu.dynamic_rotate %47 by %c1_i32_31 dim 1 : vector<8x256xf32>, i32 -> vector<8x256xf32>
    %cst_32 = arith.constant 0.000000e+00 : f32
    %117 = vector.shape_cast %15 : vector<1x256xi1> to vector<1x256xi1>
    %118 = vector.broadcast %117 : vector<1x256xi1> to vector<8x256xi1>
    %119 = vector.broadcast %cst_32 : f32 to vector<8x256xf32>
    %120 = arith.select %118, %116, %119 : vector<8x256xi1>, vector<8x256xf32>
    %c255_i32 = arith.constant 255 : i32
    %121 = tpu.dynamic_rotate %47 by %c255_i32 dim 1 : vector<8x256xf32>, i32 -> vector<8x256xf32>
    %cst_33 = arith.constant 0.000000e+00 : f32
    %122 = vector.shape_cast %17 : vector<1x256xi1> to vector<1x256xi1>
    %123 = vector.broadcast %122 : vector<1x256xi1> to vector<8x256xi1>
    %124 = vector.broadcast %cst_33 : f32 to vector<8x256xf32>
    %125 = arith.select %123, %121, %124 : vector<8x256xi1>, vector<8x256xf32>
    %c249_i32 = arith.constant 249 : i32
    %126 = tpu.dynamic_rotate %47 by %c249_i32 dim 1 : vector<8x256xf32>, i32 -> vector<8x256xf32>
    %cst_34 = arith.constant 0.000000e+00 : f32
    %127 = vector.shape_cast %32 : vector<1x256xi1> to vector<1x256xi1>
    %128 = vector.broadcast %127 : vector<1x256xi1> to vector<8x256xi1>
    %129 = vector.broadcast %cst_34 : f32 to vector<8x256xf32>
    %130 = arith.select %128, %126, %129 : vector<8x256xi1>, vector<8x256xf32>
    %c248_i32 = arith.constant 248 : i32
    %131 = tpu.dynamic_rotate %47 by %c248_i32 dim 1 : vector<8x256xf32>, i32 -> vector<8x256xf32>
    %cst_35 = arith.constant 0.000000e+00 : f32
    %132 = vector.shape_cast %13 : vector<1x256xi1> to vector<1x256xi1>
    %133 = vector.broadcast %132 : vector<1x256xi1> to vector<8x256xi1>
    %134 = vector.broadcast %cst_35 : f32 to vector<8x256xf32>
    %135 = arith.select %133, %131, %134 : vector<8x256xi1>, vector<8x256xf32>
    %c247_i32 = arith.constant 247 : i32
    %136 = tpu.dynamic_rotate %47 by %c247_i32 dim 1 : vector<8x256xf32>, i32 -> vector<8x256xf32>
    %cst_36 = arith.constant 0.000000e+00 : f32
    %137 = vector.shape_cast %33 : vector<1x256xi1> to vector<1x256xi1>
    %138 = vector.broadcast %137 : vector<1x256xi1> to vector<8x256xi1>
    %139 = vector.broadcast %cst_36 : f32 to vector<8x256xf32>
    %140 = arith.select %138, %136, %139 : vector<8x256xi1>, vector<8x256xf32>
    %141 = tpu.concatenate %105, %110, %115, %120, %47, %125, %130, %135, %140 in 0 : vector<8x256xf32>, vector<8x256xf32>, vector<8x256xf32>, vector<8x256xf32>, vector<8x256xf32>, vector<8x256xf32>, vector<8x256xf32>, vector<8x256xf32>, vector<8x256xf32> -> vector<72x256xf32>
    %142 = arith.truncf %141 : vector<72x256xf32> to vector<72x256xbf16>
    %143 = vector.extract_strided_slice %48 {offsets = [1, 0, 0], sizes = [1, 8, 72], strides = [1, 1, 1]} : vector<3x8x72xbf16> to vector<1x8x72xbf16>
    %144 = vector.shape_cast %143 : vector<1x8x72xbf16> to vector<8x72xbf16>
    %cst_37 = arith.constant dense<0.000000e+00> : vector<8x256xf32>
    %145 = tpu.matmul %144, %142, %cst_37 {dimension_numbers = #tpu.dot_dimension_numbers<[1], [0], [0], [1], [0, 0, 1, 1], [], []>} : vector<8x72xbf16>, vector<72x256xbf16>, vector<8x256xf32> -> vector<8x256xf32>
    %146 = arith.addf %100, %145 : vector<8x256xf32>
    %c201_i32 = arith.constant 201 : i32
    %147 = tpu.dynamic_rotate %47 by %c201_i32 dim 1 : vector<8x256xf32>, i32 -> vector<8x256xf32>
    %cst_38 = arith.constant 0.000000e+00 : f32
    %148 = vector.shape_cast %35 : vector<1x256xi1> to vector<1x256xi1>
    %149 = vector.broadcast %148 : vector<1x256xi1> to vector<8x256xi1>
    %150 = vector.broadcast %cst_38 : f32 to vector<8x256xf32>
    %151 = arith.select %149, %147, %150 : vector<8x256xi1>, vector<8x256xf32>
    %c200_i32 = arith.constant 200 : i32
    %152 = tpu.dynamic_rotate %47 by %c200_i32 dim 1 : vector<8x256xf32>, i32 -> vector<8x256xf32>
    %cst_39 = arith.constant 0.000000e+00 : f32
    %153 = vector.shape_cast %36 : vector<1x256xi1> to vector<1x256xi1>
    %154 = vector.broadcast %153 : vector<1x256xi1> to vector<8x256xi1>
    %155 = vector.broadcast %cst_39 : f32 to vector<8x256xf32>
    %156 = arith.select %154, %152, %155 : vector<8x256xi1>, vector<8x256xf32>
    %c199_i32 = arith.constant 199 : i32
    %157 = tpu.dynamic_rotate %47 by %c199_i32 dim 1 : vector<8x256xf32>, i32 -> vector<8x256xf32>
    %cst_40 = arith.constant 0.000000e+00 : f32
    %158 = vector.shape_cast %38 : vector<1x256xi1> to vector<1x256xi1>
    %159 = vector.broadcast %158 : vector<1x256xi1> to vector<8x256xi1>
    %160 = vector.broadcast %cst_40 : f32 to vector<8x256xf32>
    %161 = arith.select %159, %157, %160 : vector<8x256xi1>, vector<8x256xf32>
    %c193_i32 = arith.constant 193 : i32
    %162 = tpu.dynamic_rotate %47 by %c193_i32 dim 1 : vector<8x256xf32>, i32 -> vector<8x256xf32>
    %cst_41 = arith.constant 0.000000e+00 : f32
    %163 = vector.shape_cast %39 : vector<1x256xi1> to vector<1x256xi1>
    %164 = vector.broadcast %163 : vector<1x256xi1> to vector<8x256xi1>
    %165 = vector.broadcast %cst_41 : f32 to vector<8x256xf32>
    %166 = arith.select %164, %162, %165 : vector<8x256xi1>, vector<8x256xf32>
    %c192_i32 = arith.constant 192 : i32
    %167 = tpu.dynamic_rotate %47 by %c192_i32 dim 1 : vector<8x256xf32>, i32 -> vector<8x256xf32>
    %cst_42 = arith.constant 0.000000e+00 : f32
    %168 = vector.shape_cast %9 : vector<1x256xi1> to vector<1x256xi1>
    %169 = vector.broadcast %168 : vector<1x256xi1> to vector<8x256xi1>
    %170 = vector.broadcast %cst_42 : f32 to vector<8x256xf32>
    %171 = arith.select %169, %167, %170 : vector<8x256xi1>, vector<8x256xf32>
    %c191_i32 = arith.constant 191 : i32
    %172 = tpu.dynamic_rotate %47 by %c191_i32 dim 1 : vector<8x256xf32>, i32 -> vector<8x256xf32>
    %cst_43 = arith.constant 0.000000e+00 : f32
    %173 = vector.shape_cast %40 : vector<1x256xi1> to vector<1x256xi1>
    %174 = vector.broadcast %173 : vector<1x256xi1> to vector<8x256xi1>
    %175 = vector.broadcast %cst_43 : f32 to vector<8x256xf32>
    %176 = arith.select %174, %172, %175 : vector<8x256xi1>, vector<8x256xf32>
    %c185_i32 = arith.constant 185 : i32
    %177 = tpu.dynamic_rotate %47 by %c185_i32 dim 1 : vector<8x256xf32>, i32 -> vector<8x256xf32>
    %cst_44 = arith.constant 0.000000e+00 : f32
    %178 = vector.shape_cast %42 : vector<1x256xi1> to vector<1x256xi1>
    %179 = vector.broadcast %178 : vector<1x256xi1> to vector<8x256xi1>
    %180 = vector.broadcast %cst_44 : f32 to vector<8x256xf32>
    %181 = arith.select %179, %177, %180 : vector<8x256xi1>, vector<8x256xf32>
    %c184_i32 = arith.constant 184 : i32
    %182 = tpu.dynamic_rotate %47 by %c184_i32 dim 1 : vector<8x256xf32>, i32 -> vector<8x256xf32>
    %cst_45 = arith.constant 0.000000e+00 : f32
    %183 = vector.shape_cast %43 : vector<1x256xi1> to vector<1x256xi1>
    %184 = vector.broadcast %183 : vector<1x256xi1> to vector<8x256xi1>
    %185 = vector.broadcast %cst_45 : f32 to vector<8x256xf32>
    %186 = arith.select %184, %182, %185 : vector<8x256xi1>, vector<8x256xf32>
    %c183_i32 = arith.constant 183 : i32
    %187 = tpu.dynamic_rotate %47 by %c183_i32 dim 1 : vector<8x256xf32>, i32 -> vector<8x256xf32>
    %cst_46 = arith.constant 0.000000e+00 : f32
    %188 = vector.shape_cast %45 : vector<1x256xi1> to vector<1x256xi1>
    %189 = vector.broadcast %188 : vector<1x256xi1> to vector<8x256xi1>
    %190 = vector.broadcast %cst_46 : f32 to vector<8x256xf32>
    %191 = arith.select %189, %187, %190 : vector<8x256xi1>, vector<8x256xf32>
    %192 = tpu.concatenate %151, %156, %161, %166, %171, %176, %181, %186, %191 in 0 : vector<8x256xf32>, vector<8x256xf32>, vector<8x256xf32>, vector<8x256xf32>, vector<8x256xf32>, vector<8x256xf32>, vector<8x256xf32>, vector<8x256xf32>, vector<8x256xf32> -> vector<72x256xf32>
    %193 = arith.truncf %192 : vector<72x256xf32> to vector<72x256xbf16>
    %194 = vector.extract_strided_slice %48 {offsets = [2, 0, 0], sizes = [1, 8, 72], strides = [1, 1, 1]} : vector<3x8x72xbf16> to vector<1x8x72xbf16>
    %195 = vector.shape_cast %194 : vector<1x8x72xbf16> to vector<8x72xbf16>
    %cst_47 = arith.constant dense<0.000000e+00> : vector<8x256xf32>
    %196 = tpu.matmul %195, %193, %cst_47 {dimension_numbers = #tpu.dot_dimension_numbers<[1], [0], [0], [1], [0, 0, 1, 1], [], []>} : vector<8x72xbf16>, vector<72x256xbf16>, vector<8x256xf32> -> vector<8x256xf32>
    %197 = arith.addf %146, %196 : vector<8x256xf32>
    %198 = vector.broadcast %50 : vector<8x1xf32> to vector<8x256xf32>
    %199 = arith.addf %197, %198 : vector<8x256xf32>
    %cst_48 = arith.constant 0.000000e+00 : f32
    %200 = vector.broadcast %cst_48 : f32 to vector<8x256xf32>
    %201 = arith.maximumf %199, %200 : vector<8x256xf32>
    %c0_49 = arith.constant 0 : index
    %c0_50 = arith.constant 0 : index
    %c0_51 = arith.constant 0 : index
    %c0_52 = arith.constant 0 : index
    %202 = vector.load %arg4[%c0_49, %c0_50, %c0_51, %c0_52] : memref<5x3x8x72xbf16, #tpu.memory_space<vmem>>, vector<1x3x8x72xbf16>
    %203 = vector.shape_cast %202 : vector<1x3x8x72xbf16> to vector<3x8x72xbf16>
    %c1_53 = arith.constant 1 : index
    %c0_54 = arith.constant 0 : index
    %c0_55 = arith.constant 0 : index
    %204 = vector.load %arg5[%c1_53, %c0_54, %c0_55] : memref<6x8x1xf32, #tpu.memory_space<vmem>>, vector<1x8x1xf32>
    %205 = vector.shape_cast %204 : vector<1x8x1xf32> to vector<8x1xf32>
    %c73_i32_56 = arith.constant 73 : i32
    %206 = tpu.dynamic_rotate %201 by %c73_i32_56 dim 1 : vector<8x256xf32>, i32 -> vector<8x256xf32>
    %cst_57 = arith.constant 0.000000e+00 : f32
    %207 = vector.shape_cast %19 : vector<1x256xi1> to vector<1x256xi1>
    %208 = vector.broadcast %207 : vector<1x256xi1> to vector<8x256xi1>
    %209 = vector.broadcast %cst_57 : f32 to vector<8x256xf32>
    %210 = arith.select %208, %206, %209 : vector<8x256xi1>, vector<8x256xf32>
    %c72_i32_58 = arith.constant 72 : i32
    %211 = tpu.dynamic_rotate %201 by %c72_i32_58 dim 1 : vector<8x256xf32>, i32 -> vector<8x256xf32>
    %cst_59 = arith.constant 0.000000e+00 : f32
    %212 = vector.shape_cast %20 : vector<1x256xi1> to vector<1x256xi1>
    %213 = vector.broadcast %212 : vector<1x256xi1> to vector<8x256xi1>
    %214 = vector.broadcast %cst_59 : f32 to vector<8x256xf32>
    %215 = arith.select %213, %211, %214 : vector<8x256xi1>, vector<8x256xf32>
    %c71_i32_60 = arith.constant 71 : i32
    %216 = tpu.dynamic_rotate %201 by %c71_i32_60 dim 1 : vector<8x256xf32>, i32 -> vector<8x256xf32>
    %cst_61 = arith.constant 0.000000e+00 : f32
    %217 = vector.shape_cast %22 : vector<1x256xi1> to vector<1x256xi1>
    %218 = vector.broadcast %217 : vector<1x256xi1> to vector<8x256xi1>
    %219 = vector.broadcast %cst_61 : f32 to vector<8x256xf32>
    %220 = arith.select %218, %216, %219 : vector<8x256xi1>, vector<8x256xf32>
    %c65_i32_62 = arith.constant 65 : i32
    %221 = tpu.dynamic_rotate %201 by %c65_i32_62 dim 1 : vector<8x256xf32>, i32 -> vector<8x256xf32>
    %cst_63 = arith.constant 0.000000e+00 : f32
    %222 = vector.shape_cast %23 : vector<1x256xi1> to vector<1x256xi1>
    %223 = vector.broadcast %222 : vector<1x256xi1> to vector<8x256xi1>
    %224 = vector.broadcast %cst_63 : f32 to vector<8x256xf32>
    %225 = arith.select %223, %221, %224 : vector<8x256xi1>, vector<8x256xf32>
    %c64_i32_64 = arith.constant 64 : i32
    %226 = tpu.dynamic_rotate %201 by %c64_i32_64 dim 1 : vector<8x256xf32>, i32 -> vector<8x256xf32>
    %cst_65 = arith.constant 0.000000e+00 : f32
    %227 = vector.shape_cast %7 : vector<1x256xi1> to vector<1x256xi1>
    %228 = vector.broadcast %227 : vector<1x256xi1> to vector<8x256xi1>
    %229 = vector.broadcast %cst_65 : f32 to vector<8x256xf32>
    %230 = arith.select %228, %226, %229 : vector<8x256xi1>, vector<8x256xf32>
    %c63_i32_66 = arith.constant 63 : i32
    %231 = tpu.dynamic_rotate %201 by %c63_i32_66 dim 1 : vector<8x256xf32>, i32 -> vector<8x256xf32>
    %cst_67 = arith.constant 0.000000e+00 : f32
    %232 = vector.shape_cast %24 : vector<1x256xi1> to vector<1x256xi1>
    %233 = vector.broadcast %232 : vector<1x256xi1> to vector<8x256xi1>
    %234 = vector.broadcast %cst_67 : f32 to vector<8x256xf32>
    %235 = arith.select %233, %231, %234 : vector<8x256xi1>, vector<8x256xf32>
    %c57_i32_68 = arith.constant 57 : i32
    %236 = tpu.dynamic_rotate %201 by %c57_i32_68 dim 1 : vector<8x256xf32>, i32 -> vector<8x256xf32>
    %cst_69 = arith.constant 0.000000e+00 : f32
    %237 = vector.shape_cast %26 : vector<1x256xi1> to vector<1x256xi1>
    %238 = vector.broadcast %237 : vector<1x256xi1> to vector<8x256xi1>
    %239 = vector.broadcast %cst_69 : f32 to vector<8x256xf32>
    %240 = arith.select %238, %236, %239 : vector<8x256xi1>, vector<8x256xf32>
    %c56_i32_70 = arith.constant 56 : i32
    %241 = tpu.dynamic_rotate %201 by %c56_i32_70 dim 1 : vector<8x256xf32>, i32 -> vector<8x256xf32>
    %cst_71 = arith.constant 0.000000e+00 : f32
    %242 = vector.shape_cast %27 : vector<1x256xi1> to vector<1x256xi1>
    %243 = vector.broadcast %242 : vector<1x256xi1> to vector<8x256xi1>
    %244 = vector.broadcast %cst_71 : f32 to vector<8x256xf32>
    %245 = arith.select %243, %241, %244 : vector<8x256xi1>, vector<8x256xf32>
    %c55_i32_72 = arith.constant 55 : i32
    %246 = tpu.dynamic_rotate %201 by %c55_i32_72 dim 1 : vector<8x256xf32>, i32 -> vector<8x256xf32>
    %cst_73 = arith.constant 0.000000e+00 : f32
    %247 = vector.shape_cast %29 : vector<1x256xi1> to vector<1x256xi1>
    %248 = vector.broadcast %247 : vector<1x256xi1> to vector<8x256xi1>
    %249 = vector.broadcast %cst_73 : f32 to vector<8x256xf32>
    %250 = arith.select %248, %246, %249 : vector<8x256xi1>, vector<8x256xf32>
    %251 = tpu.concatenate %210, %215, %220, %225, %230, %235, %240, %245, %250 in 0 : vector<8x256xf32>, vector<8x256xf32>, vector<8x256xf32>, vector<8x256xf32>, vector<8x256xf32>, vector<8x256xf32>, vector<8x256xf32>, vector<8x256xf32>, vector<8x256xf32> -> vector<72x256xf32>
    %252 = arith.truncf %251 : vector<72x256xf32> to vector<72x256xbf16>
    %253 = vector.extract_strided_slice %203 {offsets = [0, 0, 0], sizes = [1, 8, 72], strides = [1, 1, 1]} : vector<3x8x72xbf16> to vector<1x8x72xbf16>
    %254 = vector.shape_cast %253 : vector<1x8x72xbf16> to vector<8x72xbf16>
    %cst_74 = arith.constant dense<0.000000e+00> : vector<8x256xf32>
    %255 = tpu.matmul %254, %252, %cst_74 {dimension_numbers = #tpu.dot_dimension_numbers<[1], [0], [0], [1], [0, 0, 1, 1], [], []>} : vector<8x72xbf16>, vector<72x256xbf16>, vector<8x256xf32> -> vector<8x256xf32>
    %c9_i32_75 = arith.constant 9 : i32
    %256 = tpu.dynamic_rotate %201 by %c9_i32_75 dim 1 : vector<8x256xf32>, i32 -> vector<8x256xf32>
    %cst_76 = arith.constant 0.000000e+00 : f32
    %257 = vector.shape_cast %30 : vector<1x256xi1> to vector<1x256xi1>
    %258 = vector.broadcast %257 : vector<1x256xi1> to vector<8x256xi1>
    %259 = vector.broadcast %cst_76 : f32 to vector<8x256xf32>
    %260 = arith.select %258, %256, %259 : vector<8x256xi1>, vector<8x256xf32>
    %c8_i32_77 = arith.constant 8 : i32
    %261 = tpu.dynamic_rotate %201 by %c8_i32_77 dim 1 : vector<8x256xf32>, i32 -> vector<8x256xf32>
    %cst_78 = arith.constant 0.000000e+00 : f32
    %262 = vector.shape_cast %11 : vector<1x256xi1> to vector<1x256xi1>
    %263 = vector.broadcast %262 : vector<1x256xi1> to vector<8x256xi1>
    %264 = vector.broadcast %cst_78 : f32 to vector<8x256xf32>
    %265 = arith.select %263, %261, %264 : vector<8x256xi1>, vector<8x256xf32>
    %c7_i32_79 = arith.constant 7 : i32
    %266 = tpu.dynamic_rotate %201 by %c7_i32_79 dim 1 : vector<8x256xf32>, i32 -> vector<8x256xf32>
    %cst_80 = arith.constant 0.000000e+00 : f32
    %267 = vector.shape_cast %31 : vector<1x256xi1> to vector<1x256xi1>
    %268 = vector.broadcast %267 : vector<1x256xi1> to vector<8x256xi1>
    %269 = vector.broadcast %cst_80 : f32 to vector<8x256xf32>
    %270 = arith.select %268, %266, %269 : vector<8x256xi1>, vector<8x256xf32>
    %c1_i32_81 = arith.constant 1 : i32
    %271 = tpu.dynamic_rotate %201 by %c1_i32_81 dim 1 : vector<8x256xf32>, i32 -> vector<8x256xf32>
    %cst_82 = arith.constant 0.000000e+00 : f32
    %272 = vector.shape_cast %15 : vector<1x256xi1> to vector<1x256xi1>
    %273 = vector.broadcast %272 : vector<1x256xi1> to vector<8x256xi1>
    %274 = vector.broadcast %cst_82 : f32 to vector<8x256xf32>
    %275 = arith.select %273, %271, %274 : vector<8x256xi1>, vector<8x256xf32>
    %c255_i32_83 = arith.constant 255 : i32
    %276 = tpu.dynamic_rotate %201 by %c255_i32_83 dim 1 : vector<8x256xf32>, i32 -> vector<8x256xf32>
    %cst_84 = arith.constant 0.000000e+00 : f32
    %277 = vector.shape_cast %17 : vector<1x256xi1> to vector<1x256xi1>
    %278 = vector.broadcast %277 : vector<1x256xi1> to vector<8x256xi1>
    %279 = vector.broadcast %cst_84 : f32 to vector<8x256xf32>
    %280 = arith.select %278, %276, %279 : vector<8x256xi1>, vector<8x256xf32>
    %c249_i32_85 = arith.constant 249 : i32
    %281 = tpu.dynamic_rotate %201 by %c249_i32_85 dim 1 : vector<8x256xf32>, i32 -> vector<8x256xf32>
    %cst_86 = arith.constant 0.000000e+00 : f32
    %282 = vector.shape_cast %32 : vector<1x256xi1> to vector<1x256xi1>
    %283 = vector.broadcast %282 : vector<1x256xi1> to vector<8x256xi1>
    %284 = vector.broadcast %cst_86 : f32 to vector<8x256xf32>
    %285 = arith.select %283, %281, %284 : vector<8x256xi1>, vector<8x256xf32>
    %c248_i32_87 = arith.constant 248 : i32
    %286 = tpu.dynamic_rotate %201 by %c248_i32_87 dim 1 : vector<8x256xf32>, i32 -> vector<8x256xf32>
    %cst_88 = arith.constant 0.000000e+00 : f32
    %287 = vector.shape_cast %13 : vector<1x256xi1> to vector<1x256xi1>
    %288 = vector.broadcast %287 : vector<1x256xi1> to vector<8x256xi1>
    %289 = vector.broadcast %cst_88 : f32 to vector<8x256xf32>
    %290 = arith.select %288, %286, %289 : vector<8x256xi1>, vector<8x256xf32>
    %c247_i32_89 = arith.constant 247 : i32
    %291 = tpu.dynamic_rotate %201 by %c247_i32_89 dim 1 : vector<8x256xf32>, i32 -> vector<8x256xf32>
    %cst_90 = arith.constant 0.000000e+00 : f32
    %292 = vector.shape_cast %33 : vector<1x256xi1> to vector<1x256xi1>
    %293 = vector.broadcast %292 : vector<1x256xi1> to vector<8x256xi1>
    %294 = vector.broadcast %cst_90 : f32 to vector<8x256xf32>
    %295 = arith.select %293, %291, %294 : vector<8x256xi1>, vector<8x256xf32>
    %296 = tpu.concatenate %260, %265, %270, %275, %201, %280, %285, %290, %295 in 0 : vector<8x256xf32>, vector<8x256xf32>, vector<8x256xf32>, vector<8x256xf32>, vector<8x256xf32>, vector<8x256xf32>, vector<8x256xf32>, vector<8x256xf32>, vector<8x256xf32> -> vector<72x256xf32>
    %297 = arith.truncf %296 : vector<72x256xf32> to vector<72x256xbf16>
    %298 = vector.extract_strided_slice %203 {offsets = [1, 0, 0], sizes = [1, 8, 72], strides = [1, 1, 1]} : vector<3x8x72xbf16> to vector<1x8x72xbf16>
    %299 = vector.shape_cast %298 : vector<1x8x72xbf16> to vector<8x72xbf16>
    %cst_91 = arith.constant dense<0.000000e+00> : vector<8x256xf32>
    %300 = tpu.matmul %299, %297, %cst_91 {dimension_numbers = #tpu.dot_dimension_numbers<[1], [0], [0], [1], [0, 0, 1, 1], [], []>} : vector<8x72xbf16>, vector<72x256xbf16>, vector<8x256xf32> -> vector<8x256xf32>
    %301 = arith.addf %255, %300 : vector<8x256xf32>
    %c201_i32_92 = arith.constant 201 : i32
    %302 = tpu.dynamic_rotate %201 by %c201_i32_92 dim 1 : vector<8x256xf32>, i32 -> vector<8x256xf32>
    %cst_93 = arith.constant 0.000000e+00 : f32
    %303 = vector.shape_cast %35 : vector<1x256xi1> to vector<1x256xi1>
    %304 = vector.broadcast %303 : vector<1x256xi1> to vector<8x256xi1>
    %305 = vector.broadcast %cst_93 : f32 to vector<8x256xf32>
    %306 = arith.select %304, %302, %305 : vector<8x256xi1>, vector<8x256xf32>
    %c200_i32_94 = arith.constant 200 : i32
    %307 = tpu.dynamic_rotate %201 by %c200_i32_94 dim 1 : vector<8x256xf32>, i32 -> vector<8x256xf32>
    %cst_95 = arith.constant 0.000000e+00 : f32
    %308 = vector.shape_cast %36 : vector<1x256xi1> to vector<1x256xi1>
    %309 = vector.broadcast %308 : vector<1x256xi1> to vector<8x256xi1>
    %310 = vector.broadcast %cst_95 : f32 to vector<8x256xf32>
    %311 = arith.select %309, %307, %310 : vector<8x256xi1>, vector<8x256xf32>
    %c199_i32_96 = arith.constant 199 : i32
    %312 = tpu.dynamic_rotate %201 by %c199_i32_96 dim 1 : vector<8x256xf32>, i32 -> vector<8x256xf32>
    %cst_97 = arith.constant 0.000000e+00 : f32
    %313 = vector.shape_cast %38 : vector<1x256xi1> to vector<1x256xi1>
    %314 = vector.broadcast %313 : vector<1x256xi1> to vector<8x256xi1>
    %315 = vector.broadcast %cst_97 : f32 to vector<8x256xf32>
    %316 = arith.select %314, %312, %315 : vector<8x256xi1>, vector<8x256xf32>
    %c193_i32_98 = arith.constant 193 : i32
    %317 = tpu.dynamic_rotate %201 by %c193_i32_98 dim 1 : vector<8x256xf32>, i32 -> vector<8x256xf32>
    %cst_99 = arith.constant 0.000000e+00 : f32
    %318 = vector.shape_cast %39 : vector<1x256xi1> to vector<1x256xi1>
    %319 = vector.broadcast %318 : vector<1x256xi1> to vector<8x256xi1>
    %320 = vector.broadcast %cst_99 : f32 to vector<8x256xf32>
    %321 = arith.select %319, %317, %320 : vector<8x256xi1>, vector<8x256xf32>
    %c192_i32_100 = arith.constant 192 : i32
    %322 = tpu.dynamic_rotate %201 by %c192_i32_100 dim 1 : vector<8x256xf32>, i32 -> vector<8x256xf32>
    %cst_101 = arith.constant 0.000000e+00 : f32
    %323 = vector.shape_cast %9 : vector<1x256xi1> to vector<1x256xi1>
    %324 = vector.broadcast %323 : vector<1x256xi1> to vector<8x256xi1>
    %325 = vector.broadcast %cst_101 : f32 to vector<8x256xf32>
    %326 = arith.select %324, %322, %325 : vector<8x256xi1>, vector<8x256xf32>
    %c191_i32_102 = arith.constant 191 : i32
    %327 = tpu.dynamic_rotate %201 by %c191_i32_102 dim 1 : vector<8x256xf32>, i32 -> vector<8x256xf32>
    %cst_103 = arith.constant 0.000000e+00 : f32
    %328 = vector.shape_cast %40 : vector<1x256xi1> to vector<1x256xi1>
    %329 = vector.broadcast %328 : vector<1x256xi1> to vector<8x256xi1>
    %330 = vector.broadcast %cst_103 : f32 to vector<8x256xf32>
    %331 = arith.select %329, %327, %330 : vector<8x256xi1>, vector<8x256xf32>
    %c185_i32_104 = arith.constant 185 : i32
    %332 = tpu.dynamic_rotate %201 by %c185_i32_104 dim 1 : vector<8x256xf32>, i32 -> vector<8x256xf32>
    %cst_105 = arith.constant 0.000000e+00 : f32
    %333 = vector.shape_cast %42 : vector<1x256xi1> to vector<1x256xi1>
    %334 = vector.broadcast %333 : vector<1x256xi1> to vector<8x256xi1>
    %335 = vector.broadcast %cst_105 : f32 to vector<8x256xf32>
    %336 = arith.select %334, %332, %335 : vector<8x256xi1>, vector<8x256xf32>
    %c184_i32_106 = arith.constant 184 : i32
    %337 = tpu.dynamic_rotate %201 by %c184_i32_106 dim 1 : vector<8x256xf32>, i32 -> vector<8x256xf32>
    %cst_107 = arith.constant 0.000000e+00 : f32
    %338 = vector.shape_cast %43 : vector<1x256xi1> to vector<1x256xi1>
    %339 = vector.broadcast %338 : vector<1x256xi1> to vector<8x256xi1>
    %340 = vector.broadcast %cst_107 : f32 to vector<8x256xf32>
    %341 = arith.select %339, %337, %340 : vector<8x256xi1>, vector<8x256xf32>
    %c183_i32_108 = arith.constant 183 : i32
    %342 = tpu.dynamic_rotate %201 by %c183_i32_108 dim 1 : vector<8x256xf32>, i32 -> vector<8x256xf32>
    %cst_109 = arith.constant 0.000000e+00 : f32
    %343 = vector.shape_cast %45 : vector<1x256xi1> to vector<1x256xi1>
    %344 = vector.broadcast %343 : vector<1x256xi1> to vector<8x256xi1>
    %345 = vector.broadcast %cst_109 : f32 to vector<8x256xf32>
    %346 = arith.select %344, %342, %345 : vector<8x256xi1>, vector<8x256xf32>
    %347 = tpu.concatenate %306, %311, %316, %321, %326, %331, %336, %341, %346 in 0 : vector<8x256xf32>, vector<8x256xf32>, vector<8x256xf32>, vector<8x256xf32>, vector<8x256xf32>, vector<8x256xf32>, vector<8x256xf32>, vector<8x256xf32>, vector<8x256xf32> -> vector<72x256xf32>
    %348 = arith.truncf %347 : vector<72x256xf32> to vector<72x256xbf16>
    %349 = vector.extract_strided_slice %203 {offsets = [2, 0, 0], sizes = [1, 8, 72], strides = [1, 1, 1]} : vector<3x8x72xbf16> to vector<1x8x72xbf16>
    %350 = vector.shape_cast %349 : vector<1x8x72xbf16> to vector<8x72xbf16>
    %cst_110 = arith.constant dense<0.000000e+00> : vector<8x256xf32>
    %351 = tpu.matmul %350, %348, %cst_110 {dimension_numbers = #tpu.dot_dimension_numbers<[1], [0], [0], [1], [0, 0, 1, 1], [], []>} : vector<8x72xbf16>, vector<72x256xbf16>, vector<8x256xf32> -> vector<8x256xf32>
    %352 = arith.addf %301, %351 : vector<8x256xf32>
    %353 = vector.broadcast %205 : vector<8x1xf32> to vector<8x256xf32>
    %354 = arith.addf %352, %353 : vector<8x256xf32>
    %cst_111 = arith.constant 0.000000e+00 : f32
    %355 = vector.broadcast %cst_111 : f32 to vector<8x256xf32>
    %356 = arith.maximumf %354, %355 : vector<8x256xf32>
    %c1_112 = arith.constant 1 : index
    %c0_113 = arith.constant 0 : index
    %c0_114 = arith.constant 0 : index
    %c0_115 = arith.constant 0 : index
    %357 = vector.load %arg4[%c1_112, %c0_113, %c0_114, %c0_115] : memref<5x3x8x72xbf16, #tpu.memory_space<vmem>>, vector<1x3x8x72xbf16>
    %358 = vector.shape_cast %357 : vector<1x3x8x72xbf16> to vector<3x8x72xbf16>
    %c2_116 = arith.constant 2 : index
    %c0_117 = arith.constant 0 : index
    %c0_118 = arith.constant 0 : index
    %359 = vector.load %arg5[%c2_116, %c0_117, %c0_118] : memref<6x8x1xf32, #tpu.memory_space<vmem>>, vector<1x8x1xf32>
    %360 = vector.shape_cast %359 : vector<1x8x1xf32> to vector<8x1xf32>
    %c73_i32_119 = arith.constant 73 : i32
    %361 = tpu.dynamic_rotate %356 by %c73_i32_119 dim 1 : vector<8x256xf32>, i32 -> vector<8x256xf32>
    %cst_120 = arith.constant 0.000000e+00 : f32
    %362 = vector.shape_cast %19 : vector<1x256xi1> to vector<1x256xi1>
    %363 = vector.broadcast %362 : vector<1x256xi1> to vector<8x256xi1>
    %364 = vector.broadcast %cst_120 : f32 to vector<8x256xf32>
    %365 = arith.select %363, %361, %364 : vector<8x256xi1>, vector<8x256xf32>
    %c72_i32_121 = arith.constant 72 : i32
    %366 = tpu.dynamic_rotate %356 by %c72_i32_121 dim 1 : vector<8x256xf32>, i32 -> vector<8x256xf32>
    %cst_122 = arith.constant 0.000000e+00 : f32
    %367 = vector.shape_cast %20 : vector<1x256xi1> to vector<1x256xi1>
    %368 = vector.broadcast %367 : vector<1x256xi1> to vector<8x256xi1>
    %369 = vector.broadcast %cst_122 : f32 to vector<8x256xf32>
    %370 = arith.select %368, %366, %369 : vector<8x256xi1>, vector<8x256xf32>
    %c71_i32_123 = arith.constant 71 : i32
    %371 = tpu.dynamic_rotate %356 by %c71_i32_123 dim 1 : vector<8x256xf32>, i32 -> vector<8x256xf32>
    %cst_124 = arith.constant 0.000000e+00 : f32
    %372 = vector.shape_cast %22 : vector<1x256xi1> to vector<1x256xi1>
    %373 = vector.broadcast %372 : vector<1x256xi1> to vector<8x256xi1>
    %374 = vector.broadcast %cst_124 : f32 to vector<8x256xf32>
    %375 = arith.select %373, %371, %374 : vector<8x256xi1>, vector<8x256xf32>
    %c65_i32_125 = arith.constant 65 : i32
    %376 = tpu.dynamic_rotate %356 by %c65_i32_125 dim 1 : vector<8x256xf32>, i32 -> vector<8x256xf32>
    %cst_126 = arith.constant 0.000000e+00 : f32
    %377 = vector.shape_cast %23 : vector<1x256xi1> to vector<1x256xi1>
    %378 = vector.broadcast %377 : vector<1x256xi1> to vector<8x256xi1>
    %379 = vector.broadcast %cst_126 : f32 to vector<8x256xf32>
    %380 = arith.select %378, %376, %379 : vector<8x256xi1>, vector<8x256xf32>
    %c64_i32_127 = arith.constant 64 : i32
    %381 = tpu.dynamic_rotate %356 by %c64_i32_127 dim 1 : vector<8x256xf32>, i32 -> vector<8x256xf32>
    %cst_128 = arith.constant 0.000000e+00 : f32
    %382 = vector.shape_cast %7 : vector<1x256xi1> to vector<1x256xi1>
    %383 = vector.broadcast %382 : vector<1x256xi1> to vector<8x256xi1>
    %384 = vector.broadcast %cst_128 : f32 to vector<8x256xf32>
    %385 = arith.select %383, %381, %384 : vector<8x256xi1>, vector<8x256xf32>
    %c63_i32_129 = arith.constant 63 : i32
    %386 = tpu.dynamic_rotate %356 by %c63_i32_129 dim 1 : vector<8x256xf32>, i32 -> vector<8x256xf32>
    %cst_130 = arith.constant 0.000000e+00 : f32
    %387 = vector.shape_cast %24 : vector<1x256xi1> to vector<1x256xi1>
    %388 = vector.broadcast %387 : vector<1x256xi1> to vector<8x256xi1>
    %389 = vector.broadcast %cst_130 : f32 to vector<8x256xf32>
    %390 = arith.select %388, %386, %389 : vector<8x256xi1>, vector<8x256xf32>
    %c57_i32_131 = arith.constant 57 : i32
    %391 = tpu.dynamic_rotate %356 by %c57_i32_131 dim 1 : vector<8x256xf32>, i32 -> vector<8x256xf32>
    %cst_132 = arith.constant 0.000000e+00 : f32
    %392 = vector.shape_cast %26 : vector<1x256xi1> to vector<1x256xi1>
    %393 = vector.broadcast %392 : vector<1x256xi1> to vector<8x256xi1>
    %394 = vector.broadcast %cst_132 : f32 to vector<8x256xf32>
    %395 = arith.select %393, %391, %394 : vector<8x256xi1>, vector<8x256xf32>
    %c56_i32_133 = arith.constant 56 : i32
    %396 = tpu.dynamic_rotate %356 by %c56_i32_133 dim 1 : vector<8x256xf32>, i32 -> vector<8x256xf32>
    %cst_134 = arith.constant 0.000000e+00 : f32
    %397 = vector.shape_cast %27 : vector<1x256xi1> to vector<1x256xi1>
    %398 = vector.broadcast %397 : vector<1x256xi1> to vector<8x256xi1>
    %399 = vector.broadcast %cst_134 : f32 to vector<8x256xf32>
    %400 = arith.select %398, %396, %399 : vector<8x256xi1>, vector<8x256xf32>
    %c55_i32_135 = arith.constant 55 : i32
    %401 = tpu.dynamic_rotate %356 by %c55_i32_135 dim 1 : vector<8x256xf32>, i32 -> vector<8x256xf32>
    %cst_136 = arith.constant 0.000000e+00 : f32
    %402 = vector.shape_cast %29 : vector<1x256xi1> to vector<1x256xi1>
    %403 = vector.broadcast %402 : vector<1x256xi1> to vector<8x256xi1>
    %404 = vector.broadcast %cst_136 : f32 to vector<8x256xf32>
    %405 = arith.select %403, %401, %404 : vector<8x256xi1>, vector<8x256xf32>
    %406 = tpu.concatenate %365, %370, %375, %380, %385, %390, %395, %400, %405 in 0 : vector<8x256xf32>, vector<8x256xf32>, vector<8x256xf32>, vector<8x256xf32>, vector<8x256xf32>, vector<8x256xf32>, vector<8x256xf32>, vector<8x256xf32>, vector<8x256xf32> -> vector<72x256xf32>
    %407 = arith.truncf %406 : vector<72x256xf32> to vector<72x256xbf16>
    %408 = vector.extract_strided_slice %358 {offsets = [0, 0, 0], sizes = [1, 8, 72], strides = [1, 1, 1]} : vector<3x8x72xbf16> to vector<1x8x72xbf16>
    %409 = vector.shape_cast %408 : vector<1x8x72xbf16> to vector<8x72xbf16>
    %cst_137 = arith.constant dense<0.000000e+00> : vector<8x256xf32>
    %410 = tpu.matmul %409, %407, %cst_137 {dimension_numbers = #tpu.dot_dimension_numbers<[1], [0], [0], [1], [0, 0, 1, 1], [], []>} : vector<8x72xbf16>, vector<72x256xbf16>, vector<8x256xf32> -> vector<8x256xf32>
    %c9_i32_138 = arith.constant 9 : i32
    %411 = tpu.dynamic_rotate %356 by %c9_i32_138 dim 1 : vector<8x256xf32>, i32 -> vector<8x256xf32>
    %cst_139 = arith.constant 0.000000e+00 : f32
    %412 = vector.shape_cast %30 : vector<1x256xi1> to vector<1x256xi1>
    %413 = vector.broadcast %412 : vector<1x256xi1> to vector<8x256xi1>
    %414 = vector.broadcast %cst_139 : f32 to vector<8x256xf32>
    %415 = arith.select %413, %411, %414 : vector<8x256xi1>, vector<8x256xf32>
    %c8_i32_140 = arith.constant 8 : i32
    %416 = tpu.dynamic_rotate %356 by %c8_i32_140 dim 1 : vector<8x256xf32>, i32 -> vector<8x256xf32>
    %cst_141 = arith.constant 0.000000e+00 : f32
    %417 = vector.shape_cast %11 : vector<1x256xi1> to vector<1x256xi1>
    %418 = vector.broadcast %417 : vector<1x256xi1> to vector<8x256xi1>
    %419 = vector.broadcast %cst_141 : f32 to vector<8x256xf32>
    %420 = arith.select %418, %416, %419 : vector<8x256xi1>, vector<8x256xf32>
    %c7_i32_142 = arith.constant 7 : i32
    %421 = tpu.dynamic_rotate %356 by %c7_i32_142 dim 1 : vector<8x256xf32>, i32 -> vector<8x256xf32>
    %cst_143 = arith.constant 0.000000e+00 : f32
    %422 = vector.shape_cast %31 : vector<1x256xi1> to vector<1x256xi1>
    %423 = vector.broadcast %422 : vector<1x256xi1> to vector<8x256xi1>
    %424 = vector.broadcast %cst_143 : f32 to vector<8x256xf32>
    %425 = arith.select %423, %421, %424 : vector<8x256xi1>, vector<8x256xf32>
    %c1_i32_144 = arith.constant 1 : i32
    %426 = tpu.dynamic_rotate %356 by %c1_i32_144 dim 1 : vector<8x256xf32>, i32 -> vector<8x256xf32>
    %cst_145 = arith.constant 0.000000e+00 : f32
    %427 = vector.shape_cast %15 : vector<1x256xi1> to vector<1x256xi1>
    %428 = vector.broadcast %427 : vector<1x256xi1> to vector<8x256xi1>
    %429 = vector.broadcast %cst_145 : f32 to vector<8x256xf32>
    %430 = arith.select %428, %426, %429 : vector<8x256xi1>, vector<8x256xf32>
    %c255_i32_146 = arith.constant 255 : i32
    %431 = tpu.dynamic_rotate %356 by %c255_i32_146 dim 1 : vector<8x256xf32>, i32 -> vector<8x256xf32>
    %cst_147 = arith.constant 0.000000e+00 : f32
    %432 = vector.shape_cast %17 : vector<1x256xi1> to vector<1x256xi1>
    %433 = vector.broadcast %432 : vector<1x256xi1> to vector<8x256xi1>
    %434 = vector.broadcast %cst_147 : f32 to vector<8x256xf32>
    %435 = arith.select %433, %431, %434 : vector<8x256xi1>, vector<8x256xf32>
    %c249_i32_148 = arith.constant 249 : i32
    %436 = tpu.dynamic_rotate %356 by %c249_i32_148 dim 1 : vector<8x256xf32>, i32 -> vector<8x256xf32>
    %cst_149 = arith.constant 0.000000e+00 : f32
    %437 = vector.shape_cast %32 : vector<1x256xi1> to vector<1x256xi1>
    %438 = vector.broadcast %437 : vector<1x256xi1> to vector<8x256xi1>
    %439 = vector.broadcast %cst_149 : f32 to vector<8x256xf32>
    %440 = arith.select %438, %436, %439 : vector<8x256xi1>, vector<8x256xf32>
    %c248_i32_150 = arith.constant 248 : i32
    %441 = tpu.dynamic_rotate %356 by %c248_i32_150 dim 1 : vector<8x256xf32>, i32 -> vector<8x256xf32>
    %cst_151 = arith.constant 0.000000e+00 : f32
    %442 = vector.shape_cast %13 : vector<1x256xi1> to vector<1x256xi1>
    %443 = vector.broadcast %442 : vector<1x256xi1> to vector<8x256xi1>
    %444 = vector.broadcast %cst_151 : f32 to vector<8x256xf32>
    %445 = arith.select %443, %441, %444 : vector<8x256xi1>, vector<8x256xf32>
    %c247_i32_152 = arith.constant 247 : i32
    %446 = tpu.dynamic_rotate %356 by %c247_i32_152 dim 1 : vector<8x256xf32>, i32 -> vector<8x256xf32>
    %cst_153 = arith.constant 0.000000e+00 : f32
    %447 = vector.shape_cast %33 : vector<1x256xi1> to vector<1x256xi1>
    %448 = vector.broadcast %447 : vector<1x256xi1> to vector<8x256xi1>
    %449 = vector.broadcast %cst_153 : f32 to vector<8x256xf32>
    %450 = arith.select %448, %446, %449 : vector<8x256xi1>, vector<8x256xf32>
    %451 = tpu.concatenate %415, %420, %425, %430, %356, %435, %440, %445, %450 in 0 : vector<8x256xf32>, vector<8x256xf32>, vector<8x256xf32>, vector<8x256xf32>, vector<8x256xf32>, vector<8x256xf32>, vector<8x256xf32>, vector<8x256xf32>, vector<8x256xf32> -> vector<72x256xf32>
    %452 = arith.truncf %451 : vector<72x256xf32> to vector<72x256xbf16>
    %453 = vector.extract_strided_slice %358 {offsets = [1, 0, 0], sizes = [1, 8, 72], strides = [1, 1, 1]} : vector<3x8x72xbf16> to vector<1x8x72xbf16>
    %454 = vector.shape_cast %453 : vector<1x8x72xbf16> to vector<8x72xbf16>
    %cst_154 = arith.constant dense<0.000000e+00> : vector<8x256xf32>
    %455 = tpu.matmul %454, %452, %cst_154 {dimension_numbers = #tpu.dot_dimension_numbers<[1], [0], [0], [1], [0, 0, 1, 1], [], []>} : vector<8x72xbf16>, vector<72x256xbf16>, vector<8x256xf32> -> vector<8x256xf32>
    %456 = arith.addf %410, %455 : vector<8x256xf32>
    %c201_i32_155 = arith.constant 201 : i32
    %457 = tpu.dynamic_rotate %356 by %c201_i32_155 dim 1 : vector<8x256xf32>, i32 -> vector<8x256xf32>
    %cst_156 = arith.constant 0.000000e+00 : f32
    %458 = vector.shape_cast %35 : vector<1x256xi1> to vector<1x256xi1>
    %459 = vector.broadcast %458 : vector<1x256xi1> to vector<8x256xi1>
    %460 = vector.broadcast %cst_156 : f32 to vector<8x256xf32>
    %461 = arith.select %459, %457, %460 : vector<8x256xi1>, vector<8x256xf32>
    %c200_i32_157 = arith.constant 200 : i32
    %462 = tpu.dynamic_rotate %356 by %c200_i32_157 dim 1 : vector<8x256xf32>, i32 -> vector<8x256xf32>
    %cst_158 = arith.constant 0.000000e+00 : f32
    %463 = vector.shape_cast %36 : vector<1x256xi1> to vector<1x256xi1>
    %464 = vector.broadcast %463 : vector<1x256xi1> to vector<8x256xi1>
    %465 = vector.broadcast %cst_158 : f32 to vector<8x256xf32>
    %466 = arith.select %464, %462, %465 : vector<8x256xi1>, vector<8x256xf32>
    %c199_i32_159 = arith.constant 199 : i32
    %467 = tpu.dynamic_rotate %356 by %c199_i32_159 dim 1 : vector<8x256xf32>, i32 -> vector<8x256xf32>
    %cst_160 = arith.constant 0.000000e+00 : f32
    %468 = vector.shape_cast %38 : vector<1x256xi1> to vector<1x256xi1>
    %469 = vector.broadcast %468 : vector<1x256xi1> to vector<8x256xi1>
    %470 = vector.broadcast %cst_160 : f32 to vector<8x256xf32>
    %471 = arith.select %469, %467, %470 : vector<8x256xi1>, vector<8x256xf32>
    %c193_i32_161 = arith.constant 193 : i32
    %472 = tpu.dynamic_rotate %356 by %c193_i32_161 dim 1 : vector<8x256xf32>, i32 -> vector<8x256xf32>
    %cst_162 = arith.constant 0.000000e+00 : f32
    %473 = vector.shape_cast %39 : vector<1x256xi1> to vector<1x256xi1>
    %474 = vector.broadcast %473 : vector<1x256xi1> to vector<8x256xi1>
    %475 = vector.broadcast %cst_162 : f32 to vector<8x256xf32>
    %476 = arith.select %474, %472, %475 : vector<8x256xi1>, vector<8x256xf32>
    %c192_i32_163 = arith.constant 192 : i32
    %477 = tpu.dynamic_rotate %356 by %c192_i32_163 dim 1 : vector<8x256xf32>, i32 -> vector<8x256xf32>
    %cst_164 = arith.constant 0.000000e+00 : f32
    %478 = vector.shape_cast %9 : vector<1x256xi1> to vector<1x256xi1>
    %479 = vector.broadcast %478 : vector<1x256xi1> to vector<8x256xi1>
    %480 = vector.broadcast %cst_164 : f32 to vector<8x256xf32>
    %481 = arith.select %479, %477, %480 : vector<8x256xi1>, vector<8x256xf32>
    %c191_i32_165 = arith.constant 191 : i32
    %482 = tpu.dynamic_rotate %356 by %c191_i32_165 dim 1 : vector<8x256xf32>, i32 -> vector<8x256xf32>
    %cst_166 = arith.constant 0.000000e+00 : f32
    %483 = vector.shape_cast %40 : vector<1x256xi1> to vector<1x256xi1>
    %484 = vector.broadcast %483 : vector<1x256xi1> to vector<8x256xi1>
    %485 = vector.broadcast %cst_166 : f32 to vector<8x256xf32>
    %486 = arith.select %484, %482, %485 : vector<8x256xi1>, vector<8x256xf32>
    %c185_i32_167 = arith.constant 185 : i32
    %487 = tpu.dynamic_rotate %356 by %c185_i32_167 dim 1 : vector<8x256xf32>, i32 -> vector<8x256xf32>
    %cst_168 = arith.constant 0.000000e+00 : f32
    %488 = vector.shape_cast %42 : vector<1x256xi1> to vector<1x256xi1>
    %489 = vector.broadcast %488 : vector<1x256xi1> to vector<8x256xi1>
    %490 = vector.broadcast %cst_168 : f32 to vector<8x256xf32>
    %491 = arith.select %489, %487, %490 : vector<8x256xi1>, vector<8x256xf32>
    %c184_i32_169 = arith.constant 184 : i32
    %492 = tpu.dynamic_rotate %356 by %c184_i32_169 dim 1 : vector<8x256xf32>, i32 -> vector<8x256xf32>
    %cst_170 = arith.constant 0.000000e+00 : f32
    %493 = vector.shape_cast %43 : vector<1x256xi1> to vector<1x256xi1>
    %494 = vector.broadcast %493 : vector<1x256xi1> to vector<8x256xi1>
    %495 = vector.broadcast %cst_170 : f32 to vector<8x256xf32>
    %496 = arith.select %494, %492, %495 : vector<8x256xi1>, vector<8x256xf32>
    %c183_i32_171 = arith.constant 183 : i32
    %497 = tpu.dynamic_rotate %356 by %c183_i32_171 dim 1 : vector<8x256xf32>, i32 -> vector<8x256xf32>
    %cst_172 = arith.constant 0.000000e+00 : f32
    %498 = vector.shape_cast %45 : vector<1x256xi1> to vector<1x256xi1>
    %499 = vector.broadcast %498 : vector<1x256xi1> to vector<8x256xi1>
    %500 = vector.broadcast %cst_172 : f32 to vector<8x256xf32>
    %501 = arith.select %499, %497, %500 : vector<8x256xi1>, vector<8x256xf32>
    %502 = tpu.concatenate %461, %466, %471, %476, %481, %486, %491, %496, %501 in 0 : vector<8x256xf32>, vector<8x256xf32>, vector<8x256xf32>, vector<8x256xf32>, vector<8x256xf32>, vector<8x256xf32>, vector<8x256xf32>, vector<8x256xf32>, vector<8x256xf32> -> vector<72x256xf32>
    %503 = arith.truncf %502 : vector<72x256xf32> to vector<72x256xbf16>
    %504 = vector.extract_strided_slice %358 {offsets = [2, 0, 0], sizes = [1, 8, 72], strides = [1, 1, 1]} : vector<3x8x72xbf16> to vector<1x8x72xbf16>
    %505 = vector.shape_cast %504 : vector<1x8x72xbf16> to vector<8x72xbf16>
    %cst_173 = arith.constant dense<0.000000e+00> : vector<8x256xf32>
    %506 = tpu.matmul %505, %503, %cst_173 {dimension_numbers = #tpu.dot_dimension_numbers<[1], [0], [0], [1], [0, 0, 1, 1], [], []>} : vector<8x72xbf16>, vector<72x256xbf16>, vector<8x256xf32> -> vector<8x256xf32>
    %507 = arith.addf %456, %506 : vector<8x256xf32>
    %508 = vector.broadcast %360 : vector<8x1xf32> to vector<8x256xf32>
    %509 = arith.addf %507, %508 : vector<8x256xf32>
    %cst_174 = arith.constant 0.000000e+00 : f32
    %510 = vector.broadcast %cst_174 : f32 to vector<8x256xf32>
    %511 = arith.maximumf %509, %510 : vector<8x256xf32>
    %c2_175 = arith.constant 2 : index
    %c0_176 = arith.constant 0 : index
    %c0_177 = arith.constant 0 : index
    %c0_178 = arith.constant 0 : index
    %512 = vector.load %arg4[%c2_175, %c0_176, %c0_177, %c0_178] : memref<5x3x8x72xbf16, #tpu.memory_space<vmem>>, vector<1x3x8x72xbf16>
    %513 = vector.shape_cast %512 : vector<1x3x8x72xbf16> to vector<3x8x72xbf16>
    %c3 = arith.constant 3 : index
    %c0_179 = arith.constant 0 : index
    %c0_180 = arith.constant 0 : index
    %514 = vector.load %arg5[%c3, %c0_179, %c0_180] : memref<6x8x1xf32, #tpu.memory_space<vmem>>, vector<1x8x1xf32>
    %515 = vector.shape_cast %514 : vector<1x8x1xf32> to vector<8x1xf32>
    %c73_i32_181 = arith.constant 73 : i32
    %516 = tpu.dynamic_rotate %511 by %c73_i32_181 dim 1 : vector<8x256xf32>, i32 -> vector<8x256xf32>
    %cst_182 = arith.constant 0.000000e+00 : f32
    %517 = vector.shape_cast %19 : vector<1x256xi1> to vector<1x256xi1>
    %518 = vector.broadcast %517 : vector<1x256xi1> to vector<8x256xi1>
    %519 = vector.broadcast %cst_182 : f32 to vector<8x256xf32>
    %520 = arith.select %518, %516, %519 : vector<8x256xi1>, vector<8x256xf32>
    %c72_i32_183 = arith.constant 72 : i32
    %521 = tpu.dynamic_rotate %511 by %c72_i32_183 dim 1 : vector<8x256xf32>, i32 -> vector<8x256xf32>
    %cst_184 = arith.constant 0.000000e+00 : f32
    %522 = vector.shape_cast %20 : vector<1x256xi1> to vector<1x256xi1>
    %523 = vector.broadcast %522 : vector<1x256xi1> to vector<8x256xi1>
    %524 = vector.broadcast %cst_184 : f32 to vector<8x256xf32>
    %525 = arith.select %523, %521, %524 : vector<8x256xi1>, vector<8x256xf32>
    %c71_i32_185 = arith.constant 71 : i32
    %526 = tpu.dynamic_rotate %511 by %c71_i32_185 dim 1 : vector<8x256xf32>, i32 -> vector<8x256xf32>
    %cst_186 = arith.constant 0.000000e+00 : f32
    %527 = vector.shape_cast %22 : vector<1x256xi1> to vector<1x256xi1>
    %528 = vector.broadcast %527 : vector<1x256xi1> to vector<8x256xi1>
    %529 = vector.broadcast %cst_186 : f32 to vector<8x256xf32>
    %530 = arith.select %528, %526, %529 : vector<8x256xi1>, vector<8x256xf32>
    %c65_i32_187 = arith.constant 65 : i32
    %531 = tpu.dynamic_rotate %511 by %c65_i32_187 dim 1 : vector<8x256xf32>, i32 -> vector<8x256xf32>
    %cst_188 = arith.constant 0.000000e+00 : f32
    %532 = vector.shape_cast %23 : vector<1x256xi1> to vector<1x256xi1>
    %533 = vector.broadcast %532 : vector<1x256xi1> to vector<8x256xi1>
    %534 = vector.broadcast %cst_188 : f32 to vector<8x256xf32>
    %535 = arith.select %533, %531, %534 : vector<8x256xi1>, vector<8x256xf32>
    %c64_i32_189 = arith.constant 64 : i32
    %536 = tpu.dynamic_rotate %511 by %c64_i32_189 dim 1 : vector<8x256xf32>, i32 -> vector<8x256xf32>
    %cst_190 = arith.constant 0.000000e+00 : f32
    %537 = vector.shape_cast %7 : vector<1x256xi1> to vector<1x256xi1>
    %538 = vector.broadcast %537 : vector<1x256xi1> to vector<8x256xi1>
    %539 = vector.broadcast %cst_190 : f32 to vector<8x256xf32>
    %540 = arith.select %538, %536, %539 : vector<8x256xi1>, vector<8x256xf32>
    %c63_i32_191 = arith.constant 63 : i32
    %541 = tpu.dynamic_rotate %511 by %c63_i32_191 dim 1 : vector<8x256xf32>, i32 -> vector<8x256xf32>
    %cst_192 = arith.constant 0.000000e+00 : f32
    %542 = vector.shape_cast %24 : vector<1x256xi1> to vector<1x256xi1>
    %543 = vector.broadcast %542 : vector<1x256xi1> to vector<8x256xi1>
    %544 = vector.broadcast %cst_192 : f32 to vector<8x256xf32>
    %545 = arith.select %543, %541, %544 : vector<8x256xi1>, vector<8x256xf32>
    %c57_i32_193 = arith.constant 57 : i32
    %546 = tpu.dynamic_rotate %511 by %c57_i32_193 dim 1 : vector<8x256xf32>, i32 -> vector<8x256xf32>
    %cst_194 = arith.constant 0.000000e+00 : f32
    %547 = vector.shape_cast %26 : vector<1x256xi1> to vector<1x256xi1>
    %548 = vector.broadcast %547 : vector<1x256xi1> to vector<8x256xi1>
    %549 = vector.broadcast %cst_194 : f32 to vector<8x256xf32>
    %550 = arith.select %548, %546, %549 : vector<8x256xi1>, vector<8x256xf32>
    %c56_i32_195 = arith.constant 56 : i32
    %551 = tpu.dynamic_rotate %511 by %c56_i32_195 dim 1 : vector<8x256xf32>, i32 -> vector<8x256xf32>
    %cst_196 = arith.constant 0.000000e+00 : f32
    %552 = vector.shape_cast %27 : vector<1x256xi1> to vector<1x256xi1>
    %553 = vector.broadcast %552 : vector<1x256xi1> to vector<8x256xi1>
    %554 = vector.broadcast %cst_196 : f32 to vector<8x256xf32>
    %555 = arith.select %553, %551, %554 : vector<8x256xi1>, vector<8x256xf32>
    %c55_i32_197 = arith.constant 55 : i32
    %556 = tpu.dynamic_rotate %511 by %c55_i32_197 dim 1 : vector<8x256xf32>, i32 -> vector<8x256xf32>
    %cst_198 = arith.constant 0.000000e+00 : f32
    %557 = vector.shape_cast %29 : vector<1x256xi1> to vector<1x256xi1>
    %558 = vector.broadcast %557 : vector<1x256xi1> to vector<8x256xi1>
    %559 = vector.broadcast %cst_198 : f32 to vector<8x256xf32>
    %560 = arith.select %558, %556, %559 : vector<8x256xi1>, vector<8x256xf32>
    %561 = tpu.concatenate %520, %525, %530, %535, %540, %545, %550, %555, %560 in 0 : vector<8x256xf32>, vector<8x256xf32>, vector<8x256xf32>, vector<8x256xf32>, vector<8x256xf32>, vector<8x256xf32>, vector<8x256xf32>, vector<8x256xf32>, vector<8x256xf32> -> vector<72x256xf32>
    %562 = arith.truncf %561 : vector<72x256xf32> to vector<72x256xbf16>
    %563 = vector.extract_strided_slice %513 {offsets = [0, 0, 0], sizes = [1, 8, 72], strides = [1, 1, 1]} : vector<3x8x72xbf16> to vector<1x8x72xbf16>
    %564 = vector.shape_cast %563 : vector<1x8x72xbf16> to vector<8x72xbf16>
    %cst_199 = arith.constant dense<0.000000e+00> : vector<8x256xf32>
    %565 = tpu.matmul %564, %562, %cst_199 {dimension_numbers = #tpu.dot_dimension_numbers<[1], [0], [0], [1], [0, 0, 1, 1], [], []>} : vector<8x72xbf16>, vector<72x256xbf16>, vector<8x256xf32> -> vector<8x256xf32>
    %c9_i32_200 = arith.constant 9 : i32
    %566 = tpu.dynamic_rotate %511 by %c9_i32_200 dim 1 : vector<8x256xf32>, i32 -> vector<8x256xf32>
    %cst_201 = arith.constant 0.000000e+00 : f32
    %567 = vector.shape_cast %30 : vector<1x256xi1> to vector<1x256xi1>
    %568 = vector.broadcast %567 : vector<1x256xi1> to vector<8x256xi1>
    %569 = vector.broadcast %cst_201 : f32 to vector<8x256xf32>
    %570 = arith.select %568, %566, %569 : vector<8x256xi1>, vector<8x256xf32>
    %c8_i32_202 = arith.constant 8 : i32
    %571 = tpu.dynamic_rotate %511 by %c8_i32_202 dim 1 : vector<8x256xf32>, i32 -> vector<8x256xf32>
    %cst_203 = arith.constant 0.000000e+00 : f32
    %572 = vector.shape_cast %11 : vector<1x256xi1> to vector<1x256xi1>
    %573 = vector.broadcast %572 : vector<1x256xi1> to vector<8x256xi1>
    %574 = vector.broadcast %cst_203 : f32 to vector<8x256xf32>
    %575 = arith.select %573, %571, %574 : vector<8x256xi1>, vector<8x256xf32>
    %c7_i32_204 = arith.constant 7 : i32
    %576 = tpu.dynamic_rotate %511 by %c7_i32_204 dim 1 : vector<8x256xf32>, i32 -> vector<8x256xf32>
    %cst_205 = arith.constant 0.000000e+00 : f32
    %577 = vector.shape_cast %31 : vector<1x256xi1> to vector<1x256xi1>
    %578 = vector.broadcast %577 : vector<1x256xi1> to vector<8x256xi1>
    %579 = vector.broadcast %cst_205 : f32 to vector<8x256xf32>
    %580 = arith.select %578, %576, %579 : vector<8x256xi1>, vector<8x256xf32>
    %c1_i32_206 = arith.constant 1 : i32
    %581 = tpu.dynamic_rotate %511 by %c1_i32_206 dim 1 : vector<8x256xf32>, i32 -> vector<8x256xf32>
    %cst_207 = arith.constant 0.000000e+00 : f32
    %582 = vector.shape_cast %15 : vector<1x256xi1> to vector<1x256xi1>
    %583 = vector.broadcast %582 : vector<1x256xi1> to vector<8x256xi1>
    %584 = vector.broadcast %cst_207 : f32 to vector<8x256xf32>
    %585 = arith.select %583, %581, %584 : vector<8x256xi1>, vector<8x256xf32>
    %c255_i32_208 = arith.constant 255 : i32
    %586 = tpu.dynamic_rotate %511 by %c255_i32_208 dim 1 : vector<8x256xf32>, i32 -> vector<8x256xf32>
    %cst_209 = arith.constant 0.000000e+00 : f32
    %587 = vector.shape_cast %17 : vector<1x256xi1> to vector<1x256xi1>
    %588 = vector.broadcast %587 : vector<1x256xi1> to vector<8x256xi1>
    %589 = vector.broadcast %cst_209 : f32 to vector<8x256xf32>
    %590 = arith.select %588, %586, %589 : vector<8x256xi1>, vector<8x256xf32>
    %c249_i32_210 = arith.constant 249 : i32
    %591 = tpu.dynamic_rotate %511 by %c249_i32_210 dim 1 : vector<8x256xf32>, i32 -> vector<8x256xf32>
    %cst_211 = arith.constant 0.000000e+00 : f32
    %592 = vector.shape_cast %32 : vector<1x256xi1> to vector<1x256xi1>
    %593 = vector.broadcast %592 : vector<1x256xi1> to vector<8x256xi1>
    %594 = vector.broadcast %cst_211 : f32 to vector<8x256xf32>
    %595 = arith.select %593, %591, %594 : vector<8x256xi1>, vector<8x256xf32>
    %c248_i32_212 = arith.constant 248 : i32
    %596 = tpu.dynamic_rotate %511 by %c248_i32_212 dim 1 : vector<8x256xf32>, i32 -> vector<8x256xf32>
    %cst_213 = arith.constant 0.000000e+00 : f32
    %597 = vector.shape_cast %13 : vector<1x256xi1> to vector<1x256xi1>
    %598 = vector.broadcast %597 : vector<1x256xi1> to vector<8x256xi1>
    %599 = vector.broadcast %cst_213 : f32 to vector<8x256xf32>
    %600 = arith.select %598, %596, %599 : vector<8x256xi1>, vector<8x256xf32>
    %c247_i32_214 = arith.constant 247 : i32
    %601 = tpu.dynamic_rotate %511 by %c247_i32_214 dim 1 : vector<8x256xf32>, i32 -> vector<8x256xf32>
    %cst_215 = arith.constant 0.000000e+00 : f32
    %602 = vector.shape_cast %33 : vector<1x256xi1> to vector<1x256xi1>
    %603 = vector.broadcast %602 : vector<1x256xi1> to vector<8x256xi1>
    %604 = vector.broadcast %cst_215 : f32 to vector<8x256xf32>
    %605 = arith.select %603, %601, %604 : vector<8x256xi1>, vector<8x256xf32>
    %606 = tpu.concatenate %570, %575, %580, %585, %511, %590, %595, %600, %605 in 0 : vector<8x256xf32>, vector<8x256xf32>, vector<8x256xf32>, vector<8x256xf32>, vector<8x256xf32>, vector<8x256xf32>, vector<8x256xf32>, vector<8x256xf32>, vector<8x256xf32> -> vector<72x256xf32>
    %607 = arith.truncf %606 : vector<72x256xf32> to vector<72x256xbf16>
    %608 = vector.extract_strided_slice %513 {offsets = [1, 0, 0], sizes = [1, 8, 72], strides = [1, 1, 1]} : vector<3x8x72xbf16> to vector<1x8x72xbf16>
    %609 = vector.shape_cast %608 : vector<1x8x72xbf16> to vector<8x72xbf16>
    %cst_216 = arith.constant dense<0.000000e+00> : vector<8x256xf32>
    %610 = tpu.matmul %609, %607, %cst_216 {dimension_numbers = #tpu.dot_dimension_numbers<[1], [0], [0], [1], [0, 0, 1, 1], [], []>} : vector<8x72xbf16>, vector<72x256xbf16>, vector<8x256xf32> -> vector<8x256xf32>
    %611 = arith.addf %565, %610 : vector<8x256xf32>
    %c201_i32_217 = arith.constant 201 : i32
    %612 = tpu.dynamic_rotate %511 by %c201_i32_217 dim 1 : vector<8x256xf32>, i32 -> vector<8x256xf32>
    %cst_218 = arith.constant 0.000000e+00 : f32
    %613 = vector.shape_cast %35 : vector<1x256xi1> to vector<1x256xi1>
    %614 = vector.broadcast %613 : vector<1x256xi1> to vector<8x256xi1>
    %615 = vector.broadcast %cst_218 : f32 to vector<8x256xf32>
    %616 = arith.select %614, %612, %615 : vector<8x256xi1>, vector<8x256xf32>
    %c200_i32_219 = arith.constant 200 : i32
    %617 = tpu.dynamic_rotate %511 by %c200_i32_219 dim 1 : vector<8x256xf32>, i32 -> vector<8x256xf32>
    %cst_220 = arith.constant 0.000000e+00 : f32
    %618 = vector.shape_cast %36 : vector<1x256xi1> to vector<1x256xi1>
    %619 = vector.broadcast %618 : vector<1x256xi1> to vector<8x256xi1>
    %620 = vector.broadcast %cst_220 : f32 to vector<8x256xf32>
    %621 = arith.select %619, %617, %620 : vector<8x256xi1>, vector<8x256xf32>
    %c199_i32_221 = arith.constant 199 : i32
    %622 = tpu.dynamic_rotate %511 by %c199_i32_221 dim 1 : vector<8x256xf32>, i32 -> vector<8x256xf32>
    %cst_222 = arith.constant 0.000000e+00 : f32
    %623 = vector.shape_cast %38 : vector<1x256xi1> to vector<1x256xi1>
    %624 = vector.broadcast %623 : vector<1x256xi1> to vector<8x256xi1>
    %625 = vector.broadcast %cst_222 : f32 to vector<8x256xf32>
    %626 = arith.select %624, %622, %625 : vector<8x256xi1>, vector<8x256xf32>
    %c193_i32_223 = arith.constant 193 : i32
    %627 = tpu.dynamic_rotate %511 by %c193_i32_223 dim 1 : vector<8x256xf32>, i32 -> vector<8x256xf32>
    %cst_224 = arith.constant 0.000000e+00 : f32
    %628 = vector.shape_cast %39 : vector<1x256xi1> to vector<1x256xi1>
    %629 = vector.broadcast %628 : vector<1x256xi1> to vector<8x256xi1>
    %630 = vector.broadcast %cst_224 : f32 to vector<8x256xf32>
    %631 = arith.select %629, %627, %630 : vector<8x256xi1>, vector<8x256xf32>
    %c192_i32_225 = arith.constant 192 : i32
    %632 = tpu.dynamic_rotate %511 by %c192_i32_225 dim 1 : vector<8x256xf32>, i32 -> vector<8x256xf32>
    %cst_226 = arith.constant 0.000000e+00 : f32
    %633 = vector.shape_cast %9 : vector<1x256xi1> to vector<1x256xi1>
    %634 = vector.broadcast %633 : vector<1x256xi1> to vector<8x256xi1>
    %635 = vector.broadcast %cst_226 : f32 to vector<8x256xf32>
    %636 = arith.select %634, %632, %635 : vector<8x256xi1>, vector<8x256xf32>
    %c191_i32_227 = arith.constant 191 : i32
    %637 = tpu.dynamic_rotate %511 by %c191_i32_227 dim 1 : vector<8x256xf32>, i32 -> vector<8x256xf32>
    %cst_228 = arith.constant 0.000000e+00 : f32
    %638 = vector.shape_cast %40 : vector<1x256xi1> to vector<1x256xi1>
    %639 = vector.broadcast %638 : vector<1x256xi1> to vector<8x256xi1>
    %640 = vector.broadcast %cst_228 : f32 to vector<8x256xf32>
    %641 = arith.select %639, %637, %640 : vector<8x256xi1>, vector<8x256xf32>
    %c185_i32_229 = arith.constant 185 : i32
    %642 = tpu.dynamic_rotate %511 by %c185_i32_229 dim 1 : vector<8x256xf32>, i32 -> vector<8x256xf32>
    %cst_230 = arith.constant 0.000000e+00 : f32
    %643 = vector.shape_cast %42 : vector<1x256xi1> to vector<1x256xi1>
    %644 = vector.broadcast %643 : vector<1x256xi1> to vector<8x256xi1>
    %645 = vector.broadcast %cst_230 : f32 to vector<8x256xf32>
    %646 = arith.select %644, %642, %645 : vector<8x256xi1>, vector<8x256xf32>
    %c184_i32_231 = arith.constant 184 : i32
    %647 = tpu.dynamic_rotate %511 by %c184_i32_231 dim 1 : vector<8x256xf32>, i32 -> vector<8x256xf32>
    %cst_232 = arith.constant 0.000000e+00 : f32
    %648 = vector.shape_cast %43 : vector<1x256xi1> to vector<1x256xi1>
    %649 = vector.broadcast %648 : vector<1x256xi1> to vector<8x256xi1>
    %650 = vector.broadcast %cst_232 : f32 to vector<8x256xf32>
    %651 = arith.select %649, %647, %650 : vector<8x256xi1>, vector<8x256xf32>
    %c183_i32_233 = arith.constant 183 : i32
    %652 = tpu.dynamic_rotate %511 by %c183_i32_233 dim 1 : vector<8x256xf32>, i32 -> vector<8x256xf32>
    %cst_234 = arith.constant 0.000000e+00 : f32
    %653 = vector.shape_cast %45 : vector<1x256xi1> to vector<1x256xi1>
    %654 = vector.broadcast %653 : vector<1x256xi1> to vector<8x256xi1>
    %655 = vector.broadcast %cst_234 : f32 to vector<8x256xf32>
    %656 = arith.select %654, %652, %655 : vector<8x256xi1>, vector<8x256xf32>
    %657 = tpu.concatenate %616, %621, %626, %631, %636, %641, %646, %651, %656 in 0 : vector<8x256xf32>, vector<8x256xf32>, vector<8x256xf32>, vector<8x256xf32>, vector<8x256xf32>, vector<8x256xf32>, vector<8x256xf32>, vector<8x256xf32>, vector<8x256xf32> -> vector<72x256xf32>
    %658 = arith.truncf %657 : vector<72x256xf32> to vector<72x256xbf16>
    %659 = vector.extract_strided_slice %513 {offsets = [2, 0, 0], sizes = [1, 8, 72], strides = [1, 1, 1]} : vector<3x8x72xbf16> to vector<1x8x72xbf16>
    %660 = vector.shape_cast %659 : vector<1x8x72xbf16> to vector<8x72xbf16>
    %cst_235 = arith.constant dense<0.000000e+00> : vector<8x256xf32>
    %661 = tpu.matmul %660, %658, %cst_235 {dimension_numbers = #tpu.dot_dimension_numbers<[1], [0], [0], [1], [0, 0, 1, 1], [], []>} : vector<8x72xbf16>, vector<72x256xbf16>, vector<8x256xf32> -> vector<8x256xf32>
    %662 = arith.addf %611, %661 : vector<8x256xf32>
    %663 = vector.broadcast %515 : vector<8x1xf32> to vector<8x256xf32>
    %664 = arith.addf %662, %663 : vector<8x256xf32>
    %665 = arith.addf %356, %664 : vector<8x256xf32>
    %cst_236 = arith.constant 5.000000e-01 : f32
    %666 = vector.broadcast %cst_236 : f32 to vector<8x256xf32>
    %667 = arith.mulf %665, %666 : vector<8x256xf32>
    %c3_237 = arith.constant 3 : index
    %c0_238 = arith.constant 0 : index
    %c0_239 = arith.constant 0 : index
    %c0_240 = arith.constant 0 : index
    %668 = vector.load %arg4[%c3_237, %c0_238, %c0_239, %c0_240] : memref<5x3x8x72xbf16, #tpu.memory_space<vmem>>, vector<1x3x8x72xbf16>
    %669 = vector.shape_cast %668 : vector<1x3x8x72xbf16> to vector<3x8x72xbf16>
    %c4 = arith.constant 4 : index
    %c0_241 = arith.constant 0 : index
    %c0_242 = arith.constant 0 : index
    %670 = vector.load %arg5[%c4, %c0_241, %c0_242] : memref<6x8x1xf32, #tpu.memory_space<vmem>>, vector<1x8x1xf32>
    %671 = vector.shape_cast %670 : vector<1x8x1xf32> to vector<8x1xf32>
    %c73_i32_243 = arith.constant 73 : i32
    %672 = tpu.dynamic_rotate %667 by %c73_i32_243 dim 1 : vector<8x256xf32>, i32 -> vector<8x256xf32>
    %cst_244 = arith.constant 0.000000e+00 : f32
    %673 = vector.shape_cast %19 : vector<1x256xi1> to vector<1x256xi1>
    %674 = vector.broadcast %673 : vector<1x256xi1> to vector<8x256xi1>
    %675 = vector.broadcast %cst_244 : f32 to vector<8x256xf32>
    %676 = arith.select %674, %672, %675 : vector<8x256xi1>, vector<8x256xf32>
    %c72_i32_245 = arith.constant 72 : i32
    %677 = tpu.dynamic_rotate %667 by %c72_i32_245 dim 1 : vector<8x256xf32>, i32 -> vector<8x256xf32>
    %cst_246 = arith.constant 0.000000e+00 : f32
    %678 = vector.shape_cast %20 : vector<1x256xi1> to vector<1x256xi1>
    %679 = vector.broadcast %678 : vector<1x256xi1> to vector<8x256xi1>
    %680 = vector.broadcast %cst_246 : f32 to vector<8x256xf32>
    %681 = arith.select %679, %677, %680 : vector<8x256xi1>, vector<8x256xf32>
    %c71_i32_247 = arith.constant 71 : i32
    %682 = tpu.dynamic_rotate %667 by %c71_i32_247 dim 1 : vector<8x256xf32>, i32 -> vector<8x256xf32>
    %cst_248 = arith.constant 0.000000e+00 : f32
    %683 = vector.shape_cast %22 : vector<1x256xi1> to vector<1x256xi1>
    %684 = vector.broadcast %683 : vector<1x256xi1> to vector<8x256xi1>
    %685 = vector.broadcast %cst_248 : f32 to vector<8x256xf32>
    %686 = arith.select %684, %682, %685 : vector<8x256xi1>, vector<8x256xf32>
    %c65_i32_249 = arith.constant 65 : i32
    %687 = tpu.dynamic_rotate %667 by %c65_i32_249 dim 1 : vector<8x256xf32>, i32 -> vector<8x256xf32>
    %cst_250 = arith.constant 0.000000e+00 : f32
    %688 = vector.shape_cast %23 : vector<1x256xi1> to vector<1x256xi1>
    %689 = vector.broadcast %688 : vector<1x256xi1> to vector<8x256xi1>
    %690 = vector.broadcast %cst_250 : f32 to vector<8x256xf32>
    %691 = arith.select %689, %687, %690 : vector<8x256xi1>, vector<8x256xf32>
    %c64_i32_251 = arith.constant 64 : i32
    %692 = tpu.dynamic_rotate %667 by %c64_i32_251 dim 1 : vector<8x256xf32>, i32 -> vector<8x256xf32>
    %cst_252 = arith.constant 0.000000e+00 : f32
    %693 = vector.shape_cast %7 : vector<1x256xi1> to vector<1x256xi1>
    %694 = vector.broadcast %693 : vector<1x256xi1> to vector<8x256xi1>
    %695 = vector.broadcast %cst_252 : f32 to vector<8x256xf32>
    %696 = arith.select %694, %692, %695 : vector<8x256xi1>, vector<8x256xf32>
    %c63_i32_253 = arith.constant 63 : i32
    %697 = tpu.dynamic_rotate %667 by %c63_i32_253 dim 1 : vector<8x256xf32>, i32 -> vector<8x256xf32>
    %cst_254 = arith.constant 0.000000e+00 : f32
    %698 = vector.shape_cast %24 : vector<1x256xi1> to vector<1x256xi1>
    %699 = vector.broadcast %698 : vector<1x256xi1> to vector<8x256xi1>
    %700 = vector.broadcast %cst_254 : f32 to vector<8x256xf32>
    %701 = arith.select %699, %697, %700 : vector<8x256xi1>, vector<8x256xf32>
    %c57_i32_255 = arith.constant 57 : i32
    %702 = tpu.dynamic_rotate %667 by %c57_i32_255 dim 1 : vector<8x256xf32>, i32 -> vector<8x256xf32>
    %cst_256 = arith.constant 0.000000e+00 : f32
    %703 = vector.shape_cast %26 : vector<1x256xi1> to vector<1x256xi1>
    %704 = vector.broadcast %703 : vector<1x256xi1> to vector<8x256xi1>
    %705 = vector.broadcast %cst_256 : f32 to vector<8x256xf32>
    %706 = arith.select %704, %702, %705 : vector<8x256xi1>, vector<8x256xf32>
    %c56_i32_257 = arith.constant 56 : i32
    %707 = tpu.dynamic_rotate %667 by %c56_i32_257 dim 1 : vector<8x256xf32>, i32 -> vector<8x256xf32>
    %cst_258 = arith.constant 0.000000e+00 : f32
    %708 = vector.shape_cast %27 : vector<1x256xi1> to vector<1x256xi1>
    %709 = vector.broadcast %708 : vector<1x256xi1> to vector<8x256xi1>
    %710 = vector.broadcast %cst_258 : f32 to vector<8x256xf32>
    %711 = arith.select %709, %707, %710 : vector<8x256xi1>, vector<8x256xf32>
    %c55_i32_259 = arith.constant 55 : i32
    %712 = tpu.dynamic_rotate %667 by %c55_i32_259 dim 1 : vector<8x256xf32>, i32 -> vector<8x256xf32>
    %cst_260 = arith.constant 0.000000e+00 : f32
    %713 = vector.shape_cast %29 : vector<1x256xi1> to vector<1x256xi1>
    %714 = vector.broadcast %713 : vector<1x256xi1> to vector<8x256xi1>
    %715 = vector.broadcast %cst_260 : f32 to vector<8x256xf32>
    %716 = arith.select %714, %712, %715 : vector<8x256xi1>, vector<8x256xf32>
    %717 = tpu.concatenate %676, %681, %686, %691, %696, %701, %706, %711, %716 in 0 : vector<8x256xf32>, vector<8x256xf32>, vector<8x256xf32>, vector<8x256xf32>, vector<8x256xf32>, vector<8x256xf32>, vector<8x256xf32>, vector<8x256xf32>, vector<8x256xf32> -> vector<72x256xf32>
    %718 = arith.truncf %717 : vector<72x256xf32> to vector<72x256xbf16>
    %719 = vector.extract_strided_slice %669 {offsets = [0, 0, 0], sizes = [1, 8, 72], strides = [1, 1, 1]} : vector<3x8x72xbf16> to vector<1x8x72xbf16>
    %720 = vector.shape_cast %719 : vector<1x8x72xbf16> to vector<8x72xbf16>
    %cst_261 = arith.constant dense<0.000000e+00> : vector<8x256xf32>
    %721 = tpu.matmul %720, %718, %cst_261 {dimension_numbers = #tpu.dot_dimension_numbers<[1], [0], [0], [1], [0, 0, 1, 1], [], []>} : vector<8x72xbf16>, vector<72x256xbf16>, vector<8x256xf32> -> vector<8x256xf32>
    %c9_i32_262 = arith.constant 9 : i32
    %722 = tpu.dynamic_rotate %667 by %c9_i32_262 dim 1 : vector<8x256xf32>, i32 -> vector<8x256xf32>
    %cst_263 = arith.constant 0.000000e+00 : f32
    %723 = vector.shape_cast %30 : vector<1x256xi1> to vector<1x256xi1>
    %724 = vector.broadcast %723 : vector<1x256xi1> to vector<8x256xi1>
    %725 = vector.broadcast %cst_263 : f32 to vector<8x256xf32>
    %726 = arith.select %724, %722, %725 : vector<8x256xi1>, vector<8x256xf32>
    %c8_i32_264 = arith.constant 8 : i32
    %727 = tpu.dynamic_rotate %667 by %c8_i32_264 dim 1 : vector<8x256xf32>, i32 -> vector<8x256xf32>
    %cst_265 = arith.constant 0.000000e+00 : f32
    %728 = vector.shape_cast %11 : vector<1x256xi1> to vector<1x256xi1>
    %729 = vector.broadcast %728 : vector<1x256xi1> to vector<8x256xi1>
    %730 = vector.broadcast %cst_265 : f32 to vector<8x256xf32>
    %731 = arith.select %729, %727, %730 : vector<8x256xi1>, vector<8x256xf32>
    %c7_i32_266 = arith.constant 7 : i32
    %732 = tpu.dynamic_rotate %667 by %c7_i32_266 dim 1 : vector<8x256xf32>, i32 -> vector<8x256xf32>
    %cst_267 = arith.constant 0.000000e+00 : f32
    %733 = vector.shape_cast %31 : vector<1x256xi1> to vector<1x256xi1>
    %734 = vector.broadcast %733 : vector<1x256xi1> to vector<8x256xi1>
    %735 = vector.broadcast %cst_267 : f32 to vector<8x256xf32>
    %736 = arith.select %734, %732, %735 : vector<8x256xi1>, vector<8x256xf32>
    %c1_i32_268 = arith.constant 1 : i32
    %737 = tpu.dynamic_rotate %667 by %c1_i32_268 dim 1 : vector<8x256xf32>, i32 -> vector<8x256xf32>
    %cst_269 = arith.constant 0.000000e+00 : f32
    %738 = vector.shape_cast %15 : vector<1x256xi1> to vector<1x256xi1>
    %739 = vector.broadcast %738 : vector<1x256xi1> to vector<8x256xi1>
    %740 = vector.broadcast %cst_269 : f32 to vector<8x256xf32>
    %741 = arith.select %739, %737, %740 : vector<8x256xi1>, vector<8x256xf32>
    %c255_i32_270 = arith.constant 255 : i32
    %742 = tpu.dynamic_rotate %667 by %c255_i32_270 dim 1 : vector<8x256xf32>, i32 -> vector<8x256xf32>
    %cst_271 = arith.constant 0.000000e+00 : f32
    %743 = vector.shape_cast %17 : vector<1x256xi1> to vector<1x256xi1>
    %744 = vector.broadcast %743 : vector<1x256xi1> to vector<8x256xi1>
    %745 = vector.broadcast %cst_271 : f32 to vector<8x256xf32>
    %746 = arith.select %744, %742, %745 : vector<8x256xi1>, vector<8x256xf32>
    %c249_i32_272 = arith.constant 249 : i32
    %747 = tpu.dynamic_rotate %667 by %c249_i32_272 dim 1 : vector<8x256xf32>, i32 -> vector<8x256xf32>
    %cst_273 = arith.constant 0.000000e+00 : f32
    %748 = vector.shape_cast %32 : vector<1x256xi1> to vector<1x256xi1>
    %749 = vector.broadcast %748 : vector<1x256xi1> to vector<8x256xi1>
    %750 = vector.broadcast %cst_273 : f32 to vector<8x256xf32>
    %751 = arith.select %749, %747, %750 : vector<8x256xi1>, vector<8x256xf32>
    %c248_i32_274 = arith.constant 248 : i32
    %752 = tpu.dynamic_rotate %667 by %c248_i32_274 dim 1 : vector<8x256xf32>, i32 -> vector<8x256xf32>
    %cst_275 = arith.constant 0.000000e+00 : f32
    %753 = vector.shape_cast %13 : vector<1x256xi1> to vector<1x256xi1>
    %754 = vector.broadcast %753 : vector<1x256xi1> to vector<8x256xi1>
    %755 = vector.broadcast %cst_275 : f32 to vector<8x256xf32>
    %756 = arith.select %754, %752, %755 : vector<8x256xi1>, vector<8x256xf32>
    %c247_i32_276 = arith.constant 247 : i32
    %757 = tpu.dynamic_rotate %667 by %c247_i32_276 dim 1 : vector<8x256xf32>, i32 -> vector<8x256xf32>
    %cst_277 = arith.constant 0.000000e+00 : f32
    %758 = vector.shape_cast %33 : vector<1x256xi1> to vector<1x256xi1>
    %759 = vector.broadcast %758 : vector<1x256xi1> to vector<8x256xi1>
    %760 = vector.broadcast %cst_277 : f32 to vector<8x256xf32>
    %761 = arith.select %759, %757, %760 : vector<8x256xi1>, vector<8x256xf32>
    %762 = tpu.concatenate %726, %731, %736, %741, %667, %746, %751, %756, %761 in 0 : vector<8x256xf32>, vector<8x256xf32>, vector<8x256xf32>, vector<8x256xf32>, vector<8x256xf32>, vector<8x256xf32>, vector<8x256xf32>, vector<8x256xf32>, vector<8x256xf32> -> vector<72x256xf32>
    %763 = arith.truncf %762 : vector<72x256xf32> to vector<72x256xbf16>
    %764 = vector.extract_strided_slice %669 {offsets = [1, 0, 0], sizes = [1, 8, 72], strides = [1, 1, 1]} : vector<3x8x72xbf16> to vector<1x8x72xbf16>
    %765 = vector.shape_cast %764 : vector<1x8x72xbf16> to vector<8x72xbf16>
    %cst_278 = arith.constant dense<0.000000e+00> : vector<8x256xf32>
    %766 = tpu.matmul %765, %763, %cst_278 {dimension_numbers = #tpu.dot_dimension_numbers<[1], [0], [0], [1], [0, 0, 1, 1], [], []>} : vector<8x72xbf16>, vector<72x256xbf16>, vector<8x256xf32> -> vector<8x256xf32>
    %767 = arith.addf %721, %766 : vector<8x256xf32>
    %c201_i32_279 = arith.constant 201 : i32
    %768 = tpu.dynamic_rotate %667 by %c201_i32_279 dim 1 : vector<8x256xf32>, i32 -> vector<8x256xf32>
    %cst_280 = arith.constant 0.000000e+00 : f32
    %769 = vector.shape_cast %35 : vector<1x256xi1> to vector<1x256xi1>
    %770 = vector.broadcast %769 : vector<1x256xi1> to vector<8x256xi1>
    %771 = vector.broadcast %cst_280 : f32 to vector<8x256xf32>
    %772 = arith.select %770, %768, %771 : vector<8x256xi1>, vector<8x256xf32>
    %c200_i32_281 = arith.constant 200 : i32
    %773 = tpu.dynamic_rotate %667 by %c200_i32_281 dim 1 : vector<8x256xf32>, i32 -> vector<8x256xf32>
    %cst_282 = arith.constant 0.000000e+00 : f32
    %774 = vector.shape_cast %36 : vector<1x256xi1> to vector<1x256xi1>
    %775 = vector.broadcast %774 : vector<1x256xi1> to vector<8x256xi1>
    %776 = vector.broadcast %cst_282 : f32 to vector<8x256xf32>
    %777 = arith.select %775, %773, %776 : vector<8x256xi1>, vector<8x256xf32>
    %c199_i32_283 = arith.constant 199 : i32
    %778 = tpu.dynamic_rotate %667 by %c199_i32_283 dim 1 : vector<8x256xf32>, i32 -> vector<8x256xf32>
    %cst_284 = arith.constant 0.000000e+00 : f32
    %779 = vector.shape_cast %38 : vector<1x256xi1> to vector<1x256xi1>
    %780 = vector.broadcast %779 : vector<1x256xi1> to vector<8x256xi1>
    %781 = vector.broadcast %cst_284 : f32 to vector<8x256xf32>
    %782 = arith.select %780, %778, %781 : vector<8x256xi1>, vector<8x256xf32>
    %c193_i32_285 = arith.constant 193 : i32
    %783 = tpu.dynamic_rotate %667 by %c193_i32_285 dim 1 : vector<8x256xf32>, i32 -> vector<8x256xf32>
    %cst_286 = arith.constant 0.000000e+00 : f32
    %784 = vector.shape_cast %39 : vector<1x256xi1> to vector<1x256xi1>
    %785 = vector.broadcast %784 : vector<1x256xi1> to vector<8x256xi1>
    %786 = vector.broadcast %cst_286 : f32 to vector<8x256xf32>
    %787 = arith.select %785, %783, %786 : vector<8x256xi1>, vector<8x256xf32>
    %c192_i32_287 = arith.constant 192 : i32
    %788 = tpu.dynamic_rotate %667 by %c192_i32_287 dim 1 : vector<8x256xf32>, i32 -> vector<8x256xf32>
    %cst_288 = arith.constant 0.000000e+00 : f32
    %789 = vector.shape_cast %9 : vector<1x256xi1> to vector<1x256xi1>
    %790 = vector.broadcast %789 : vector<1x256xi1> to vector<8x256xi1>
    %791 = vector.broadcast %cst_288 : f32 to vector<8x256xf32>
    %792 = arith.select %790, %788, %791 : vector<8x256xi1>, vector<8x256xf32>
    %c191_i32_289 = arith.constant 191 : i32
    %793 = tpu.dynamic_rotate %667 by %c191_i32_289 dim 1 : vector<8x256xf32>, i32 -> vector<8x256xf32>
    %cst_290 = arith.constant 0.000000e+00 : f32
    %794 = vector.shape_cast %40 : vector<1x256xi1> to vector<1x256xi1>
    %795 = vector.broadcast %794 : vector<1x256xi1> to vector<8x256xi1>
    %796 = vector.broadcast %cst_290 : f32 to vector<8x256xf32>
    %797 = arith.select %795, %793, %796 : vector<8x256xi1>, vector<8x256xf32>
    %c185_i32_291 = arith.constant 185 : i32
    %798 = tpu.dynamic_rotate %667 by %c185_i32_291 dim 1 : vector<8x256xf32>, i32 -> vector<8x256xf32>
    %cst_292 = arith.constant 0.000000e+00 : f32
    %799 = vector.shape_cast %42 : vector<1x256xi1> to vector<1x256xi1>
    %800 = vector.broadcast %799 : vector<1x256xi1> to vector<8x256xi1>
    %801 = vector.broadcast %cst_292 : f32 to vector<8x256xf32>
    %802 = arith.select %800, %798, %801 : vector<8x256xi1>, vector<8x256xf32>
    %c184_i32_293 = arith.constant 184 : i32
    %803 = tpu.dynamic_rotate %667 by %c184_i32_293 dim 1 : vector<8x256xf32>, i32 -> vector<8x256xf32>
    %cst_294 = arith.constant 0.000000e+00 : f32
    %804 = vector.shape_cast %43 : vector<1x256xi1> to vector<1x256xi1>
    %805 = vector.broadcast %804 : vector<1x256xi1> to vector<8x256xi1>
    %806 = vector.broadcast %cst_294 : f32 to vector<8x256xf32>
    %807 = arith.select %805, %803, %806 : vector<8x256xi1>, vector<8x256xf32>
    %c183_i32_295 = arith.constant 183 : i32
    %808 = tpu.dynamic_rotate %667 by %c183_i32_295 dim 1 : vector<8x256xf32>, i32 -> vector<8x256xf32>
    %cst_296 = arith.constant 0.000000e+00 : f32
    %809 = vector.shape_cast %45 : vector<1x256xi1> to vector<1x256xi1>
    %810 = vector.broadcast %809 : vector<1x256xi1> to vector<8x256xi1>
    %811 = vector.broadcast %cst_296 : f32 to vector<8x256xf32>
    %812 = arith.select %810, %808, %811 : vector<8x256xi1>, vector<8x256xf32>
    %813 = tpu.concatenate %772, %777, %782, %787, %792, %797, %802, %807, %812 in 0 : vector<8x256xf32>, vector<8x256xf32>, vector<8x256xf32>, vector<8x256xf32>, vector<8x256xf32>, vector<8x256xf32>, vector<8x256xf32>, vector<8x256xf32>, vector<8x256xf32> -> vector<72x256xf32>
    %814 = arith.truncf %813 : vector<72x256xf32> to vector<72x256xbf16>
    %815 = vector.extract_strided_slice %669 {offsets = [2, 0, 0], sizes = [1, 8, 72], strides = [1, 1, 1]} : vector<3x8x72xbf16> to vector<1x8x72xbf16>
    %816 = vector.shape_cast %815 : vector<1x8x72xbf16> to vector<8x72xbf16>
    %cst_297 = arith.constant dense<0.000000e+00> : vector<8x256xf32>
    %817 = tpu.matmul %816, %814, %cst_297 {dimension_numbers = #tpu.dot_dimension_numbers<[1], [0], [0], [1], [0, 0, 1, 1], [], []>} : vector<8x72xbf16>, vector<72x256xbf16>, vector<8x256xf32> -> vector<8x256xf32>
    %818 = arith.addf %767, %817 : vector<8x256xf32>
    %819 = vector.broadcast %671 : vector<8x1xf32> to vector<8x256xf32>
    %820 = arith.addf %818, %819 : vector<8x256xf32>
    %cst_298 = arith.constant 0.000000e+00 : f32
    %821 = vector.broadcast %cst_298 : f32 to vector<8x256xf32>
    %822 = arith.maximumf %820, %821 : vector<8x256xf32>
    %c4_299 = arith.constant 4 : index
    %c0_300 = arith.constant 0 : index
    %c0_301 = arith.constant 0 : index
    %c0_302 = arith.constant 0 : index
    %823 = vector.load %arg4[%c4_299, %c0_300, %c0_301, %c0_302] : memref<5x3x8x72xbf16, #tpu.memory_space<vmem>>, vector<1x3x8x72xbf16>
    %824 = vector.shape_cast %823 : vector<1x3x8x72xbf16> to vector<3x8x72xbf16>
    %c5 = arith.constant 5 : index
    %c0_303 = arith.constant 0 : index
    %c0_304 = arith.constant 0 : index
    %825 = vector.load %arg5[%c5, %c0_303, %c0_304] : memref<6x8x1xf32, #tpu.memory_space<vmem>>, vector<1x8x1xf32>
    %826 = vector.shape_cast %825 : vector<1x8x1xf32> to vector<8x1xf32>
    %c73_i32_305 = arith.constant 73 : i32
    %827 = tpu.dynamic_rotate %822 by %c73_i32_305 dim 1 : vector<8x256xf32>, i32 -> vector<8x256xf32>
    %cst_306 = arith.constant 0.000000e+00 : f32
    %828 = vector.shape_cast %19 : vector<1x256xi1> to vector<1x256xi1>
    %829 = vector.broadcast %828 : vector<1x256xi1> to vector<8x256xi1>
    %830 = vector.broadcast %cst_306 : f32 to vector<8x256xf32>
    %831 = arith.select %829, %827, %830 : vector<8x256xi1>, vector<8x256xf32>
    %c72_i32_307 = arith.constant 72 : i32
    %832 = tpu.dynamic_rotate %822 by %c72_i32_307 dim 1 : vector<8x256xf32>, i32 -> vector<8x256xf32>
    %cst_308 = arith.constant 0.000000e+00 : f32
    %833 = vector.shape_cast %20 : vector<1x256xi1> to vector<1x256xi1>
    %834 = vector.broadcast %833 : vector<1x256xi1> to vector<8x256xi1>
    %835 = vector.broadcast %cst_308 : f32 to vector<8x256xf32>
    %836 = arith.select %834, %832, %835 : vector<8x256xi1>, vector<8x256xf32>
    %c71_i32_309 = arith.constant 71 : i32
    %837 = tpu.dynamic_rotate %822 by %c71_i32_309 dim 1 : vector<8x256xf32>, i32 -> vector<8x256xf32>
    %cst_310 = arith.constant 0.000000e+00 : f32
    %838 = vector.shape_cast %22 : vector<1x256xi1> to vector<1x256xi1>
    %839 = vector.broadcast %838 : vector<1x256xi1> to vector<8x256xi1>
    %840 = vector.broadcast %cst_310 : f32 to vector<8x256xf32>
    %841 = arith.select %839, %837, %840 : vector<8x256xi1>, vector<8x256xf32>
    %c65_i32_311 = arith.constant 65 : i32
    %842 = tpu.dynamic_rotate %822 by %c65_i32_311 dim 1 : vector<8x256xf32>, i32 -> vector<8x256xf32>
    %cst_312 = arith.constant 0.000000e+00 : f32
    %843 = vector.shape_cast %23 : vector<1x256xi1> to vector<1x256xi1>
    %844 = vector.broadcast %843 : vector<1x256xi1> to vector<8x256xi1>
    %845 = vector.broadcast %cst_312 : f32 to vector<8x256xf32>
    %846 = arith.select %844, %842, %845 : vector<8x256xi1>, vector<8x256xf32>
    %c64_i32_313 = arith.constant 64 : i32
    %847 = tpu.dynamic_rotate %822 by %c64_i32_313 dim 1 : vector<8x256xf32>, i32 -> vector<8x256xf32>
    %cst_314 = arith.constant 0.000000e+00 : f32
    %848 = vector.shape_cast %7 : vector<1x256xi1> to vector<1x256xi1>
    %849 = vector.broadcast %848 : vector<1x256xi1> to vector<8x256xi1>
    %850 = vector.broadcast %cst_314 : f32 to vector<8x256xf32>
    %851 = arith.select %849, %847, %850 : vector<8x256xi1>, vector<8x256xf32>
    %c63_i32_315 = arith.constant 63 : i32
    %852 = tpu.dynamic_rotate %822 by %c63_i32_315 dim 1 : vector<8x256xf32>, i32 -> vector<8x256xf32>
    %cst_316 = arith.constant 0.000000e+00 : f32
    %853 = vector.shape_cast %24 : vector<1x256xi1> to vector<1x256xi1>
    %854 = vector.broadcast %853 : vector<1x256xi1> to vector<8x256xi1>
    %855 = vector.broadcast %cst_316 : f32 to vector<8x256xf32>
    %856 = arith.select %854, %852, %855 : vector<8x256xi1>, vector<8x256xf32>
    %c57_i32_317 = arith.constant 57 : i32
    %857 = tpu.dynamic_rotate %822 by %c57_i32_317 dim 1 : vector<8x256xf32>, i32 -> vector<8x256xf32>
    %cst_318 = arith.constant 0.000000e+00 : f32
    %858 = vector.shape_cast %26 : vector<1x256xi1> to vector<1x256xi1>
    %859 = vector.broadcast %858 : vector<1x256xi1> to vector<8x256xi1>
    %860 = vector.broadcast %cst_318 : f32 to vector<8x256xf32>
    %861 = arith.select %859, %857, %860 : vector<8x256xi1>, vector<8x256xf32>
    %c56_i32_319 = arith.constant 56 : i32
    %862 = tpu.dynamic_rotate %822 by %c56_i32_319 dim 1 : vector<8x256xf32>, i32 -> vector<8x256xf32>
    %cst_320 = arith.constant 0.000000e+00 : f32
    %863 = vector.shape_cast %27 : vector<1x256xi1> to vector<1x256xi1>
    %864 = vector.broadcast %863 : vector<1x256xi1> to vector<8x256xi1>
    %865 = vector.broadcast %cst_320 : f32 to vector<8x256xf32>
    %866 = arith.select %864, %862, %865 : vector<8x256xi1>, vector<8x256xf32>
    %c55_i32_321 = arith.constant 55 : i32
    %867 = tpu.dynamic_rotate %822 by %c55_i32_321 dim 1 : vector<8x256xf32>, i32 -> vector<8x256xf32>
    %cst_322 = arith.constant 0.000000e+00 : f32
    %868 = vector.shape_cast %29 : vector<1x256xi1> to vector<1x256xi1>
    %869 = vector.broadcast %868 : vector<1x256xi1> to vector<8x256xi1>
    %870 = vector.broadcast %cst_322 : f32 to vector<8x256xf32>
    %871 = arith.select %869, %867, %870 : vector<8x256xi1>, vector<8x256xf32>
    %872 = tpu.concatenate %831, %836, %841, %846, %851, %856, %861, %866, %871 in 0 : vector<8x256xf32>, vector<8x256xf32>, vector<8x256xf32>, vector<8x256xf32>, vector<8x256xf32>, vector<8x256xf32>, vector<8x256xf32>, vector<8x256xf32>, vector<8x256xf32> -> vector<72x256xf32>
    %873 = arith.truncf %872 : vector<72x256xf32> to vector<72x256xbf16>
    %874 = vector.extract_strided_slice %824 {offsets = [0, 0, 0], sizes = [1, 8, 72], strides = [1, 1, 1]} : vector<3x8x72xbf16> to vector<1x8x72xbf16>
    %875 = vector.shape_cast %874 : vector<1x8x72xbf16> to vector<8x72xbf16>
    %cst_323 = arith.constant dense<0.000000e+00> : vector<8x256xf32>
    %876 = tpu.matmul %875, %873, %cst_323 {dimension_numbers = #tpu.dot_dimension_numbers<[1], [0], [0], [1], [0, 0, 1, 1], [], []>} : vector<8x72xbf16>, vector<72x256xbf16>, vector<8x256xf32> -> vector<8x256xf32>
    %c9_i32_324 = arith.constant 9 : i32
    %877 = tpu.dynamic_rotate %822 by %c9_i32_324 dim 1 : vector<8x256xf32>, i32 -> vector<8x256xf32>
    %cst_325 = arith.constant 0.000000e+00 : f32
    %878 = vector.shape_cast %30 : vector<1x256xi1> to vector<1x256xi1>
    %879 = vector.broadcast %878 : vector<1x256xi1> to vector<8x256xi1>
    %880 = vector.broadcast %cst_325 : f32 to vector<8x256xf32>
    %881 = arith.select %879, %877, %880 : vector<8x256xi1>, vector<8x256xf32>
    %c8_i32_326 = arith.constant 8 : i32
    %882 = tpu.dynamic_rotate %822 by %c8_i32_326 dim 1 : vector<8x256xf32>, i32 -> vector<8x256xf32>
    %cst_327 = arith.constant 0.000000e+00 : f32
    %883 = vector.shape_cast %11 : vector<1x256xi1> to vector<1x256xi1>
    %884 = vector.broadcast %883 : vector<1x256xi1> to vector<8x256xi1>
    %885 = vector.broadcast %cst_327 : f32 to vector<8x256xf32>
    %886 = arith.select %884, %882, %885 : vector<8x256xi1>, vector<8x256xf32>
    %c7_i32_328 = arith.constant 7 : i32
    %887 = tpu.dynamic_rotate %822 by %c7_i32_328 dim 1 : vector<8x256xf32>, i32 -> vector<8x256xf32>
    %cst_329 = arith.constant 0.000000e+00 : f32
    %888 = vector.shape_cast %31 : vector<1x256xi1> to vector<1x256xi1>
    %889 = vector.broadcast %888 : vector<1x256xi1> to vector<8x256xi1>
    %890 = vector.broadcast %cst_329 : f32 to vector<8x256xf32>
    %891 = arith.select %889, %887, %890 : vector<8x256xi1>, vector<8x256xf32>
    %c1_i32_330 = arith.constant 1 : i32
    %892 = tpu.dynamic_rotate %822 by %c1_i32_330 dim 1 : vector<8x256xf32>, i32 -> vector<8x256xf32>
    %cst_331 = arith.constant 0.000000e+00 : f32
    %893 = vector.shape_cast %15 : vector<1x256xi1> to vector<1x256xi1>
    %894 = vector.broadcast %893 : vector<1x256xi1> to vector<8x256xi1>
    %895 = vector.broadcast %cst_331 : f32 to vector<8x256xf32>
    %896 = arith.select %894, %892, %895 : vector<8x256xi1>, vector<8x256xf32>
    %c255_i32_332 = arith.constant 255 : i32
    %897 = tpu.dynamic_rotate %822 by %c255_i32_332 dim 1 : vector<8x256xf32>, i32 -> vector<8x256xf32>
    %cst_333 = arith.constant 0.000000e+00 : f32
    %898 = vector.shape_cast %17 : vector<1x256xi1> to vector<1x256xi1>
    %899 = vector.broadcast %898 : vector<1x256xi1> to vector<8x256xi1>
    %900 = vector.broadcast %cst_333 : f32 to vector<8x256xf32>
    %901 = arith.select %899, %897, %900 : vector<8x256xi1>, vector<8x256xf32>
    %c249_i32_334 = arith.constant 249 : i32
    %902 = tpu.dynamic_rotate %822 by %c249_i32_334 dim 1 : vector<8x256xf32>, i32 -> vector<8x256xf32>
    %cst_335 = arith.constant 0.000000e+00 : f32
    %903 = vector.shape_cast %32 : vector<1x256xi1> to vector<1x256xi1>
    %904 = vector.broadcast %903 : vector<1x256xi1> to vector<8x256xi1>
    %905 = vector.broadcast %cst_335 : f32 to vector<8x256xf32>
    %906 = arith.select %904, %902, %905 : vector<8x256xi1>, vector<8x256xf32>
    %c248_i32_336 = arith.constant 248 : i32
    %907 = tpu.dynamic_rotate %822 by %c248_i32_336 dim 1 : vector<8x256xf32>, i32 -> vector<8x256xf32>
    %cst_337 = arith.constant 0.000000e+00 : f32
    %908 = vector.shape_cast %13 : vector<1x256xi1> to vector<1x256xi1>
    %909 = vector.broadcast %908 : vector<1x256xi1> to vector<8x256xi1>
    %910 = vector.broadcast %cst_337 : f32 to vector<8x256xf32>
    %911 = arith.select %909, %907, %910 : vector<8x256xi1>, vector<8x256xf32>
    %c247_i32_338 = arith.constant 247 : i32
    %912 = tpu.dynamic_rotate %822 by %c247_i32_338 dim 1 : vector<8x256xf32>, i32 -> vector<8x256xf32>
    %cst_339 = arith.constant 0.000000e+00 : f32
    %913 = vector.shape_cast %33 : vector<1x256xi1> to vector<1x256xi1>
    %914 = vector.broadcast %913 : vector<1x256xi1> to vector<8x256xi1>
    %915 = vector.broadcast %cst_339 : f32 to vector<8x256xf32>
    %916 = arith.select %914, %912, %915 : vector<8x256xi1>, vector<8x256xf32>
    %917 = tpu.concatenate %881, %886, %891, %896, %822, %901, %906, %911, %916 in 0 : vector<8x256xf32>, vector<8x256xf32>, vector<8x256xf32>, vector<8x256xf32>, vector<8x256xf32>, vector<8x256xf32>, vector<8x256xf32>, vector<8x256xf32>, vector<8x256xf32> -> vector<72x256xf32>
    %918 = arith.truncf %917 : vector<72x256xf32> to vector<72x256xbf16>
    %919 = vector.extract_strided_slice %824 {offsets = [1, 0, 0], sizes = [1, 8, 72], strides = [1, 1, 1]} : vector<3x8x72xbf16> to vector<1x8x72xbf16>
    %920 = vector.shape_cast %919 : vector<1x8x72xbf16> to vector<8x72xbf16>
    %cst_340 = arith.constant dense<0.000000e+00> : vector<8x256xf32>
    %921 = tpu.matmul %920, %918, %cst_340 {dimension_numbers = #tpu.dot_dimension_numbers<[1], [0], [0], [1], [0, 0, 1, 1], [], []>} : vector<8x72xbf16>, vector<72x256xbf16>, vector<8x256xf32> -> vector<8x256xf32>
    %922 = arith.addf %876, %921 : vector<8x256xf32>
    %c201_i32_341 = arith.constant 201 : i32
    %923 = tpu.dynamic_rotate %822 by %c201_i32_341 dim 1 : vector<8x256xf32>, i32 -> vector<8x256xf32>
    %cst_342 = arith.constant 0.000000e+00 : f32
    %924 = vector.shape_cast %35 : vector<1x256xi1> to vector<1x256xi1>
    %925 = vector.broadcast %924 : vector<1x256xi1> to vector<8x256xi1>
    %926 = vector.broadcast %cst_342 : f32 to vector<8x256xf32>
    %927 = arith.select %925, %923, %926 : vector<8x256xi1>, vector<8x256xf32>
    %c200_i32_343 = arith.constant 200 : i32
    %928 = tpu.dynamic_rotate %822 by %c200_i32_343 dim 1 : vector<8x256xf32>, i32 -> vector<8x256xf32>
    %cst_344 = arith.constant 0.000000e+00 : f32
    %929 = vector.shape_cast %36 : vector<1x256xi1> to vector<1x256xi1>
    %930 = vector.broadcast %929 : vector<1x256xi1> to vector<8x256xi1>
    %931 = vector.broadcast %cst_344 : f32 to vector<8x256xf32>
    %932 = arith.select %930, %928, %931 : vector<8x256xi1>, vector<8x256xf32>
    %c199_i32_345 = arith.constant 199 : i32
    %933 = tpu.dynamic_rotate %822 by %c199_i32_345 dim 1 : vector<8x256xf32>, i32 -> vector<8x256xf32>
    %cst_346 = arith.constant 0.000000e+00 : f32
    %934 = vector.shape_cast %38 : vector<1x256xi1> to vector<1x256xi1>
    %935 = vector.broadcast %934 : vector<1x256xi1> to vector<8x256xi1>
    %936 = vector.broadcast %cst_346 : f32 to vector<8x256xf32>
    %937 = arith.select %935, %933, %936 : vector<8x256xi1>, vector<8x256xf32>
    %c193_i32_347 = arith.constant 193 : i32
    %938 = tpu.dynamic_rotate %822 by %c193_i32_347 dim 1 : vector<8x256xf32>, i32 -> vector<8x256xf32>
    %cst_348 = arith.constant 0.000000e+00 : f32
    %939 = vector.shape_cast %39 : vector<1x256xi1> to vector<1x256xi1>
    %940 = vector.broadcast %939 : vector<1x256xi1> to vector<8x256xi1>
    %941 = vector.broadcast %cst_348 : f32 to vector<8x256xf32>
    %942 = arith.select %940, %938, %941 : vector<8x256xi1>, vector<8x256xf32>
    %c192_i32_349 = arith.constant 192 : i32
    %943 = tpu.dynamic_rotate %822 by %c192_i32_349 dim 1 : vector<8x256xf32>, i32 -> vector<8x256xf32>
    %cst_350 = arith.constant 0.000000e+00 : f32
    %944 = vector.shape_cast %9 : vector<1x256xi1> to vector<1x256xi1>
    %945 = vector.broadcast %944 : vector<1x256xi1> to vector<8x256xi1>
    %946 = vector.broadcast %cst_350 : f32 to vector<8x256xf32>
    %947 = arith.select %945, %943, %946 : vector<8x256xi1>, vector<8x256xf32>
    %c191_i32_351 = arith.constant 191 : i32
    %948 = tpu.dynamic_rotate %822 by %c191_i32_351 dim 1 : vector<8x256xf32>, i32 -> vector<8x256xf32>
    %cst_352 = arith.constant 0.000000e+00 : f32
    %949 = vector.shape_cast %40 : vector<1x256xi1> to vector<1x256xi1>
    %950 = vector.broadcast %949 : vector<1x256xi1> to vector<8x256xi1>
    %951 = vector.broadcast %cst_352 : f32 to vector<8x256xf32>
    %952 = arith.select %950, %948, %951 : vector<8x256xi1>, vector<8x256xf32>
    %c185_i32_353 = arith.constant 185 : i32
    %953 = tpu.dynamic_rotate %822 by %c185_i32_353 dim 1 : vector<8x256xf32>, i32 -> vector<8x256xf32>
    %cst_354 = arith.constant 0.000000e+00 : f32
    %954 = vector.shape_cast %42 : vector<1x256xi1> to vector<1x256xi1>
    %955 = vector.broadcast %954 : vector<1x256xi1> to vector<8x256xi1>
    %956 = vector.broadcast %cst_354 : f32 to vector<8x256xf32>
    %957 = arith.select %955, %953, %956 : vector<8x256xi1>, vector<8x256xf32>
    %c184_i32_355 = arith.constant 184 : i32
    %958 = tpu.dynamic_rotate %822 by %c184_i32_355 dim 1 : vector<8x256xf32>, i32 -> vector<8x256xf32>
    %cst_356 = arith.constant 0.000000e+00 : f32
    %959 = vector.shape_cast %43 : vector<1x256xi1> to vector<1x256xi1>
    %960 = vector.broadcast %959 : vector<1x256xi1> to vector<8x256xi1>
    %961 = vector.broadcast %cst_356 : f32 to vector<8x256xf32>
    %962 = arith.select %960, %958, %961 : vector<8x256xi1>, vector<8x256xf32>
    %c183_i32_357 = arith.constant 183 : i32
    %963 = tpu.dynamic_rotate %822 by %c183_i32_357 dim 1 : vector<8x256xf32>, i32 -> vector<8x256xf32>
    %cst_358 = arith.constant 0.000000e+00 : f32
    %964 = vector.shape_cast %45 : vector<1x256xi1> to vector<1x256xi1>
    %965 = vector.broadcast %964 : vector<1x256xi1> to vector<8x256xi1>
    %966 = vector.broadcast %cst_358 : f32 to vector<8x256xf32>
    %967 = arith.select %965, %963, %966 : vector<8x256xi1>, vector<8x256xf32>
    %968 = tpu.concatenate %927, %932, %937, %942, %947, %952, %957, %962, %967 in 0 : vector<8x256xf32>, vector<8x256xf32>, vector<8x256xf32>, vector<8x256xf32>, vector<8x256xf32>, vector<8x256xf32>, vector<8x256xf32>, vector<8x256xf32>, vector<8x256xf32> -> vector<72x256xf32>
    %969 = arith.truncf %968 : vector<72x256xf32> to vector<72x256xbf16>
    %970 = vector.extract_strided_slice %824 {offsets = [2, 0, 0], sizes = [1, 8, 72], strides = [1, 1, 1]} : vector<3x8x72xbf16> to vector<1x8x72xbf16>
    %971 = vector.shape_cast %970 : vector<1x8x72xbf16> to vector<8x72xbf16>
    %cst_359 = arith.constant dense<0.000000e+00> : vector<8x256xf32>
    %972 = tpu.matmul %971, %969, %cst_359 {dimension_numbers = #tpu.dot_dimension_numbers<[1], [0], [0], [1], [0, 0, 1, 1], [], []>} : vector<8x72xbf16>, vector<72x256xbf16>, vector<8x256xf32> -> vector<8x256xf32>
    %973 = arith.addf %922, %972 : vector<8x256xf32>
    %974 = vector.broadcast %826 : vector<8x1xf32> to vector<8x256xf32>
    %975 = arith.addf %973, %974 : vector<8x256xf32>
    %976 = arith.addf %667, %975 : vector<8x256xf32>
    %cst_360 = arith.constant 5.000000e-01 : f32
    %977 = vector.broadcast %cst_360 : f32 to vector<8x256xf32>
    %978 = arith.mulf %976, %977 : vector<8x256xf32>
    %c0_361 = arith.constant 0 : index
    %c0_362 = arith.constant 0 : index
    %c0_363 = arith.constant 0 : index
    %979 = vector.load %arg6[%c0_361, %c0_362, %c0_363] : memref<1x8x256xf32, #tpu.memory_space<vmem>>, vector<1x8x256xf32>
    %980 = vector.shape_cast %979 : vector<1x8x256xf32> to vector<8x256xf32>
    %981 = vector.shape_cast %978 : vector<8x256xf32> to vector<1x8x256xf32>
    tpu.vector_store %arg6[%c0_361, %c0_362, %c0_363], %981 {strides = array<i32>} : memref<1x8x256xf32, #tpu.memory_space<vmem>>, vector<1x8x256xf32>,
    return
  }
  func.func @transform_0(%arg0: i32) -> (i32, i32, i32) {
    %c0_i32 = arith.constant 0 : i32
    %c0_i32_0 = arith.constant 0 : i32
    %c0_i32_1 = arith.constant 0 : i32
    return %arg0, %c0_i32, %c0_i32_0 : i32, i32, i32
  }
  func.func @transform_1(%arg0: i32) -> (i32, i32, i32) {
    %c0_i32 = arith.constant 0 : i32
    %c0_i32_0 = arith.constant 0 : i32
    %c0_i32_1 = arith.constant 0 : i32
    %c0_i32_2 = arith.constant 0 : i32
    return %c0_i32, %c0_i32_0, %c0_i32_1 : i32, i32, i32
  }
  func.func @transform_2(%arg0: i32) -> (i32, i32, i32) {
    %c0_i32 = arith.constant 0 : i32
    %c0_i32_0 = arith.constant 0 : i32
    %c0_i32_1 = arith.constant 0 : i32
    %c0_i32_2 = arith.constant 0 : i32
    return %c0_i32, %c0_i32_0, %c0_i32_1 : i32, i32, i32
  }
  func.func @transform_3(%arg0: i32) -> (i32, i32, i32, i32) {
    %c0_i32 = arith.constant 0 : i32
    %c0_i32_0 = arith.constant 0 : i32
    %c0_i32_1 = arith.constant 0 : i32
    %c0_i32_2 = arith.constant 0 : i32
    %c0_i32_3 = arith.constant 0 : i32
    return %c0_i32, %c0_i32_0, %c0_i32_1, %c0_i32_2 : i32, i32, i32, i32
  }
  func.func @transform_4(%arg0: i32) -> (i32, i32, i32) {
    %c0_i32 = arith.constant 0 : i32
    %c0_i32_0 = arith.constant 0 : i32
    %c0_i32_1 = arith.constant 0 : i32
    %c0_i32_2 = arith.constant 0 : i32
    return %c0_i32, %c0_i32_0, %c0_i32_1 : i32, i32, i32
  }
  func.func @transform_5(%arg0: i32) -> (i32, i32, i32) {
    %c0_i32 = arith.constant 0 : i32
    %c0_i32_0 = arith.constant 0 : i32
    %c0_i32_1 = arith.constant 0 : i32
    return %arg0, %c0_i32, %c0_i32_0 : i32, i32, i32
  }
}

</mosaic_0001>

<llo_original>
// kernel: basic_forward.1
$region0: #{basic_forward.1}
  #allocation0 [shape = 'u32[]', space=smem, size = 0x4, offset = 0x4, fixed_abs, tag = 'smem constant byte address 0x4 - core index']
  #allocation1 [shape = 'u32[144,128]{1,0:T(1,128)}', space=vmem, size = 0x12000, scoped, tag = 'internal scratch']
  %s0 = inlined_call_operand.vmem [shape: f32[2,8,256], index: 0, kind: input, shape index: {}]
  %s1 = inlined_call_operand.vmem [shape: s32[3,1,256], index: 1, kind: input, shape index: {}]
  %s2 = inlined_call_operand.vmem [shape: bf16[3,8,72], index: 2, kind: input, shape index: {}]
  %s3 = inlined_call_operand.vmem [shape: bf16[5,3,8,72], index: 3, kind: input, shape index: {}]
  %s4 = inlined_call_operand.vmem [shape: f32[6,8,1], index: 4, kind: input, shape index: {}]
  %s5 = inlined_call_operand.vmem [shape: f32[2,8,256], index: 5, kind: output, shape index: {}]
  %s6 = sld [smem:[#allocation0]]
  $region53: #{basic_forward.1} parent=0
    _
  %s8 = ssub.s32 1, %s6
  %s9 = scalar_select 0, %s8, %s6
  loop: start=0, step=1, limit=4
  $region2: #{basic_forward.1} parent=0 // loop_pre_header
    _
  $region3: #{basic_forward.1} parent=0 // loop_header
    %s11 = sphi 0, %s15
    %p12 = scmp.ge.s32.totalorder %s11, 4
    %s21 = sphi 0, %s23
    %s24 = sphi 0, %s21
    %s25 = sphi 0, %s24
    %s41 = sphi 0, %s25
    %s45 = sphi 0, %s45
    %s47 = sphi 0, %s45
    %s48 = sphi 0, %s47
    %s62 = sphi 0, %s48
    %s66 = sphi 0, %s66
    %s68 = sphi 0, %s66
    %s69 = sphi 0, %s68
    %s83 = sphi 0, %s69
    %s87 = sphi 0, %s87
    %s89 = sphi 0, %s87
    %s90 = sphi 0, %s89
    %s104 = sphi 0, %s90
    %s108 = sphi 0, %s108
    %s110 = sphi 0, %s108
    %s111 = sphi 0, %s110
    %s125 = sphi 0, %s111
    %s131 = sphi 0, %s133
    %s134 = sphi 0, %s131
    %s135 = sphi 0, %s134
    %s151 = sphi 0, %s135
  $region4: #{basic_forward.1} parent=0 // loop_header_branch
    %14 = sbr.rel (%p12) target = $region8
  $region5: #{basic_forward.1} parent=0 // loop_body
    %s16 = ssub.s32 %s11, 1
    %s17 = ssub.s32 %s11, 2
    %s18 = sadd.s32 %s11, 1
    %s19 = ssub.s32 %s11, %s18
    %p20 = scmp.eq.s32.totalorder %s19, 0
    %s22 = sadd.s32 %s21, 1
    %s23 = scalar_select %p20, %s21, %s22
    %p26 = pneg %p20
    %p27 = scmp.eq.s32.totalorder %s11, 1
    %p28 = por %p26, %p27
    %p29 = scmp.ne.s32.totalorder %s21, %s24
    %p30 = scmp.eq.s32.totalorder %s11, 0
    %p31 = por %p29, %p30
    %p32 = scmp.ne.s32.totalorder %s21, %s24
    %p33 = scmp.eq.s32.totalorder %s16, 1
    %p34 = por %p32, %p33
    %p35 = scmp.ne.s32.totalorder %s24, %s25
    %p36 = scmp.eq.s32.totalorder %s16, 0
    %p37 = por %p35, %p36
    %p38 = scmp.ne.s32.totalorder %s24, %s25
    %p39 = scmp.eq.s32.totalorder %s17, 1
    %p40 = por %p38, %p39
    %p42 = scmp.ne.s32.totalorder %s25, %s41
    %p43 = scmp.eq.s32.totalorder %s17, 0
    %p44 = por %p42, %p43
    %s46 = sadd.s32 %s45, 1
    %p49 = scmp.eq.s32.totalorder %s11, 1
    %p50 = scmp.ne.s32.totalorder %s45, %s47
    %p51 = scmp.eq.s32.totalorder %s11, 0
    %p52 = por %p50, %p51
    %p53 = scmp.ne.s32.totalorder %s45, %s47
    %p54 = scmp.eq.s32.totalorder %s16, 1
    %p55 = por %p53, %p54
    %p56 = scmp.ne.s32.totalorder %s47, %s48
    %p57 = scmp.eq.s32.totalorder %s16, 0
    %p58 = por %p56, %p57
    %p59 = scmp.ne.s32.totalorder %s47, %s48
    %p60 = scmp.eq.s32.totalorder %s17, 1
    %p61 = por %p59, %p60
    %p63 = scmp.ne.s32.totalorder %s48, %s62
    %p64 = scmp.eq.s32.totalorder %s17, 0
    %p65 = por %p63, %p64
    %s67 = sadd.s32 %s66, 1
    %p70 = scmp.eq.s32.totalorder %s11, 1
    %p71 = scmp.ne.s32.totalorder %s66, %s68
    %p72 = scmp.eq.s32.totalorder %s11, 0
    %p73 = por %p71, %p72
    %p74 = scmp.ne.s32.totalorder %s66, %s68
    %p75 = scmp.eq.s32.totalorder %s16, 1
    %p76 = por %p74, %p75
    %p77 = scmp.ne.s32.totalorder %s68, %s69
    %p78 = scmp.eq.s32.totalorder %s16, 0
    %p79 = por %p77, %p78
    %p80 = scmp.ne.s32.totalorder %s68, %s69
    %p81 = scmp.eq.s32.totalorder %s17, 1
    %p82 = por %p80, %p81
    %p84 = scmp.ne.s32.totalorder %s69, %s83
    %p85 = scmp.eq.s32.totalorder %s17, 0
    %p86 = por %p84, %p85
    %s88 = sadd.s32 %s87, 1
    %p91 = scmp.eq.s32.totalorder %s11, 1
    %p92 = scmp.ne.s32.totalorder %s87, %s89
    %p93 = scmp.eq.s32.totalorder %s11, 0
    %p94 = por %p92, %p93
    %p95 = scmp.ne.s32.totalorder %s87, %s89
    %p96 = scmp.eq.s32.totalorder %s16, 1
    %p97 = por %p95, %p96
    %p98 = scmp.ne.s32.totalorder %s89, %s90
    %p99 = scmp.eq.s32.totalorder %s16, 0
    %p100 = por %p98, %p99
    %p101 = scmp.ne.s32.totalorder %s89, %s90
    %p102 = scmp.eq.s32.totalorder %s17, 1
    %p103 = por %p101, %p102
    %p105 = scmp.ne.s32.totalorder %s90, %s104
    %p106 = scmp.eq.s32.totalorder %s17, 0
    %p107 = por %p105, %p106
    %s109 = sadd.s32 %s108, 1
    %p112 = scmp.eq.s32.totalorder %s11, 1
    %p113 = scmp.ne.s32.totalorder %s108, %s110
    %p114 = scmp.eq.s32.totalorder %s11, 0
    %p115 = por %p113, %p114
    %p116 = scmp.ne.s32.totalorder %s108, %s110
    %p117 = scmp.eq.s32.totalorder %s16, 1
    %p118 = por %p116, %p117
    %p119 = scmp.ne.s32.totalorder %s110, %s111
    %p120 = scmp.eq.s32.totalorder %s16, 0
    %p121 = por %p119, %p120
    %p122 = scmp.ne.s32.totalorder %s110, %s111
    %p123 = scmp.eq.s32.totalorder %s17, 1
    %p124 = por %p122, %p123
    %p126 = scmp.ne.s32.totalorder %s111, %s125
    %p127 = scmp.eq.s32.totalorder %s17, 0
    %p128 = por %p126, %p127
    %s129 = ssub.s32 %s11, %s18
    %p130 = scmp.eq.s32.totalorder %s129, 0
    %s132 = sadd.s32 %s131, 1
    %s133 = scalar_select %p130, %s131, %s132
    %p136 = pneg %p130
    %p137 = scmp.eq.s32.totalorder %s11, 1
    %p138 = por %p136, %p137
    %p139 = scmp.ne.s32.totalorder %s131, %s134
    %p140 = scmp.eq.s32.totalorder %s11, 0
    %p141 = por %p139, %p140
    %p142 = scmp.ne.s32.totalorder %s131, %s134
    %p143 = scmp.eq.s32.totalorder %s16, 1
    %p144 = por %p142, %p143
    %p145 = scmp.ne.s32.totalorder %s134, %s135
    %p146 = scmp.eq.s32.totalorder %s16, 0
    %p147 = por %p145, %p146
    %p148 = scmp.ne.s32.totalorder %s134, %s135
    %p149 = scmp.eq.s32.totalorder %s17, 1
    %p150 = por %p148, %p149
    %p152 = scmp.ne.s32.totalorder %s135, %s151
    %p153 = scmp.eq.s32.totalorder %s17, 0
    %p154 = por %p152, %p153
    %p155 = scmp.le.s32.totalorder 1, %s11
    %p156 = scmp.lt.s32.totalorder %s11, 3
    %p157 = pnand %p155, %p156
    %p158 = pneg %p157
    // Predicated region
    $region9: #{basic_forward.1} parent=5 // pred_check
      _
    $region10: #{basic_forward.1} parent=5 // pred_check_branch
      %160 = sbr.rel (%p157) target = $region12
    $region11: #{basic_forward.1} parent=5 // pred_region
      %s161 = ssub.s32 %s11, 1
      // Predicated region
      $region13: #{basic_forward.1} parent=11 // pred_check
        %p162 = pneg %p58
      $region14: #{basic_forward.1} parent=11 // pred_check_branch
        %164 = sbr.rel (%p162) target = $region16
      $region15: #{basic_forward.1} parent=11 // pred_region
        _
      $region16: #{basic_forward.1} parent=11 // pred_fallthru
        _
      // Predicated region
      $region17: #{basic_forward.1} parent=11 // pred_check
        %p165 = pneg %p79
      $region18: #{basic_forward.1} parent=11 // pred_check_branch
        %167 = sbr.rel (%p165) target = $region20
      $region19: #{basic_forward.1} parent=11 // pred_region
        _
      $region20: #{basic_forward.1} parent=11 // pred_fallthru
        _
      // Predicated region
      $region21: #{basic_forward.1} parent=11 // pred_check
        %p168 = pneg %p100
      $region22: #{basic_forward.1} parent=11 // pred_check_branch
        %170 = sbr.rel (%p168) target = $region24
      $region23: #{basic_forward.1} parent=11 // pred_region
        _
      $region24: #{basic_forward.1} parent=11 // pred_fallthru
        _
      // Predicated region
      $region25: #{basic_forward.1} parent=11 // pred_check
        %p171 = pneg %p121
      $region26: #{basic_forward.1} parent=11 // pred_check_branch
        %173 = sbr.rel (%p171) target = $region28
      $region27: #{basic_forward.1} parent=11 // pred_region
        _
      $region28: #{basic_forward.1} parent=11 // pred_fallthru
        _
    $region12: #{basic_forward.1} parent=5 // pred_fallthru
      _
    %p174 = scmp.lt.s32.totalorder %s11, 2
    // Predicated region
    $region29: #{basic_forward.1} parent=5 // pred_check
      %p175 = pneg %p174
    $region30: #{basic_forward.1} parent=5 // pred_check_branch
      %177 = sbr.rel (%p175) target = $region32
    $region31: #{basic_forward.1} parent=5 // pred_region
      // Predicated region
      $region33: #{basic_forward.1} parent=31 // pred_check
        %p178 = pneg %p31
      $region34: #{basic_forward.1} parent=31 // pred_check_branch
        %180 = sbr.rel (%p178) target = $region36
      $region35: #{basic_forward.1} parent=31 // pred_region
        %p181 = scmp.lt.s32.totalorder %s11, 1
        %s182 = scalar_select %p181, %s11, 1
        %s183 = smul.addr %s182, 2
        %s184 = smul.addr %s183, 8
        %s185 = scalar_lea.vmem %s0, %s184
      $region36: #{basic_forward.1} parent=31 // pred_fallthru
        _
    $region32: #{basic_forward.1} parent=5 // pred_fallthru
      _
    %p186 = scmp.le.s32.totalorder 1, %s11
    %p187 = scmp.lt.s32.totalorder %s11, 3
    %p188 = pnand %p186, %p187
    %p189 = pneg %p188
    // Predicated region
    $region37: #{basic_forward.1} parent=5 // pred_check
      _
    $region38: #{basic_forward.1} parent=5 // pred_check_branch
      %191 = sbr.rel (%p188) target = $region40
    $region39: #{basic_forward.1} parent=5 // pred_region
      %s192 = ssub.s32 %s11, 1
      %p193 = scmp.lt.s32.totalorder %s16, 1
      %s194 = scalar_select %p193, %s16, 1
      %s195 = smul.addr %s194, 2
      %s196 = smul.addr %s195, 8
      %s197 = scalar_lea.vmem %s0, %s196
      %p198 = pneg %p37
      %p199 = pneg %p34
      %p200 = pneg %p58
      %p201 = pneg %p55
      %p202 = pneg %p79
      %p203 = pneg %p76
      %p204 = pneg %p100
      %p205 = pneg %p97
      %p206 = pneg %p121
      %p207 = pneg %p118
      %p208 = pneg %p147
      %p209 = pneg %p144
      %p210 = scmp.lt.s32.totalorder %s16, 1
      %s211 = scalar_select %p210, %s16, 1
      %s212 = smul.addr %s211, 2
      %s213 = smul.addr %s212, 8
      %s214 = scalar_lea.vmem %s5, %s213
      %p215 = scmp.lt.s32.totalorder %s16, 1
      %s216 = scalar_select %p215, %s16, 1
      %s217 = smul.addr %s216, 2
      %s218 = smul.addr %s217, 8
      %s219 = scalar_lea.vmem %s0, %s218
      %p220 = scmp.lt.s32.totalorder %s16, 1
      %s221 = scalar_select %p220, %s16, 1
      %s222 = smul.addr %s221, 2
      %s223 = smul.addr %s222, 8
      %s224 = scalar_lea.vmem %s5, %s223
      %v226 = vld [vmem:[%s1] sm:$0x3]
      %s227 = scalar_lea.vmem %s1, 2
      %v228 = vld [vmem:[%s227] sm:$0x3]
      %s229 = scalar_lea.vmem %s1, 4
      %v230 = vld [vmem:[%s229] sm:$0x3]
      %vm231 = vcmp.ge.s32.totalorder %v226, 1
      %vm232 = vcmp.lt.s32.totalorder %v226, 3
      %vm233 = vcmp.ge.s32.totalorder %v228, 1
      %vm234 = vcmp.lt.s32.totalorder %v228, 7
      %vm235 = vcmp.ge.s32.totalorder %v230, 1
      %vm236 = vcmp.lt.s32.totalorder %v230, 7
      %vm237 = vmand %vm231, %vm233
      %vm238 = vmand %vm237, %vm235
      %vm239 = vmand %vm237, %vm236
      %vm240 = vmand %vm231, %vm235
      %vm241 = vmand %vm231, %vm236
      %vm242 = vmand %vm231, %vm234
      %vm243 = vmand %vm242, %vm235
      %vm244 = vmand %vm242, %vm236
      %vm245 = vmand %vm233, %vm235
      %vm246 = vmand %vm233, %vm236
      %vm247 = vmand %vm234, %vm235
      %vm248 = vmand %vm234, %vm236
      %vm249 = vmand %vm232, %vm233
      %vm250 = vmand %vm249, %vm235
      %vm251 = vmand %vm249, %vm236
      %vm252 = vmand %vm232, %vm235
      %vm253 = vmand %vm232, %vm236
      %vm254 = vmand %vm232, %vm234
      %vm255 = vmand %vm254, %vm235
      %vm256 = vmand %vm254, %vm236
      %v257 = vld [vmem:[%s219] sm:$0xff]
      %v258 = vld [vmem:[%s219 + $0x8] sm:$0xff]
      %v259 = vld [vmem:[%s2] sm:$0xf]
      %v260 = vld [vmem:[%s2 + $0x4] sm:$0xf]
      %v261 = vld [vmem:[%s2 + $0x8] sm:$0xf]
      %v262 = vld [vmem:[%s4] sm:$0xff]
      %263 = vrot.lane.b32.xlu0 %v257, 73
      %v264 = vpop.permute.xlu0 %263
      %265 = vrot.lane.b32.xlu0 %v258, 73
      %v266 = vpop.permute.xlu0 %265
      %v267 = vlaneseq
      %v268 = vand.u32 %v267, 127
      %vm269 = vcmp.lt.s32.totalorder %v268, 73
      %v270 = vsel %vm269, %v264, %v266
      %v271 = vsel %vm269, %v266, %v264
      %v272 = vsel %vm238, 1, 0
      %v273 = vlaneseq
      %v274 = vshrl.u32 %v273, 7
      %v275 = vsub.s32 0, %v274
      %v276 = vrot.slane %v272, %v275
      %v277 = vlaneseq
      %v278 = vshrl.u32 %v277, 7
      %v279 = vsub.s32 1, %v278
      %v280 = vrot.slane %v272, %v279
      %vm281 = vcmp.eq.s32.totalorder %v276, 1
      %vm282 = vcmp.eq.s32.totalorder %v280, 1
      %v283 = vsel %vm281, %v271, 0.0
      %v284 = vsel %vm282, %v270, 0.0
      %285 = vrot.lane.b32.xlu0 %v257, 72
      %v286 = vpop.permute.xlu0 %285
      %287 = vrot.lane.b32.xlu0 %v258, 72
      %v288 = vpop.permute.xlu0 %287
      %vm289 = vcmp.lt.s32.totalorder %v268, 72
      %v290 = vsel %vm289, %v286, %v288
      %v291 = vsel %vm289, %v288, %v286
      %v292 = vsel %vm237, 1, 0
      %v293 = vlaneseq
      %v294 = vshrl.u32 %v293, 7
      %v295 = vsub.s32 0, %v294
      %v296 = vrot.slane %v292, %v295
      %v297 = vlaneseq
      %v298 = vshrl.u32 %v297, 7
      %v299 = vsub.s32 1, %v298
      %v300 = vrot.slane %v292, %v299
      %vm301 = vcmp.eq.s32.totalorder %v296, 1
      %vm302 = vcmp.eq.s32.totalorder %v300, 1
      %v303 = vsel %vm301, %v291, 0.0
      %v304 = vsel %vm302, %v290, 0.0
      %305 = vrot.lane.b32.xlu0 %v257, 71
      %v306 = vpop.permute.xlu0 %305
      %307 = vrot.lane.b32.xlu0 %v258, 71
      %v308 = vpop.permute.xlu0 %307
      %vm309 = vcmp.lt.s32.totalorder %v268, 71
      %v310 = vsel %vm309, %v306, %v308
      %v311 = vsel %vm309, %v308, %v306
      %v312 = vsel %vm239, 1, 0
      %v313 = vlaneseq
      %v314 = vshrl.u32 %v313, 7
      %v315 = vsub.s32 0, %v314
      %v316 = vrot.slane %v312, %v315
      %v317 = vlaneseq
      %v318 = vshrl.u32 %v317, 7
      %v319 = vsub.s32 1, %v318
      %v320 = vrot.slane %v312, %v319
      %vm321 = vcmp.eq.s32.totalorder %v316, 1
      %vm322 = vcmp.eq.s32.totalorder %v320, 1
      %v323 = vsel %vm321, %v311, 0.0
      %v324 = vsel %vm322, %v310, 0.0
      %325 = vrot.lane.b32.xlu0 %v257, 65
      %v326 = vpop.permute.xlu0 %325
      %327 = vrot.lane.b32.xlu0 %v258, 65
      %v328 = vpop.permute.xlu0 %327
      %vm329 = vcmp.lt.s32.totalorder %v268, 65
      %v330 = vsel %vm329, %v326, %v328
      %v331 = vsel %vm329, %v328, %v326
      %v332 = vsel %vm240, 1, 0
      %v333 = vlaneseq
      %v334 = vshrl.u32 %v333, 7
      %v335 = vsub.s32 0, %v334
      %v336 = vrot.slane %v332, %v335
      %v337 = vlaneseq
      %v338 = vshrl.u32 %v337, 7
      %v339 = vsub.s32 1, %v338
      %v340 = vrot.slane %v332, %v339
      %vm341 = vcmp.eq.s32.totalorder %v336, 1
      %vm342 = vcmp.eq.s32.totalorder %v340, 1
      %v343 = vsel %vm341, %v331, 0.0
      %v344 = vsel %vm342, %v330, 0.0
      %345 = vrot.lane.b32.xlu0 %v257, 64
      %v346 = vpop.permute.xlu0 %345
      %347 = vrot.lane.b32.xlu0 %v258, 64
      %v348 = vpop.permute.xlu0 %347
      %vm349 = vcmp.lt.s32.totalorder %v268, 64
      %v350 = vsel %vm349, %v346, %v348
      %v351 = vsel %vm349, %v348, %v346
      %v352 = vsel %vm231, 1, 0
      %v353 = vlaneseq
      %v354 = vshrl.u32 %v353, 7
      %v355 = vsub.s32 0, %v354
      %v356 = vrot.slane %v352, %v355
      %v357 = vlaneseq
      %v358 = vshrl.u32 %v357, 7
      %v359 = vsub.s32 1, %v358
      %v360 = vrot.slane %v352, %v359
      %vm361 = vcmp.eq.s32.totalorder %v356, 1
      %vm362 = vcmp.eq.s32.totalorder %v360, 1
      %v363 = vsel %vm361, %v351, 0.0
      %v364 = vsel %vm362, %v350, 0.0
      %365 = vrot.lane.b32.xlu0 %v257, 63
      %v366 = vpop.permute.xlu0 %365
      %367 = vrot.lane.b32.xlu0 %v258, 63
      %v368 = vpop.permute.xlu0 %367
      %vm369 = vcmp.lt.s32.totalorder %v268, 63
      %v370 = vsel %vm369, %v366, %v368
      %v371 = vsel %vm369, %v368, %v366
      %v372 = vsel %vm241, 1, 0
      %v373 = vlaneseq
      %v374 = vshrl.u32 %v373, 7
      %v375 = vsub.s32 0, %v374
      %v376 = vrot.slane %v372, %v375
      %v377 = vlaneseq
      %v378 = vshrl.u32 %v377, 7
      %v379 = vsub.s32 1, %v378
      %v380 = vrot.slane %v372, %v379
      %vm381 = vcmp.eq.s32.totalorder %v376, 1
      %vm382 = vcmp.eq.s32.totalorder %v380, 1
      %v383 = vsel %vm381, %v371, 0.0
      %v384 = vsel %vm382, %v370, 0.0
      %385 = vrot.lane.b32.xlu0 %v257, 57
      %v386 = vpop.permute.xlu0 %385
      %387 = vrot.lane.b32.xlu0 %v258, 57
      %v388 = vpop.permute.xlu0 %387
      %vm389 = vcmp.lt.s32.totalorder %v268, 57
      %v390 = vsel %vm389, %v386, %v388
      %v391 = vsel %vm389, %v388, %v386
      %v392 = vsel %vm243, 1, 0
      %v393 = vlaneseq
      %v394 = vshrl.u32 %v393, 7
      %v395 = vsub.s32 0, %v394
      %v396 = vrot.slane %v392, %v395
      %v397 = vlaneseq
      %v398 = vshrl.u32 %v397, 7
      %v399 = vsub.s32 1, %v398
      %v400 = vrot.slane %v392, %v399
      %vm401 = vcmp.eq.s32.totalorder %v396, 1
      %vm402 = vcmp.eq.s32.totalorder %v400, 1
      %v403 = vsel %vm401, %v391, 0.0
      %v404 = vsel %vm402, %v390, 0.0
      %405 = vrot.lane.b32.xlu0 %v257, 56
      %v406 = vpop.permute.xlu0 %405
      %407 = vrot.lane.b32.xlu0 %v258, 56
      %v408 = vpop.permute.xlu0 %407
      %vm409 = vcmp.lt.s32.totalorder %v268, 56
      %v410 = vsel %vm409, %v406, %v408
      %v411 = vsel %vm409, %v408, %v406
      %v412 = vsel %vm242, 1, 0
      %v413 = vlaneseq
      %v414 = vshrl.u32 %v413, 7
      %v415 = vsub.s32 0, %v414
      %v416 = vrot.slane %v412, %v415
      %v417 = vlaneseq
      %v418 = vshrl.u32 %v417, 7
      %v419 = vsub.s32 1, %v418
      %v420 = vrot.slane %v412, %v419
      %vm421 = vcmp.eq.s32.totalorder %v416, 1
      %vm422 = vcmp.eq.s32.totalorder %v420, 1
      %v423 = vsel %vm421, %v411, 0.0
      %v424 = vsel %vm422, %v410, 0.0
      %425 = vrot.lane.b32.xlu0 %v257, 55
      %v426 = vpop.permute.xlu0 %425
      %427 = vrot.lane.b32.xlu0 %v258, 55
      %v428 = vpop.permute.xlu0 %427
      %vm429 = vcmp.lt.s32.totalorder %v268, 55
      %v430 = vsel %vm429, %v426, %v428
      %v431 = vsel %vm429, %v428, %v426
      %v432 = vsel %vm244, 1, 0
      %v433 = vlaneseq
      %v434 = vshrl.u32 %v433, 7
      %v435 = vsub.s32 0, %v434
      %v436 = vrot.slane %v432, %v435
      %v437 = vlaneseq
      %v438 = vshrl.u32 %v437, 7
      %v439 = vsub.s32 1, %v438
      %v440 = vrot.slane %v432, %v439
      %vm441 = vcmp.eq.s32.totalorder %v436, 1
      %vm442 = vcmp.eq.s32.totalorder %v440, 1
      %v443 = vsel %vm441, %v431, 0.0
      %v444 = vsel %vm442, %v430, 0.0
      %v445 = vpack.c.bf16 %v303, %v283
      %v446 = vpack.c.bf16 %v304, %v284
      %v447 = vpack.c.bf16 %v343, %v323
      %v448 = vpack.c.bf16 %v344, %v324
      %v449 = vpack.c.bf16 %v383, %v363
      %v450 = vpack.c.bf16 %v384, %v364
      %v451 = vpack.c.bf16 %v423, %v403
      %v452 = vpack.c.bf16 %v424, %v404
      %v453 = vpack.c.bf16 %v443, %v443
      %v454 = vpack.c.bf16 %v444, %v444
      %455 = vrot.lane.b32.xlu0 %v257, 9
      %v456 = vpop.permute.xlu0 %455
      %457 = vrot.lane.b32.xlu0 %v258, 9
      %v458 = vpop.permute.xlu0 %457
      %vm459 = vcmp.lt.s32.totalorder %v268, 9
      %v460 = vsel %vm459, %v456, %v458
      %v461 = vsel %vm459, %v458, %v456
      %v462 = vsel %vm245, 1, 0
      %v463 = vlaneseq
      %v464 = vshrl.u32 %v463, 7
      %v465 = vsub.s32 0, %v464
      %v466 = vrot.slane %v462, %v465
      %v467 = vlaneseq
      %v468 = vshrl.u32 %v467, 7
      %v469 = vsub.s32 1, %v468
      %v470 = vrot.slane %v462, %v469
      %vm471 = vcmp.eq.s32.totalorder %v466, 1
      %vm472 = vcmp.eq.s32.totalorder %v470, 1
      %v473 = vsel %vm471, %v461, 0.0
      %v474 = vsel %vm472, %v460, 0.0
      %475 = vrot.lane.b32.xlu0 %v257, 8
      %v476 = vpop.permute.xlu0 %475
      %477 = vrot.lane.b32.xlu0 %v258, 8
      %v478 = vpop.permute.xlu0 %477
      %vm479 = vcmp.lt.s32.totalorder %v268, 8
      %v480 = vsel %vm479, %v476, %v478
      %v481 = vsel %vm479, %v478, %v476
      %v482 = vsel %vm233, 1, 0
      %v483 = vlaneseq
      %v484 = vshrl.u32 %v483, 7
      %v485 = vsub.s32 0, %v484
      %v486 = vrot.slane %v482, %v485
      %v487 = vlaneseq
      %v488 = vshrl.u32 %v487, 7
      %v489 = vsub.s32 1, %v488
      %v490 = vrot.slane %v482, %v489
      %vm491 = vcmp.eq.s32.totalorder %v486, 1
      %vm492 = vcmp.eq.s32.totalorder %v490, 1
      %v493 = vsel %vm491, %v481, 0.0
      %v494 = vsel %vm492, %v480, 0.0
      %495 = vrot.lane.b32.xlu0 %v257, 7
      %v496 = vpop.permute.xlu0 %495
      %497 = vrot.lane.b32.xlu0 %v258, 7
      %v498 = vpop.permute.xlu0 %497
      %vm499 = vcmp.lt.s32.totalorder %v268, 7
      %v500 = vsel %vm499, %v496, %v498
      %v501 = vsel %vm499, %v498, %v496
      %v502 = vsel %vm246, 1, 0
      %v503 = vlaneseq
      %v504 = vshrl.u32 %v503, 7
      %v505 = vsub.s32 0, %v504
      %v506 = vrot.slane %v502, %v505
      %v507 = vlaneseq
      %v508 = vshrl.u32 %v507, 7
      %v509 = vsub.s32 1, %v508
      %v510 = vrot.slane %v502, %v509
      %vm511 = vcmp.eq.s32.totalorder %v506, 1
      %vm512 = vcmp.eq.s32.totalorder %v510, 1
      %v513 = vsel %vm511, %v501, 0.0
      %v514 = vsel %vm512, %v500, 0.0
      %515 = vrot.lane.b32.xlu0 %v257, 1
      %v516 = vpop.permute.xlu0 %515
      %517 = vrot.lane.b32.xlu0 %v258, 1
      %v518 = vpop.permute.xlu0 %517
      %vm519 = vcmp.lt.s32.totalorder %v268, 1
      %v520 = vsel %vm519, %v516, %v518
      %v521 = vsel %vm519, %v518, %v516
      %v522 = vsel %vm235, 1, 0
      %v523 = vlaneseq
      %v524 = vshrl.u32 %v523, 7
      %v525 = vsub.s32 0, %v524
      %v526 = vrot.slane %v522, %v525
      %v527 = vlaneseq
      %v528 = vshrl.u32 %v527, 7
      %v529 = vsub.s32 1, %v528
      %v530 = vrot.slane %v522, %v529
      %vm531 = vcmp.eq.s32.totalorder %v526, 1
      %vm532 = vcmp.eq.s32.totalorder %v530, 1
      %v533 = vsel %vm531, %v521, 0.0
      %v534 = vsel %vm532, %v520, 0.0
      %535 = vrot.lane.b32.xlu0 %v257, 127
      %v536 = vpop.permute.xlu0 %535
      %537 = vrot.lane.b32.xlu0 %v258, 127
      %v538 = vpop.permute.xlu0 %537
      %vm539 = vcmp.lt.s32.totalorder %v268, 127
      %v540 = vsel %vm539, %v536, %v538
      %v541 = vsel %vm539, %v538, %v536
      %v542 = vsel %vm236, 1, 0
      %v543 = vlaneseq
      %v544 = vshrl.u32 %v543, 7
      %v545 = vsub.s32 0, %v544
      %v546 = vrot.slane %v542, %v545
      %v547 = vlaneseq
      %v548 = vshrl.u32 %v547, 7
      %v549 = vsub.s32 1, %v548
      %v550 = vrot.slane %v542, %v549
      %vm551 = vcmp.eq.s32.totalorder %v546, 1
      %vm552 = vcmp.eq.s32.totalorder %v550, 1
      %v553 = vsel %vm551, %v540, 0.0
      %v554 = vsel %vm552, %v541, 0.0
      %555 = vrot.lane.b32.xlu0 %v257, 121
      %v556 = vpop.permute.xlu0 %555
      %557 = vrot.lane.b32.xlu0 %v258, 121
      %v558 = vpop.permute.xlu0 %557
      %vm559 = vcmp.lt.s32.totalorder %v268, 121
      %v560 = vsel %vm559, %v556, %v558
      %v561 = vsel %vm559, %v558, %v556
      %v562 = vsel %vm247, 1, 0
      %v563 = vlaneseq
      %v564 = vshrl.u32 %v563, 7
      %v565 = vsub.s32 0, %v564
      %v566 = vrot.slane %v562, %v565
      %v567 = vlaneseq
      %v568 = vshrl.u32 %v567, 7
      %v569 = vsub.s32 1, %v568
      %v570 = vrot.slane %v562, %v569
      %vm571 = vcmp.eq.s32.totalorder %v566, 1
      %vm572 = vcmp.eq.s32.totalorder %v570, 1
      %v573 = vsel %vm571, %v560, 0.0
      %v574 = vsel %vm572, %v561, 0.0
      %575 = vrot.lane.b32.xlu0 %v257, 120
      %v576 = vpop.permute.xlu0 %575
      %577 = vrot.lane.b32.xlu0 %v258, 120
      %v578 = vpop.permute.xlu0 %577
      %vm579 = vcmp.lt.s32.totalorder %v268, 120
      %v580 = vsel %vm579, %v576, %v578
      %v581 = vsel %vm579, %v578, %v576
      %v582 = vsel %vm234, 1, 0
      %v583 = vlaneseq
      %v584 = vshrl.u32 %v583, 7
      %v585 = vsub.s32 0, %v584
      %v586 = vrot.slane %v582, %v585
      %v587 = vlaneseq
      %v588 = vshrl.u32 %v587, 7
      %v589 = vsub.s32 1, %v588
      %v590 = vrot.slane %v582, %v589
      %vm591 = vcmp.eq.s32.totalorder %v586, 1
      %vm592 = vcmp.eq.s32.totalorder %v590, 1
      %v593 = vsel %vm591, %v580, 0.0
      %v594 = vsel %vm592, %v581, 0.0
      %595 = vrot.lane.b32.xlu0 %v257, 119
      %v596 = vpop.permute.xlu0 %595
      %597 = vrot.lane.b32.xlu0 %v258, 119
      %v598 = vpop.permute.xlu0 %597
      %vm599 = vcmp.lt.s32.totalorder %v268, 119
      %v600 = vsel %vm599, %v596, %v598
      %v601 = vsel %vm599, %v598, %v596
      %v602 = vsel %vm248, 1, 0
      %v603 = vlaneseq
      %v604 = vshrl.u32 %v603, 7
      %v605 = vsub.s32 0, %v604
      %v606 = vrot.slane %v602, %v605
      %v607 = vlaneseq
      %v608 = vshrl.u32 %v607, 7
      %v609 = vsub.s32 1, %v608
      %v610 = vrot.slane %v602, %v609
      %vm611 = vcmp.eq.s32.totalorder %v606, 1
      %vm612 = vcmp.eq.s32.totalorder %v610, 1
      %v613 = vsel %vm611, %v600, 0.0
      %v614 = vsel %vm612, %v601, 0.0
      %v615 = vpack.c.bf16 %v493, %v473
      %v616 = vpack.c.bf16 %v494, %v474
      %v617 = vpack.c.bf16 %v533, %v513
      %v618 = vpack.c.bf16 %v534, %v514
      %v619 = vpack.c.bf16 %v553, %v257
      %v620 = vpack.c.bf16 %v554, %v258
      %v621 = vpack.c.bf16 %v593, %v573
      %v622 = vpack.c.bf16 %v594, %v574
      %v623 = vpack.c.bf16 %v613, %v613
      %v624 = vpack.c.bf16 %v614, %v614
      %vm625 = vcmask 588800
      %v627 = vsel %vm625, %v260, 0
      %vm629 = vcmask 1043456
      %v631 = vsel %vm629, %v623, 0
      %v634 = vsel %vm629, %v624, 0
      %636 = vmatprep.subr.bf16.mxu0 0
      %637 = vmatpush1.bf16.msra.mxu0 0
      %638 = vmatprep.subr.bf16.mxu0 0
      %639 = vmatpush1.bf16.msra.mxu0 0
      %640 = vmatprep.subr.bf16.mxu0 0
      %641 = vmatpush1.bf16.msra.mxu0 0
      %642 = vmatprep.subr.bf16.mxu0 %v634
      %643 = vmatpush1.bf16.msra.mxu0 %v631
      %644 = vmatprep.subr.bf16.mxu0 %v622
      %645 = vmatpush1.bf16.msra.mxu0 %v621
      %646 = vmatprep.subr.bf16.mxu0 %v620
      %647 = vmatpush1.bf16.msra.mxu0 %v619
      %648 = vmatprep.subr.bf16.mxu0 %v618
      %649 = vmatpush1.bf16.msra.mxu0 %v617
      %650 = vmatprep.subr.bf16.mxu0 %v616
      %651 = vmatpush1.bf16.msra.mxu0 %v615
      %652 = vmatprep.subr.bf16.mxu0 0
      %653 = vmatpush2.bf16.msra.mxu0 0
      %654 = vmatprep.subr.bf16.mxu0 0
      %655 = vmatpush2.bf16.msra.mxu0 0
      %656 = vmatprep.subr.bf16.mxu0 0
      %657 = vmatpush2.bf16.msra.mxu0 0
      %658 = vmatprep.subr.bf16.mxu0 0
      %659 = vmatpush2.bf16.msra.mxu0 0
      %660 = vmatprep.subr.bf16.mxu0 0
      %661 = vmatpush2.bf16.msra.mxu0 0
      %662 = vmatprep.subr.bf16.mxu0 0
      %663 = vmatpush2.bf16.msra.mxu0 0
      %664 = vmatprep.subr.bf16.mxu0 0
      %665 = vmatpush2.bf16.msra.mxu0 0
      %666 = vmatprep.subr.bf16.mxu0 0
      %667 = vmatpush2.bf16.msra.mxu0 0
      %668 = vmatprep.mubr.bf16.mxu0 0
      %669 = vmatmul.mubr.bf16.gmra.mxu0 %v627
      %v670 = vpop.f32.mrf.mxu0
      %v671 = vadd.f32 0.0, %v670
      %v672 = vpop.f32.mrf.mxu0
      %v673 = vadd.f32 0.0, %v672
      %v674 = vpop.f32.mrf.mxu0
      %v675 = vpop.f32.mrf.mxu0
      %676 = vdwg.mxu0
      %v678 = vsel %vm625, %v259, 0
      %v681 = vsel %vm629, %v453, 0
      %v684 = vsel %vm629, %v454, 0
      %686 = vmatprep.subr.bf16.mxu0 0
      %687 = vmatpush1.bf16.msra.mxu0 0
      %688 = vmatprep.subr.bf16.mxu0 0
      %689 = vmatpush1.bf16.msra.mxu0 0
      %690 = vmatprep.subr.bf16.mxu0 0
      %691 = vmatpush1.bf16.msra.mxu0 0
      %692 = vmatprep.subr.bf16.mxu0 %v684
      %693 = vmatpush1.bf16.msra.mxu0 %v681
      %694 = vmatprep.subr.bf16.mxu0 %v452
      %695 = vmatpush1.bf16.msra.mxu0 %v451
      %696 = vmatprep.subr.bf16.mxu0 %v450
      %697 = vmatpush1.bf16.msra.mxu0 %v449
      %698 = vmatprep.subr.bf16.mxu0 %v448
      %699 = vmatpush1.bf16.msra.mxu0 %v447
      %700 = vmatprep.subr.bf16.mxu0 %v446
      %701 = vmatpush1.bf16.msra.mxu0 %v445
      %702 = vmatprep.subr.bf16.mxu0 0
      %703 = vmatpush2.bf16.msra.mxu0 0
      %704 = vmatprep.subr.bf16.mxu0 0
      %705 = vmatpush2.bf16.msra.mxu0 0
      %706 = vmatprep.subr.bf16.mxu0 0
      %707 = vmatpush2.bf16.msra.mxu0 0
      %708 = vmatprep.subr.bf16.mxu0 0
      %709 = vmatpush2.bf16.msra.mxu0 0
      %710 = vmatprep.subr.bf16.mxu0 0
      %711 = vmatpush2.bf16.msra.mxu0 0
      %712 = vmatprep.subr.bf16.mxu0 0
      %713 = vmatpush2.bf16.msra.mxu0 0
      %714 = vmatprep.subr.bf16.mxu0 0
      %715 = vmatpush2.bf16.msra.mxu0 0
      %716 = vmatprep.subr.bf16.mxu0 0
      %717 = vmatpush2.bf16.msra.mxu0 0
      %718 = vmatprep.mubr.bf16.mxu0 0
      %719 = vmatmul.mubr.bf16.gmra.mxu0 %v678
      %v720 = vpop.f32.mrf.mxu0
      %v721 = vadd.f32 %v671, %v720
      %v722 = vpop.f32.mrf.mxu0
      %v723 = vadd.f32 %v673, %v722
      %v724 = vpop.f32.mrf.mxu0
      %v725 = vpop.f32.mrf.mxu0
      %726 = vdwg.mxu0
      %v727 = vsel %vm250, 1, 0
      %v728 = vlaneseq
      %v729 = vshrl.u32 %v728, 7
      %v730 = vsub.s32 0, %v729
      %v731 = vrot.slane %v727, %v730
      %v732 = vlaneseq
      %v733 = vshrl.u32 %v732, 7
      %v734 = vsub.s32 1, %v733
      %v735 = vrot.slane %v727, %v734
      %vm736 = vcmp.eq.s32.totalorder %v731, 1
      %vm737 = vcmp.eq.s32.totalorder %v735, 1
      %v738 = vsel %vm736, %v270, 0.0
      %v739 = vsel %vm737, %v271, 0.0
      %v740 = vsel %vm249, 1, 0
      %v741 = vlaneseq
      %v742 = vshrl.u32 %v741, 7
      %v743 = vsub.s32 0, %v742
      %v744 = vrot.slane %v740, %v743
      %v745 = vlaneseq
      %v746 = vshrl.u32 %v745, 7
      %v747 = vsub.s32 1, %v746
      %v748 = vrot.slane %v740, %v747
      %vm749 = vcmp.eq.s32.totalorder %v744, 1
      %vm750 = vcmp.eq.s32.totalorder %v748, 1
      %v751 = vsel %vm749, %v290, 0.0
      %v752 = vsel %vm750, %v291, 0.0
      %v753 = vsel %vm251, 1, 0
      %v754 = vlaneseq
      %v755 = vshrl.u32 %v754, 7
      %v756 = vsub.s32 0, %v755
      %v757 = vrot.slane %v753, %v756
      %v758 = vlaneseq
      %v759 = vshrl.u32 %v758, 7
      %v760 = vsub.s32 1, %v759
      %v761 = vrot.slane %v753, %v760
      %vm762 = vcmp.eq.s32.totalorder %v757, 1
      %vm763 = vcmp.eq.s32.totalorder %v761, 1
      %v764 = vsel %vm762, %v310, 0.0
      %v765 = vsel %vm763, %v311, 0.0
      %v766 = vsel %vm252, 1, 0
      %v767 = vlaneseq
      %v768 = vshrl.u32 %v767, 7
      %v769 = vsub.s32 0, %v768
      %v770 = vrot.slane %v766, %v769
      %v771 = vlaneseq
      %v772 = vshrl.u32 %v771, 7
      %v773 = vsub.s32 1, %v772
      %v774 = vrot.slane %v766, %v773
      %vm775 = vcmp.eq.s32.totalorder %v770, 1
      %vm776 = vcmp.eq.s32.totalorder %v774, 1
      %v777 = vsel %vm775, %v330, 0.0
      %v778 = vsel %vm776, %v331, 0.0
      %v779 = vsel %vm232, 1, 0
      %v780 = vlaneseq
      %v781 = vshrl.u32 %v780, 7
      %v782 = vsub.s32 0, %v781
      %v783 = vrot.slane %v779, %v782
      %v784 = vlaneseq
      %v785 = vshrl.u32 %v784, 7
      %v786 = vsub.s32 1, %v785
      %v787 = vrot.slane %v779, %v786
      %vm788 = vcmp.eq.s32.totalorder %v783, 1
      %vm789 = vcmp.eq.s32.totalorder %v787, 1
      %v790 = vsel %vm788, %v350, 0.0
      %v791 = vsel %vm789, %v351, 0.0
      %v792 = vsel %vm253, 1, 0
      %v793 = vlaneseq
      %v794 = vshrl.u32 %v793, 7
      %v795 = vsub.s32 0, %v794
      %v796 = vrot.slane %v792, %v795
      %v797 = vlaneseq
      %v798 = vshrl.u32 %v797, 7
      %v799 = vsub.s32 1, %v798
      %v800 = vrot.slane %v792, %v799
      %vm801 = vcmp.eq.s32.totalorder %v796, 1
      %vm802 = vcmp.eq.s32.totalorder %v800, 1
      %v803 = vsel %vm801, %v370, 0.0
      %v804 = vsel %vm802, %v371, 0.0
      %v805 = vsel %vm255, 1, 0
      %v806 = vlaneseq
      %v807 = vshrl.u32 %v806, 7
      %v808 = vsub.s32 0, %v807
      %v809 = vrot.slane %v805, %v808
      %v810 = vlaneseq
      %v811 = vshrl.u32 %v810, 7
      %v812 = vsub.s32 1, %v811
      %v813 = vrot.slane %v805, %v812
      %vm814 = vcmp.eq.s32.totalorder %v809, 1
      %vm815 = vcmp.eq.s32.totalorder %v813, 1
      %v816 = vsel %vm814, %v390, 0.0
      %v817 = vsel %vm815, %v391, 0.0
      %v818 = vsel %vm254, 1, 0
      %v819 = vlaneseq
      %v820 = vshrl.u32 %v819, 7
      %v821 = vsub.s32 0, %v820
      %v822 = vrot.slane %v818, %v821
      %v823 = vlaneseq
      %v824 = vshrl.u32 %v823, 7
      %v825 = vsub.s32 1, %v824
      %v826 = vrot.slane %v818, %v825
      %vm827 = vcmp.eq.s32.totalorder %v822, 1
      %vm828 = vcmp.eq.s32.totalorder %v826, 1
      %v829 = vsel %vm827, %v410, 0.0
      %v830 = vsel %vm828, %v411, 0.0
      %v831 = vsel %vm256, 1, 0
      %v832 = vlaneseq
      %v833 = vshrl.u32 %v832, 7
      %v834 = vsub.s32 0, %v833
      %v835 = vrot.slane %v831, %v834
      %v836 = vlaneseq
      %v837 = vshrl.u32 %v836, 7
      %v838 = vsub.s32 1, %v837
      %v839 = vrot.slane %v831, %v838
      %vm840 = vcmp.eq.s32.totalorder %v835, 1
      %vm841 = vcmp.eq.s32.totalorder %v839, 1
      %v842 = vsel %vm840, %v430, 0.0
      %v843 = vsel %vm841, %v431, 0.0
      %v844 = vpack.c.bf16 %v751, %v738
      %v845 = vpack.c.bf16 %v752, %v739
      %v846 = vpack.c.bf16 %v777, %v764
      %v847 = vpack.c.bf16 %v778, %v765
      %v848 = vpack.c.bf16 %v803, %v790
      %v849 = vpack.c.bf16 %v804, %v791
      %v850 = vpack.c.bf16 %v829, %v816
      %v851 = vpack.c.bf16 %v830, %v817
      %v852 = vpack.c.bf16 %v842, %v842
      %v853 = vpack.c.bf16 %v843, %v843
      %v855 = vsel %vm625, %v261, 0
      %v858 = vsel %vm629, %v852, 0
      %v861 = vsel %vm629, %v853, 0
      %863 = vmatprep.subr.bf16.mxu0 0
      %864 = vmatpush1.bf16.msra.mxu0 0
      %865 = vmatprep.subr.bf16.mxu0 0
      %866 = vmatpush1.bf16.msra.mxu0 0
      %867 = vmatprep.subr.bf16.mxu0 0
      %868 = vmatpush1.bf16.msra.mxu0 0
      %869 = vmatprep.subr.bf16.mxu0 %v861
      %870 = vmatpush1.bf16.msra.mxu0 %v858
      %871 = vmatprep.subr.bf16.mxu0 %v851
      %872 = vmatpush1.bf16.msra.mxu0 %v850
      %873 = vmatprep.subr.bf16.mxu0 %v849
      %874 = vmatpush1.bf16.msra.mxu0 %v848
      %875 = vmatprep.subr.bf16.mxu0 %v847
      %876 = vmatpush1.bf16.msra.mxu0 %v846
      %877 = vmatprep.subr.bf16.mxu0 %v845
      %878 = vmatpush1.bf16.msra.mxu0 %v844
      %879 = vmatprep.subr.bf16.mxu0 0
      %880 = vmatpush2.bf16.msra.mxu0 0
      %881 = vmatprep.subr.bf16.mxu0 0
      %882 = vmatpush2.bf16.msra.mxu0 0
      %883 = vmatprep.subr.bf16.mxu0 0
      %884 = vmatpush2.bf16.msra.mxu0 0
      %885 = vmatprep.subr.bf16.mxu0 0
      %886 = vmatpush2.bf16.msra.mxu0 0
      %887 = vmatprep.subr.bf16.mxu0 0
      %888 = vmatpush2.bf16.msra.mxu0 0
      %889 = vmatprep.subr.bf16.mxu0 0
      %890 = vmatpush2.bf16.msra.mxu0 0
      %891 = vmatprep.subr.bf16.mxu0 0
      %892 = vmatpush2.bf16.msra.mxu0 0
      %893 = vmatprep.subr.bf16.mxu0 0
      %894 = vmatpush2.bf16.msra.mxu0 0
      %895 = vmatprep.mubr.bf16.mxu0 0
      %896 = vmatmul.mubr.bf16.gmra.mxu0 %v855
      %v897 = vpop.f32.mrf.mxu0
      %v898 = vadd.f32 0.0, %v897
      %v899 = vpop.f32.mrf.mxu0
      %v900 = vadd.f32 0.0, %v899
      %v901 = vpop.f32.mrf.mxu0
      %v902 = vpop.f32.mrf.mxu0
      %903 = vdwg.mxu0
      %v904 = vadd.f32 %v721, %v898
      %v905 = vadd.f32 %v723, %v900
      %907 = vset.pattern.permute.xlu0 0
      %908 = vperm.xlu0 %907, %v262
      %v909 = vpop.permute.xlu0 %908
      %v911 = vadd.f32 %v904, %v909
      %v912 = vadd.f32 %v905, %v909
      %v913 = vmax.f32 %v911, 0.0
      %v914 = vmax.f32 %v912, 0.0
      %v915 = vld [vmem:[%s3] sm:$0xf]
      %v916 = vld [vmem:[%s3 + $0x4] sm:$0xf]
      %v917 = vld [vmem:[%s3 + $0x8] sm:$0xf]
      %s918 = scalar_lea.vmem %s4, 8
      %v919 = vld [vmem:[%s918] sm:$0xff]
      %920 = vrot.lane.b32.xlu0 %v913, 73
      %v921 = vpop.permute.xlu0 %920
      %922 = vrot.lane.b32.xlu0 %v914, 73
      %v923 = vpop.permute.xlu0 %922
      %v924 = vsel %vm269, %v921, %v923
      %v925 = vsel %vm269, %v923, %v921
      %v926 = vsel %vm281, %v925, 0.0
      %v927 = vsel %vm282, %v924, 0.0
      %928 = vrot.lane.b32.xlu0 %v913, 72
      %v929 = vpop.permute.xlu0 %928
      %930 = vrot.lane.b32.xlu0 %v914, 72
      %v931 = vpop.permute.xlu0 %930
      %v932 = vsel %vm289, %v929, %v931
      %v933 = vsel %vm289, %v931, %v929
      %v934 = vsel %vm301, %v933, 0.0
      %v935 = vsel %vm302, %v932, 0.0
      %936 = vrot.lane.b32.xlu0 %v913, 71
      %v937 = vpop.permute.xlu0 %936
      %938 = vrot.lane.b32.xlu0 %v914, 71
      %v939 = vpop.permute.xlu0 %938
      %v940 = vsel %vm309, %v937, %v939
      %v941 = vsel %vm309, %v939, %v937
      %v942 = vsel %vm321, %v941, 0.0
      %v943 = vsel %vm322, %v940, 0.0
      %944 = vrot.lane.b32.xlu0 %v913, 65
      %v945 = vpop.permute.xlu0 %944
      %946 = vrot.lane.b32.xlu0 %v914, 65
      %v947 = vpop.permute.xlu0 %946
      %v948 = vsel %vm329, %v945, %v947
      %v949 = vsel %vm329, %v947, %v945
      %v950 = vsel %vm341, %v949, 0.0
      %v951 = vsel %vm342, %v948, 0.0
      %952 = vrot.lane.b32.xlu0 %v913, 64
      %v953 = vpop.permute.xlu0 %952
      %954 = vrot.lane.b32.xlu0 %v914, 64
      %v955 = vpop.permute.xlu0 %954
      %v956 = vsel %vm349, %v953, %v955
      %v957 = vsel %vm349, %v955, %v953
      %v958 = vsel %vm361, %v957, 0.0
      %v959 = vsel %vm362, %v956, 0.0
      %960 = vrot.lane.b32.xlu0 %v913, 63
      %v961 = vpop.permute.xlu0 %960
      %962 = vrot.lane.b32.xlu0 %v914, 63
      %v963 = vpop.permute.xlu0 %962
      %v964 = vsel %vm369, %v961, %v963
      %v965 = vsel %vm369, %v963, %v961
      %v966 = vsel %vm381, %v965, 0.0
      %v967 = vsel %vm382, %v964, 0.0
      %968 = vrot.lane.b32.xlu0 %v913, 57
      %v969 = vpop.permute.xlu0 %968
      %970 = vrot.lane.b32.xlu0 %v914, 57
      %v971 = vpop.permute.xlu0 %970
      %v972 = vsel %vm389, %v969, %v971
      %v973 = vsel %vm389, %v971, %v969
      %v974 = vsel %vm401, %v973, 0.0
      %v975 = vsel %vm402, %v972, 0.0
      %976 = vrot.lane.b32.xlu0 %v913, 56
      %v977 = vpop.permute.xlu0 %976
      %978 = vrot.lane.b32.xlu0 %v914, 56
      %v979 = vpop.permute.xlu0 %978
      %v980 = vsel %vm409, %v977, %v979
      %v981 = vsel %vm409, %v979, %v977
      %v982 = vsel %vm421, %v981, 0.0
      %v983 = vsel %vm422, %v980, 0.0
      %984 = vrot.lane.b32.xlu0 %v913, 55
      %v985 = vpop.permute.xlu0 %984
      %986 = vrot.lane.b32.xlu0 %v914, 55
      %v987 = vpop.permute.xlu0 %986
      %v988 = vsel %vm429, %v985, %v987
      %v989 = vsel %vm429, %v987, %v985
      %v990 = vsel %vm441, %v989, 0.0
      %v991 = vsel %vm442, %v988, 0.0
      %v992 = vpack.c.bf16 %v934, %v926
      %v993 = vpack.c.bf16 %v935, %v927
      %v994 = vpack.c.bf16 %v950, %v942
      %v995 = vpack.c.bf16 %v951, %v943
      %v996 = vpack.c.bf16 %v966, %v958
      %v997 = vpack.c.bf16 %v967, %v959
      %v998 = vpack.c.bf16 %v982, %v974
      %v999 = vpack.c.bf16 %v983, %v975
      %v1000 = vpack.c.bf16 %v990, %v990
      %v1001 = vpack.c.bf16 %v991, %v991
      %1002 = vrot.lane.b32.xlu0 %v913, 9
      %v1003 = vpop.permute.xlu0 %1002
      %1004 = vrot.lane.b32.xlu0 %v914, 9
      %v1005 = vpop.permute.xlu0 %1004
      %v1006 = vsel %vm459, %v1003, %v1005
      %v1007 = vsel %vm459, %v1005, %v1003
      %v1008 = vsel %vm471, %v1007, 0.0
      %v1009 = vsel %vm472, %v1006, 0.0
      %1010 = vrot.lane.b32.xlu0 %v913, 8
      %v1011 = vpop.permute.xlu0 %1010
      %1012 = vrot.lane.b32.xlu0 %v914, 8
      %v1013 = vpop.permute.xlu0 %1012
      %v1014 = vsel %vm479, %v1011, %v1013
      %v1015 = vsel %vm479, %v1013, %v1011
      %v1016 = vsel %vm491, %v1015, 0.0
      %v1017 = vsel %vm492, %v1014, 0.0
      %1018 = vrot.lane.b32.xlu0 %v913, 7
      %v1019 = vpop.permute.xlu0 %1018
      %1020 = vrot.lane.b32.xlu0 %v914, 7
      %v1021 = vpop.permute.xlu0 %1020
      %v1022 = vsel %vm499, %v1019, %v1021
      %v1023 = vsel %vm499, %v1021, %v1019
      %v1024 = vsel %vm511, %v1023, 0.0
      %v1025 = vsel %vm512, %v1022, 0.0
      %1026 = vrot.lane.b32.xlu0 %v913, 1
      %v1027 = vpop.permute.xlu0 %1026
      %1028 = vrot.lane.b32.xlu0 %v914, 1
      %v1029 = vpop.permute.xlu0 %1028
      %v1030 = vsel %vm519, %v1027, %v1029
      %v1031 = vsel %vm519, %v1029, %v1027
      %v1032 = vsel %vm531, %v1031, 0.0
      %v1033 = vsel %vm532, %v1030, 0.0
      %1034 = vrot.lane.b32.xlu0 %v913, 127
      %v1035 = vpop.permute.xlu0 %1034
      %1036 = vrot.lane.b32.xlu0 %v914, 127
      %v1037 = vpop.permute.xlu0 %1036
      %v1038 = vsel %vm539, %v1035, %v1037
      %v1039 = vsel %vm539, %v1037, %v1035
      %v1040 = vsel %vm551, %v1038, 0.0
      %v1041 = vsel %vm552, %v1039, 0.0
      %1042 = vrot.lane.b32.xlu0 %v913, 121
      %v1043 = vpop.permute.xlu0 %1042
      %1044 = vrot.lane.b32.xlu0 %v914, 121
      %v1045 = vpop.permute.xlu0 %1044
      %v1046 = vsel %vm559, %v1043, %v1045
      %v1047 = vsel %vm559, %v1045, %v1043
      %v1048 = vsel %vm571, %v1046, 0.0
      %v1049 = vsel %vm572, %v1047, 0.0
      %1050 = vrot.lane.b32.xlu0 %v913, 120
      %v1051 = vpop.permute.xlu0 %1050
      %1052 = vrot.lane.b32.xlu0 %v914, 120
      %v1053 = vpop.permute.xlu0 %1052
      %v1054 = vsel %vm579, %v1051, %v1053
      %v1055 = vsel %vm579, %v1053, %v1051
      %v1056 = vsel %vm591, %v1054, 0.0
      %v1057 = vsel %vm592, %v1055, 0.0
      %1058 = vrot.lane.b32.xlu0 %v913, 119
      %v1059 = vpop.permute.xlu0 %1058
      %1060 = vrot.lane.b32.xlu0 %v914, 119
      %v1061 = vpop.permute.xlu0 %1060
      %v1062 = vsel %vm599, %v1059, %v1061
      %v1063 = vsel %vm599, %v1061, %v1059
      %v1064 = vsel %vm611, %v1062, 0.0
      %v1065 = vsel %vm612, %v1063, 0.0
      %v1066 = vpack.c.bf16 %v1016, %v1008
      %v1067 = vpack.c.bf16 %v1017, %v1009
      %v1068 = vpack.c.bf16 %v1032, %v1024
      %v1069 = vpack.c.bf16 %v1033, %v1025
      %v1070 = vpack.c.bf16 %v1040, %v913
      %v1071 = vpack.c.bf16 %v1041, %v914
      %v1072 = vpack.c.bf16 %v1056, %v1048
      %v1073 = vpack.c.bf16 %v1057, %v1049
      %v1074 = vpack.c.bf16 %v1064, %v1064
      %v1075 = vpack.c.bf16 %v1065, %v1065
      %v1077 = vsel %vm625, %v916, 0
      %v1080 = vsel %vm629, %v1074, 0
      %v1083 = vsel %vm629, %v1075, 0
      %1085 = vmatprep.subr.bf16.mxu0 0
      %1086 = vmatpush1.bf16.msra.mxu0 0
      %1087 = vmatprep.subr.bf16.mxu0 0
      %1088 = vmatpush1.bf16.msra.mxu0 0
      %1089 = vmatprep.subr.bf16.mxu0 0
      %1090 = vmatpush1.bf16.msra.mxu0 0
      %1091 = vmatprep.subr.bf16.mxu0 %v1083
      %1092 = vmatpush1.bf16.msra.mxu0 %v1080
      %1093 = vmatprep.subr.bf16.mxu0 %v1073
      %1094 = vmatpush1.bf16.msra.mxu0 %v1072
      %1095 = vmatprep.subr.bf16.mxu0 %v1071
      %1096 = vmatpush1.bf16.msra.mxu0 %v1070
      %1097 = vmatprep.subr.bf16.mxu0 %v1069
      %1098 = vmatpush1.bf16.msra.mxu0 %v1068
      %1099 = vmatprep.subr.bf16.mxu0 %v1067
      %1100 = vmatpush1.bf16.msra.mxu0 %v1066
      %1101 = vmatprep.subr.bf16.mxu0 0
      %1102 = vmatpush2.bf16.msra.mxu0 0
      %1103 = vmatprep.subr.bf16.mxu0 0
      %1104 = vmatpush2.bf16.msra.mxu0 0
      %1105 = vmatprep.subr.bf16.mxu0 0
      %1106 = vmatpush2.bf16.msra.mxu0 0
      %1107 = vmatprep.subr.bf16.mxu0 0
      %1108 = vmatpush2.bf16.msra.mxu0 0
      %1109 = vmatprep.subr.bf16.mxu0 0
      %1110 = vmatpush2.bf16.msra.mxu0 0
      %1111 = vmatprep.subr.bf16.mxu0 0
      %1112 = vmatpush2.bf16.msra.mxu0 0
      %1113 = vmatprep.subr.bf16.mxu0 0
      %1114 = vmatpush2.bf16.msra.mxu0 0
      %1115 = vmatprep.subr.bf16.mxu0 0
      %1116 = vmatpush2.bf16.msra.mxu0 0
      %1117 = vmatprep.mubr.bf16.mxu0 0
      %1118 = vmatmul.mubr.bf16.gmra.mxu0 %v1077
      %v1119 = vpop.f32.mrf.mxu0
      %v1120 = vadd.f32 0.0, %v1119
      %v1121 = vpop.f32.mrf.mxu0
      %v1122 = vadd.f32 0.0, %v1121
      %v1123 = vpop.f32.mrf.mxu0
      %v1124 = vpop.f32.mrf.mxu0
      %1125 = vdwg.mxu0
      %v1127 = vsel %vm625, %v915, 0
      %v1130 = vsel %vm629, %v1000, 0
      %v1133 = vsel %vm629, %v1001, 0
      %1135 = vmatprep.subr.bf16.mxu0 0
      %1136 = vmatpush1.bf16.msra.mxu0 0
      %1137 = vmatprep.subr.bf16.mxu0 0
      %1138 = vmatpush1.bf16.msra.mxu0 0
      %1139 = vmatprep.subr.bf16.mxu0 0
      %1140 = vmatpush1.bf16.msra.mxu0 0
      %1141 = vmatprep.subr.bf16.mxu0 %v1133
      %1142 = vmatpush1.bf16.msra.mxu0 %v1130
      %1143 = vmatprep.subr.bf16.mxu0 %v999
      %1144 = vmatpush1.bf16.msra.mxu0 %v998
      %1145 = vmatprep.subr.bf16.mxu0 %v997
      %1146 = vmatpush1.bf16.msra.mxu0 %v996
      %1147 = vmatprep.subr.bf16.mxu0 %v995
      %1148 = vmatpush1.bf16.msra.mxu0 %v994
      %1149 = vmatprep.subr.bf16.mxu0 %v993
      %1150 = vmatpush1.bf16.msra.mxu0 %v992
      %1151 = vmatprep.subr.bf16.mxu0 0
      %1152 = vmatpush2.bf16.msra.mxu0 0
      %1153 = vmatprep.subr.bf16.mxu0 0
      %1154 = vmatpush2.bf16.msra.mxu0 0
      %1155 = vmatprep.subr.bf16.mxu0 0
      %1156 = vmatpush2.bf16.msra.mxu0 0
      %1157 = vmatprep.subr.bf16.mxu0 0
      %1158 = vmatpush2.bf16.msra.mxu0 0
      %1159 = vmatprep.subr.bf16.mxu0 0
      %1160 = vmatpush2.bf16.msra.mxu0 0
      %1161 = vmatprep.subr.bf16.mxu0 0
      %1162 = vmatpush2.bf16.msra.mxu0 0
      %1163 = vmatprep.subr.bf16.mxu0 0
      %1164 = vmatpush2.bf16.msra.mxu0 0
      %1165 = vmatprep.subr.bf16.mxu0 0
      %1166 = vmatpush2.bf16.msra.mxu0 0
      %1167 = vmatprep.mubr.bf16.mxu0 0
      %1168 = vmatmul.mubr.bf16.gmra.mxu0 %v1127
      %v1169 = vpop.f32.mrf.mxu0
      %v1170 = vadd.f32 %v1120, %v1169
      %v1171 = vpop.f32.mrf.mxu0
      %v1172 = vadd.f32 %v1122, %v1171
      %v1173 = vpop.f32.mrf.mxu0
      %v1174 = vpop.f32.mrf.mxu0
      %1175 = vdwg.mxu0
      %v1176 = vsel %vm736, %v924, 0.0
      %v1177 = vsel %vm737, %v925, 0.0
      %v1178 = vsel %vm749, %v932, 0.0
      %v1179 = vsel %vm750, %v933, 0.0
      %v1180 = vsel %vm762, %v940, 0.0
      %v1181 = vsel %vm763, %v941, 0.0
      %v1182 = vsel %vm775, %v948, 0.0
      %v1183 = vsel %vm776, %v949, 0.0
      %v1184 = vsel %vm788, %v956, 0.0
      %v1185 = vsel %vm789, %v957, 0.0
      %v1186 = vsel %vm801, %v964, 0.0
      %v1187 = vsel %vm802, %v965, 0.0
      %v1188 = vsel %vm814, %v972, 0.0
      %v1189 = vsel %vm815, %v973, 0.0
      %v1190 = vsel %vm827, %v980, 0.0
      %v1191 = vsel %vm828, %v981, 0.0
      %v1192 = vsel %vm840, %v988, 0.0
      %v1193 = vsel %vm841, %v989, 0.0
      %v1194 = vpack.c.bf16 %v1178, %v1176
      %v1195 = vpack.c.bf16 %v1179, %v1177
      %v1196 = vpack.c.bf16 %v1182, %v1180
      %v1197 = vpack.c.bf16 %v1183, %v1181
      %v1198 = vpack.c.bf16 %v1186, %v1184
      %v1199 = vpack.c.bf16 %v1187, %v1185
      %v1200 = vpack.c.bf16 %v1190, %v1188
      %v1201 = vpack.c.bf16 %v1191, %v1189
      %v1202 = vpack.c.bf16 %v1192, %v1192
      %v1203 = vpack.c.bf16 %v1193, %v1193
      %v1205 = vsel %vm625, %v917, 0
      %v1208 = vsel %vm629, %v1202, 0
      %v1211 = vsel %vm629, %v1203, 0
      %1213 = vmatprep.subr.bf16.mxu0 0
      %1214 = vmatpush1.bf16.msra.mxu0 0
      %1215 = vmatprep.subr.bf16.mxu0 0
      %1216 = vmatpush1.bf16.msra.mxu0 0
      %1217 = vmatprep.subr.bf16.mxu0 0
      %1218 = vmatpush1.bf16.msra.mxu0 0
      %1219 = vmatprep.subr.bf16.mxu0 %v1211
      %1220 = vmatpush1.bf16.msra.mxu0 %v1208
      %1221 = vmatprep.subr.bf16.mxu0 %v1201
      %1222 = vmatpush1.bf16.msra.mxu0 %v1200
      %1223 = vmatprep.subr.bf16.mxu0 %v1199
      %1224 = vmatpush1.bf16.msra.mxu0 %v1198
      %1225 = vmatprep.subr.bf16.mxu0 %v1197
      %1226 = vmatpush1.bf16.msra.mxu0 %v1196
      %1227 = vmatprep.subr.bf16.mxu0 %v1195
      %1228 = vmatpush1.bf16.msra.mxu0 %v1194
      %1229 = vmatprep.subr.bf16.mxu0 0
      %1230 = vmatpush2.bf16.msra.mxu0 0
      %1231 = vmatprep.subr.bf16.mxu0 0
      %1232 = vmatpush2.bf16.msra.mxu0 0
      %1233 = vmatprep.subr.bf16.mxu0 0
      %1234 = vmatpush2.bf16.msra.mxu0 0
      %1235 = vmatprep.subr.bf16.mxu0 0
      %1236 = vmatpush2.bf16.msra.mxu0 0
      %1237 = vmatprep.subr.bf16.mxu0 0
      %1238 = vmatpush2.bf16.msra.mxu0 0
      %1239 = vmatprep.subr.bf16.mxu0 0
      %1240 = vmatpush2.bf16.msra.mxu0 0
      %1241 = vmatprep.subr.bf16.mxu0 0
      %1242 = vmatpush2.bf16.msra.mxu0 0
      %1243 = vmatprep.subr.bf16.mxu0 0
      %1244 = vmatpush2.bf16.msra.mxu0 0
      %1245 = vmatprep.mubr.bf16.mxu0 0
      %1246 = vmatmul.mubr.bf16.gmra.mxu0 %v1205
      %v1247 = vpop.f32.mrf.mxu0
      %v1248 = vadd.f32 0.0, %v1247
      %v1249 = vpop.f32.mrf.mxu0
      %v1250 = vadd.f32 0.0, %v1249
      %v1251 = vpop.f32.mrf.mxu0
      %v1252 = vpop.f32.mrf.mxu0
      %1253 = vdwg.mxu0
      %v1254 = vadd.f32 %v1170, %v1248
      %v1255 = vadd.f32 %v1172, %v1250
      %1257 = vset.pattern.permute.xlu0 0
      %1258 = vperm.xlu0 %1257, %v919
      %v1259 = vpop.permute.xlu0 %1258
      %v1261 = vadd.f32 %v1254, %v1259
      %v1262 = vadd.f32 %v1255, %v1259
      %v1263 = vmax.f32 %v1261, 0.0
      %v1264 = vmax.f32 %v1262, 0.0
      %s1265 = scalar_lea.vmem %s3, 12
      %v1266 = vld [vmem:[%s1265] sm:$0xf]
      %v1267 = vld [vmem:[%s1265 + $0x4] sm:$0xf]
      %v1268 = vld [vmem:[%s1265 + $0x8] sm:$0xf]
      %s1269 = scalar_lea.vmem %s4, 16
      %v1270 = vld [vmem:[%s1269] sm:$0xff]
      %1271 = vrot.lane.b32.xlu0 %v1263, 73
      %v1272 = vpop.permute.xlu0 %1271
      %1273 = vrot.lane.b32.xlu0 %v1264, 73
      %v1274 = vpop.permute.xlu0 %1273
      %v1275 = vsel %vm269, %v1272, %v1274
      %v1276 = vsel %vm269, %v1274, %v1272
      %v1277 = vsel %vm281, %v1276, 0.0
      %v1278 = vsel %vm282, %v1275, 0.0
      %1279 = vrot.lane.b32.xlu0 %v1263, 72
      %v1280 = vpop.permute.xlu0 %1279
      %1281 = vrot.lane.b32.xlu0 %v1264, 72
      %v1282 = vpop.permute.xlu0 %1281
      %v1283 = vsel %vm289, %v1280, %v1282
      %v1284 = vsel %vm289, %v1282, %v1280
      %v1285 = vsel %vm301, %v1284, 0.0
      %v1286 = vsel %vm302, %v1283, 0.0
      %1287 = vrot.lane.b32.xlu0 %v1263, 71
      %v1288 = vpop.permute.xlu0 %1287
      %1289 = vrot.lane.b32.xlu0 %v1264, 71
      %v1290 = vpop.permute.xlu0 %1289
      %v1291 = vsel %vm309, %v1288, %v1290
      %v1292 = vsel %vm309, %v1290, %v1288
      %v1293 = vsel %vm321, %v1292, 0.0
      %v1294 = vsel %vm322, %v1291, 0.0
      %1295 = vrot.lane.b32.xlu0 %v1263, 65
      %v1296 = vpop.permute.xlu0 %1295
      %1297 = vrot.lane.b32.xlu0 %v1264, 65
      %v1298 = vpop.permute.xlu0 %1297
      %v1299 = vsel %vm329, %v1296, %v1298
      %v1300 = vsel %vm329, %v1298, %v1296
      %v1301 = vsel %vm341, %v1300, 0.0
      %v1302 = vsel %vm342, %v1299, 0.0
      %1303 = vrot.lane.b32.xlu0 %v1263, 64
      %v1304 = vpop.permute.xlu0 %1303
      %1305 = vrot.lane.b32.xlu0 %v1264, 64
      %v1306 = vpop.permute.xlu0 %1305
      %v1307 = vsel %vm349, %v1304, %v1306
      %v1308 = vsel %vm349, %v1306, %v1304
      %v1309 = vsel %vm361, %v1308, 0.0
      %v1310 = vsel %vm362, %v1307, 0.0
      %1311 = vrot.lane.b32.xlu0 %v1263, 63
      %v1312 = vpop.permute.xlu0 %1311
      %1313 = vrot.lane.b32.xlu0 %v1264, 63
      %v1314 = vpop.permute.xlu0 %1313
      %v1315 = vsel %vm369, %v1312, %v1314
      %v1316 = vsel %vm369, %v1314, %v1312
      %v1317 = vsel %vm381, %v1316, 0.0
      %v1318 = vsel %vm382, %v1315, 0.0
      %1319 = vrot.lane.b32.xlu0 %v1263, 57
      %v1320 = vpop.permute.xlu0 %1319
      %1321 = vrot.lane.b32.xlu0 %v1264, 57
      %v1322 = vpop.permute.xlu0 %1321
      %v1323 = vsel %vm389, %v1320, %v1322
      %v1324 = vsel %vm389, %v1322, %v1320
      %v1325 = vsel %vm401, %v1324, 0.0
      %v1326 = vsel %vm402, %v1323, 0.0
      %1327 = vrot.lane.b32.xlu0 %v1263, 56
      %v1328 = vpop.permute.xlu0 %1327
      %1329 = vrot.lane.b32.xlu0 %v1264, 56
      %v1330 = vpop.permute.xlu0 %1329
      %v1331 = vsel %vm409, %v1328, %v1330
      %v1332 = vsel %vm409, %v1330, %v1328
      %v1333 = vsel %vm421, %v1332, 0.0
      %v1334 = vsel %vm422, %v1331, 0.0
      %1335 = vrot.lane.b32.xlu0 %v1263, 55
      %v1336 = vpop.permute.xlu0 %1335
      %1337 = vrot.lane.b32.xlu0 %v1264, 55
      %v1338 = vpop.permute.xlu0 %1337
      %v1339 = vsel %vm429, %v1336, %v1338
      %v1340 = vsel %vm429, %v1338, %v1336
      %v1341 = vsel %vm441, %v1340, 0.0
      %v1342 = vsel %vm442, %v1339, 0.0
      %v1343 = vpack.c.bf16 %v1285, %v1277
      %v1344 = vpack.c.bf16 %v1286, %v1278
      %v1345 = vpack.c.bf16 %v1301, %v1293
      %v1346 = vpack.c.bf16 %v1302, %v1294
      %v1347 = vpack.c.bf16 %v1317, %v1309
      %v1348 = vpack.c.bf16 %v1318, %v1310
      %v1349 = vpack.c.bf16 %v1333, %v1325
      %v1350 = vpack.c.bf16 %v1334, %v1326
      %v1351 = vpack.c.bf16 %v1341, %v1341
      %v1352 = vpack.c.bf16 %v1342, %v1342
      %1353 = vrot.lane.b32.xlu0 %v1263, 9
      %v1354 = vpop.permute.xlu0 %1353
      %1355 = vrot.lane.b32.xlu0 %v1264, 9
      %v1356 = vpop.permute.xlu0 %1355
      %v1357 = vsel %vm459, %v1354, %v1356
      %v1358 = vsel %vm459, %v1356, %v1354
      %v1359 = vsel %vm471, %v1358, 0.0
      %v1360 = vsel %vm472, %v1357, 0.0
      %1361 = vrot.lane.b32.xlu0 %v1263, 8
      %v1362 = vpop.permute.xlu0 %1361
      %1363 = vrot.lane.b32.xlu0 %v1264, 8
      %v1364 = vpop.permute.xlu0 %1363
      %v1365 = vsel %vm479, %v1362, %v1364
      %v1366 = vsel %vm479, %v1364, %v1362
      %v1367 = vsel %vm491, %v1366, 0.0
      %v1368 = vsel %vm492, %v1365, 0.0
      %1369 = vrot.lane.b32.xlu0 %v1263, 7
      %v1370 = vpop.permute.xlu0 %1369
      %1371 = vrot.lane.b32.xlu0 %v1264, 7
      %v1372 = vpop.permute.xlu0 %1371
      %v1373 = vsel %vm499, %v1370, %v1372
      %v1374 = vsel %vm499, %v1372, %v1370
      %v1375 = vsel %vm511, %v1374, 0.0
      %v1376 = vsel %vm512, %v1373, 0.0
      %1377 = vrot.lane.b32.xlu0 %v1263, 1
      %v1378 = vpop.permute.xlu0 %1377
      %1379 = vrot.lane.b32.xlu0 %v1264, 1
      %v1380 = vpop.permute.xlu0 %1379
      %v1381 = vsel %vm519, %v1378, %v1380
      %v1382 = vsel %vm519, %v1380, %v1378
      %v1383 = vsel %vm531, %v1382, 0.0
      %v1384 = vsel %vm532, %v1381, 0.0
      %1385 = vrot.lane.b32.xlu0 %v1263, 127
      %v1386 = vpop.permute.xlu0 %1385
      %1387 = vrot.lane.b32.xlu0 %v1264, 127
      %v1388 = vpop.permute.xlu0 %1387
      %v1389 = vsel %vm539, %v1386, %v1388
      %v1390 = vsel %vm539, %v1388, %v1386
      %v1391 = vsel %vm551, %v1389, 0.0
      %v1392 = vsel %vm552, %v1390, 0.0
      %1393 = vrot.lane.b32.xlu0 %v1263, 121
      %v1394 = vpop.permute.xlu0 %1393
      %1395 = vrot.lane.b32.xlu0 %v1264, 121
      %v1396 = vpop.permute.xlu0 %1395
      %v1397 = vsel %vm559, %v1394, %v1396
      %v1398 = vsel %vm559, %v1396, %v1394
      %v1399 = vsel %vm571, %v1397, 0.0
      %v1400 = vsel %vm572, %v1398, 0.0
      %1401 = vrot.lane.b32.xlu0 %v1263, 120
      %v1402 = vpop.permute.xlu0 %1401
      %1403 = vrot.lane.b32.xlu0 %v1264, 120
      %v1404 = vpop.permute.xlu0 %1403
      %v1405 = vsel %vm579, %v1402, %v1404
      %v1406 = vsel %vm579, %v1404, %v1402
      %v1407 = vsel %vm591, %v1405, 0.0
      %v1408 = vsel %vm592, %v1406, 0.0
      %1409 = vrot.lane.b32.xlu0 %v1263, 119
      %v1410 = vpop.permute.xlu0 %1409
      %1411 = vrot.lane.b32.xlu0 %v1264, 119
      %v1412 = vpop.permute.xlu0 %1411
      %v1413 = vsel %vm599, %v1410, %v1412
      %v1414 = vsel %vm599, %v1412, %v1410
      %v1415 = vsel %vm611, %v1413, 0.0
      %v1416 = vsel %vm612, %v1414, 0.0
      %v1417 = vpack.c.bf16 %v1367, %v1359
      %v1418 = vpack.c.bf16 %v1368, %v1360
      %v1419 = vpack.c.bf16 %v1383, %v1375
      %v1420 = vpack.c.bf16 %v1384, %v1376
      %v1421 = vpack.c.bf16 %v1391, %v1263
      %v1422 = vpack.c.bf16 %v1392, %v1264
      %v1423 = vpack.c.bf16 %v1407, %v1399
      %v1424 = vpack.c.bf16 %v1408, %v1400
      %v1425 = vpack.c.bf16 %v1415, %v1415
      %v1426 = vpack.c.bf16 %v1416, %v1416
      %v1428 = vsel %vm625, %v1267, 0
      %v1431 = vsel %vm629, %v1425, 0
      %v1434 = vsel %vm629, %v1426, 0
      %1436 = vmatprep.subr.bf16.mxu0 0
      %1437 = vmatpush1.bf16.msra.mxu0 0
      %1438 = vmatprep.subr.bf16.mxu0 0
      %1439 = vmatpush1.bf16.msra.mxu0 0
      %1440 = vmatprep.subr.bf16.mxu0 0
      %1441 = vmatpush1.bf16.msra.mxu0 0
      %1442 = vmatprep.subr.bf16.mxu0 %v1434
      %1443 = vmatpush1.bf16.msra.mxu0 %v1431
      %1444 = vmatprep.subr.bf16.mxu0 %v1424
      %1445 = vmatpush1.bf16.msra.mxu0 %v1423
      %1446 = vmatprep.subr.bf16.mxu0 %v1422
      %1447 = vmatpush1.bf16.msra.mxu0 %v1421
      %1448 = vmatprep.subr.bf16.mxu0 %v1420
      %1449 = vmatpush1.bf16.msra.mxu0 %v1419
      %1450 = vmatprep.subr.bf16.mxu0 %v1418
      %1451 = vmatpush1.bf16.msra.mxu0 %v1417
      %1452 = vmatprep.subr.bf16.mxu0 0
      %1453 = vmatpush2.bf16.msra.mxu0 0
      %1454 = vmatprep.subr.bf16.mxu0 0
      %1455 = vmatpush2.bf16.msra.mxu0 0
      %1456 = vmatprep.subr.bf16.mxu0 0
      %1457 = vmatpush2.bf16.msra.mxu0 0
      %1458 = vmatprep.subr.bf16.mxu0 0
      %1459 = vmatpush2.bf16.msra.mxu0 0
      %1460 = vmatprep.subr.bf16.mxu0 0
      %1461 = vmatpush2.bf16.msra.mxu0 0
      %1462 = vmatprep.subr.bf16.mxu0 0
      %1463 = vmatpush2.bf16.msra.mxu0 0
      %1464 = vmatprep.subr.bf16.mxu0 0
      %1465 = vmatpush2.bf16.msra.mxu0 0
      %1466 = vmatprep.subr.bf16.mxu0 0
      %1467 = vmatpush2.bf16.msra.mxu0 0
      %1468 = vmatprep.mubr.bf16.mxu0 0
      %1469 = vmatmul.mubr.bf16.gmra.mxu0 %v1428
      %v1470 = vpop.f32.mrf.mxu0
      %v1471 = vadd.f32 0.0, %v1470
      %v1472 = vpop.f32.mrf.mxu0
      %v1473 = vadd.f32 0.0, %v1472
      %v1474 = vpop.f32.mrf.mxu0
      %v1475 = vpop.f32.mrf.mxu0
      %1476 = vdwg.mxu0
      %v1478 = vsel %vm625, %v1266, 0
      %v1481 = vsel %vm629, %v1351, 0
      %v1484 = vsel %vm629, %v1352, 0
      %1486 = vmatprep.subr.bf16.mxu0 0
      %1487 = vmatpush1.bf16.msra.mxu0 0
      %1488 = vmatprep.subr.bf16.mxu0 0
      %1489 = vmatpush1.bf16.msra.mxu0 0
      %1490 = vmatprep.subr.bf16.mxu0 0
      %1491 = vmatpush1.bf16.msra.mxu0 0
      %1492 = vmatprep.subr.bf16.mxu0 %v1484
      %1493 = vmatpush1.bf16.msra.mxu0 %v1481
      %1494 = vmatprep.subr.bf16.mxu0 %v1350
      %1495 = vmatpush1.bf16.msra.mxu0 %v1349
      %1496 = vmatprep.subr.bf16.mxu0 %v1348
      %1497 = vmatpush1.bf16.msra.mxu0 %v1347
      %1498 = vmatprep.subr.bf16.mxu0 %v1346
      %1499 = vmatpush1.bf16.msra.mxu0 %v1345
      %1500 = vmatprep.subr.bf16.mxu0 %v1344
      %1501 = vmatpush1.bf16.msra.mxu0 %v1343
      %1502 = vmatprep.subr.bf16.mxu0 0
      %1503 = vmatpush2.bf16.msra.mxu0 0
      %1504 = vmatprep.subr.bf16.mxu0 0
      %1505 = vmatpush2.bf16.msra.mxu0 0
      %1506 = vmatprep.subr.bf16.mxu0 0
      %1507 = vmatpush2.bf16.msra.mxu0 0
      %1508 = vmatprep.subr.bf16.mxu0 0
      %1509 = vmatpush2.bf16.msra.mxu0 0
      %1510 = vmatprep.subr.bf16.mxu0 0
      %1511 = vmatpush2.bf16.msra.mxu0 0
      %1512 = vmatprep.subr.bf16.mxu0 0
      %1513 = vmatpush2.bf16.msra.mxu0 0
      %1514 = vmatprep.subr.bf16.mxu0 0
      %1515 = vmatpush2.bf16.msra.mxu0 0
      %1516 = vmatprep.subr.bf16.mxu0 0
      %1517 = vmatpush2.bf16.msra.mxu0 0
      %1518 = vmatprep.mubr.bf16.mxu0 0
      %1519 = vmatmul.mubr.bf16.gmra.mxu0 %v1478
      %v1520 = vpop.f32.mrf.mxu0
      %v1521 = vadd.f32 %v1471, %v1520
      %v1522 = vpop.f32.mrf.mxu0
      %v1523 = vadd.f32 %v1473, %v1522
      %v1524 = vpop.f32.mrf.mxu0
      %v1525 = vpop.f32.mrf.mxu0
      %1526 = vdwg.mxu0
      %v1527 = vsel %vm736, %v1275, 0.0
      %v1528 = vsel %vm737, %v1276, 0.0
      %v1529 = vsel %vm749, %v1283, 0.0
      %v1530 = vsel %vm750, %v1284, 0.0
      %v1531 = vsel %vm762, %v1291, 0.0
      %v1532 = vsel %vm763, %v1292, 0.0
      %v1533 = vsel %vm775, %v1299, 0.0
      %v1534 = vsel %vm776, %v1300, 0.0
      %v1535 = vsel %vm788, %v1307, 0.0
      %v1536 = vsel %vm789, %v1308, 0.0
      %v1537 = vsel %vm801, %v1315, 0.0
      %v1538 = vsel %vm802, %v1316, 0.0
      %v1539 = vsel %vm814, %v1323, 0.0
      %v1540 = vsel %vm815, %v1324, 0.0
      %v1541 = vsel %vm827, %v1331, 0.0
      %v1542 = vsel %vm828, %v1332, 0.0
      %v1543 = vsel %vm840, %v1339, 0.0
      %v1544 = vsel %vm841, %v1340, 0.0
      %v1545 = vpack.c.bf16 %v1529, %v1527
      %v1546 = vpack.c.bf16 %v1530, %v1528
      %v1547 = vpack.c.bf16 %v1533, %v1531
      %v1548 = vpack.c.bf16 %v1534, %v1532
      %v1549 = vpack.c.bf16 %v1537, %v1535
      %v1550 = vpack.c.bf16 %v1538, %v1536
      %v1551 = vpack.c.bf16 %v1541, %v1539
      %v1552 = vpack.c.bf16 %v1542, %v1540
      %v1553 = vpack.c.bf16 %v1543, %v1543
      %v1554 = vpack.c.bf16 %v1544, %v1544
      %v1556 = vsel %vm625, %v1268, 0
      %v1559 = vsel %vm629, %v1553, 0
      %v1562 = vsel %vm629, %v1554, 0
      %1564 = vmatprep.subr.bf16.mxu0 0
      %1565 = vmatpush1.bf16.msra.mxu0 0
      %1566 = vmatprep.subr.bf16.mxu0 0
      %1567 = vmatpush1.bf16.msra.mxu0 0
      %1568 = vmatprep.subr.bf16.mxu0 0
      %1569 = vmatpush1.bf16.msra.mxu0 0
      %1570 = vmatprep.subr.bf16.mxu0 %v1562
      %1571 = vmatpush1.bf16.msra.mxu0 %v1559
      %1572 = vmatprep.subr.bf16.mxu0 %v1552
      %1573 = vmatpush1.bf16.msra.mxu0 %v1551
      %1574 = vmatprep.subr.bf16.mxu0 %v1550
      %1575 = vmatpush1.bf16.msra.mxu0 %v1549
      %1576 = vmatprep.subr.bf16.mxu0 %v1548
      %1577 = vmatpush1.bf16.msra.mxu0 %v1547
      %1578 = vmatprep.subr.bf16.mxu0 %v1546
      %1579 = vmatpush1.bf16.msra.mxu0 %v1545
      %1580 = vmatprep.subr.bf16.mxu0 0
      %1581 = vmatpush2.bf16.msra.mxu0 0
      %1582 = vmatprep.subr.bf16.mxu0 0
      %1583 = vmatpush2.bf16.msra.mxu0 0
      %1584 = vmatprep.subr.bf16.mxu0 0
      %1585 = vmatpush2.bf16.msra.mxu0 0
      %1586 = vmatprep.subr.bf16.mxu0 0
      %1587 = vmatpush2.bf16.msra.mxu0 0
      %1588 = vmatprep.subr.bf16.mxu0 0
      %1589 = vmatpush2.bf16.msra.mxu0 0
      %1590 = vmatprep.subr.bf16.mxu0 0
      %1591 = vmatpush2.bf16.msra.mxu0 0
      %1592 = vmatprep.subr.bf16.mxu0 0
      %1593 = vmatpush2.bf16.msra.mxu0 0
      %1594 = vmatprep.subr.bf16.mxu0 0
      %1595 = vmatpush2.bf16.msra.mxu0 0
      %1596 = vmatprep.mubr.bf16.mxu0 0
      %1597 = vmatmul.mubr.bf16.gmra.mxu0 %v1556
      %v1598 = vpop.f32.mrf.mxu0
      %v1599 = vadd.f32 0.0, %v1598
      %v1600 = vpop.f32.mrf.mxu0
      %v1601 = vadd.f32 0.0, %v1600
      %v1602 = vpop.f32.mrf.mxu0
      %v1603 = vpop.f32.mrf.mxu0
      %1604 = vdwg.mxu0
      %v1605 = vadd.f32 %v1521, %v1599
      %v1606 = vadd.f32 %v1523, %v1601
      %1608 = vset.pattern.permute.xlu0 0
      %1609 = vperm.xlu0 %1608, %v1270
      %v1610 = vpop.permute.xlu0 %1609
      %v1612 = vadd.f32 %v1605, %v1610
      %v1613 = vadd.f32 %v1606, %v1610
      %v1614 = vmax.f32 %v1612, 0.0
      %v1615 = vmax.f32 %v1613, 0.0
      %s1616 = scalar_lea.vmem %s3, 24
      %v1617 = vld [vmem:[%s1616] sm:$0xf]
      %v1618 = vld [vmem:[%s1616 + $0x4] sm:$0xf]
      %v1619 = vld [vmem:[%s1616 + $0x8] sm:$0xf]
      %s1620 = scalar_lea.vmem %s4, 24
      %v1621 = vld [vmem:[%s1620] sm:$0xff]
      %1622 = vrot.lane.b32.xlu0 %v1614, 73
      %v1623 = vpop.permute.xlu0 %1622
      %1624 = vrot.lane.b32.xlu0 %v1615, 73
      %v1625 = vpop.permute.xlu0 %1624
      %v1626 = vsel %vm269, %v1623, %v1625
      %v1627 = vsel %vm269, %v1625, %v1623
      %v1628 = vsel %vm281, %v1627, 0.0
      %v1629 = vsel %vm282, %v1626, 0.0
      %1630 = vrot.lane.b32.xlu0 %v1614, 72
      %v1631 = vpop.permute.xlu0 %1630
      %1632 = vrot.lane.b32.xlu0 %v1615, 72
      %v1633 = vpop.permute.xlu0 %1632
      %v1634 = vsel %vm289, %v1631, %v1633
      %v1635 = vsel %vm289, %v1633, %v1631
      %v1636 = vsel %vm301, %v1635, 0.0
      %v1637 = vsel %vm302, %v1634, 0.0
      %1638 = vrot.lane.b32.xlu0 %v1614, 71
      %v1639 = vpop.permute.xlu0 %1638
      %1640 = vrot.lane.b32.xlu0 %v1615, 71
      %v1641 = vpop.permute.xlu0 %1640
      %v1642 = vsel %vm309, %v1639, %v1641
      %v1643 = vsel %vm309, %v1641, %v1639
      %v1644 = vsel %vm321, %v1643, 0.0
      %v1645 = vsel %vm322, %v1642, 0.0
      %1646 = vrot.lane.b32.xlu0 %v1614, 65
      %v1647 = vpop.permute.xlu0 %1646
      %1648 = vrot.lane.b32.xlu0 %v1615, 65
      %v1649 = vpop.permute.xlu0 %1648
      %v1650 = vsel %vm329, %v1647, %v1649
      %v1651 = vsel %vm329, %v1649, %v1647
      %v1652 = vsel %vm341, %v1651, 0.0
      %v1653 = vsel %vm342, %v1650, 0.0
      %1654 = vrot.lane.b32.xlu0 %v1614, 64
      %v1655 = vpop.permute.xlu0 %1654
      %1656 = vrot.lane.b32.xlu0 %v1615, 64
      %v1657 = vpop.permute.xlu0 %1656
      %v1658 = vsel %vm349, %v1655, %v1657
      %v1659 = vsel %vm349, %v1657, %v1655
      %v1660 = vsel %vm361, %v1659, 0.0
      %v1661 = vsel %vm362, %v1658, 0.0
      %1662 = vrot.lane.b32.xlu0 %v1614, 63
      %v1663 = vpop.permute.xlu0 %1662
      %1664 = vrot.lane.b32.xlu0 %v1615, 63
      %v1665 = vpop.permute.xlu0 %1664
      %v1666 = vsel %vm369, %v1663, %v1665
      %v1667 = vsel %vm369, %v1665, %v1663
      %v1668 = vsel %vm381, %v1667, 0.0
      %v1669 = vsel %vm382, %v1666, 0.0
      %1670 = vrot.lane.b32.xlu0 %v1614, 57
      %v1671 = vpop.permute.xlu0 %1670
      %1672 = vrot.lane.b32.xlu0 %v1615, 57
      %v1673 = vpop.permute.xlu0 %1672
      %v1674 = vsel %vm389, %v1671, %v1673
      %v1675 = vsel %vm389, %v1673, %v1671
      %v1676 = vsel %vm401, %v1675, 0.0
      %v1677 = vsel %vm402, %v1674, 0.0
      %1678 = vrot.lane.b32.xlu0 %v1614, 56
      %v1679 = vpop.permute.xlu0 %1678
      %1680 = vrot.lane.b32.xlu0 %v1615, 56
      %v1681 = vpop.permute.xlu0 %1680
      %v1682 = vsel %vm409, %v1679, %v1681
      %v1683 = vsel %vm409, %v1681, %v1679
      %v1684 = vsel %vm421, %v1683, 0.0
      %v1685 = vsel %vm422, %v1682, 0.0
      %1686 = vrot.lane.b32.xlu0 %v1614, 55
      %v1687 = vpop.permute.xlu0 %1686
      %1688 = vrot.lane.b32.xlu0 %v1615, 55
      %v1689 = vpop.permute.xlu0 %1688
      %v1690 = vsel %vm429, %v1687, %v1689
      %v1691 = vsel %vm429, %v1689, %v1687
      %v1692 = vsel %vm441, %v1691, 0.0
      %v1693 = vsel %vm442, %v1690, 0.0
      %v1694 = vpack.c.bf16 %v1636, %v1628
      %v1695 = vpack.c.bf16 %v1637, %v1629
      %v1696 = vpack.c.bf16 %v1652, %v1644
      %v1697 = vpack.c.bf16 %v1653, %v1645
      %v1698 = vpack.c.bf16 %v1668, %v1660
      %v1699 = vpack.c.bf16 %v1669, %v1661
      %v1700 = vpack.c.bf16 %v1684, %v1676
      %v1701 = vpack.c.bf16 %v1685, %v1677
      %v1702 = vpack.c.bf16 %v1692, %v1692
      %v1703 = vpack.c.bf16 %v1693, %v1693
      %1704 = vrot.lane.b32.xlu0 %v1614, 9
      %v1705 = vpop.permute.xlu0 %1704
      %1706 = vrot.lane.b32.xlu0 %v1615, 9
      %v1707 = vpop.permute.xlu0 %1706
      %v1708 = vsel %vm459, %v1705, %v1707
      %v1709 = vsel %vm459, %v1707, %v1705
      %v1710 = vsel %vm471, %v1709, 0.0
      %v1711 = vsel %vm472, %v1708, 0.0
      %1712 = vrot.lane.b32.xlu0 %v1614, 8
      %v1713 = vpop.permute.xlu0 %1712
      %1714 = vrot.lane.b32.xlu0 %v1615, 8
      %v1715 = vpop.permute.xlu0 %1714
      %v1716 = vsel %vm479, %v1713, %v1715
      %v1717 = vsel %vm479, %v1715, %v1713
      %v1718 = vsel %vm491, %v1717, 0.0
      %v1719 = vsel %vm492, %v1716, 0.0
      %1720 = vrot.lane.b32.xlu0 %v1614, 7
      %v1721 = vpop.permute.xlu0 %1720
      %1722 = vrot.lane.b32.xlu0 %v1615, 7
      %v1723 = vpop.permute.xlu0 %1722
      %v1724 = vsel %vm499, %v1721, %v1723
      %v1725 = vsel %vm499, %v1723, %v1721
      %v1726 = vsel %vm511, %v1725, 0.0
      %v1727 = vsel %vm512, %v1724, 0.0
      %1728 = vrot.lane.b32.xlu0 %v1614, 1
      %v1729 = vpop.permute.xlu0 %1728
      %1730 = vrot.lane.b32.xlu0 %v1615, 1
      %v1731 = vpop.permute.xlu0 %1730
      %v1732 = vsel %vm519, %v1729, %v1731
      %v1733 = vsel %vm519, %v1731, %v1729
      %v1734 = vsel %vm531, %v1733, 0.0
      %v1735 = vsel %vm532, %v1732, 0.0
      %1736 = vrot.lane.b32.xlu0 %v1614, 127
      %v1737 = vpop.permute.xlu0 %1736
      %1738 = vrot.lane.b32.xlu0 %v1615, 127
      %v1739 = vpop.permute.xlu0 %1738
      %v1740 = vsel %vm539, %v1737, %v1739
      %v1741 = vsel %vm539, %v1739, %v1737
      %v1742 = vsel %vm551, %v1740, 0.0
      %v1743 = vsel %vm552, %v1741, 0.0
      %1744 = vrot.lane.b32.xlu0 %v1614, 121
      %v1745 = vpop.permute.xlu0 %1744
      %1746 = vrot.lane.b32.xlu0 %v1615, 121
      %v1747 = vpop.permute.xlu0 %1746
      %v1748 = vsel %vm559, %v1745, %v1747
      %v1749 = vsel %vm559, %v1747, %v1745
      %v1750 = vsel %vm571, %v1748, 0.0
      %v1751 = vsel %vm572, %v1749, 0.0
      %1752 = vrot.lane.b32.xlu0 %v1614, 120
      %v1753 = vpop.permute.xlu0 %1752
      %1754 = vrot.lane.b32.xlu0 %v1615, 120
      %v1755 = vpop.permute.xlu0 %1754
      %v1756 = vsel %vm579, %v1753, %v1755
      %v1757 = vsel %vm579, %v1755, %v1753
      %v1758 = vsel %vm591, %v1756, 0.0
      %v1759 = vsel %vm592, %v1757, 0.0
      %1760 = vrot.lane.b32.xlu0 %v1614, 119
      %v1761 = vpop.permute.xlu0 %1760
      %1762 = vrot.lane.b32.xlu0 %v1615, 119
      %v1763 = vpop.permute.xlu0 %1762
      %v1764 = vsel %vm599, %v1761, %v1763
      %v1765 = vsel %vm599, %v1763, %v1761
      %v1766 = vsel %vm611, %v1764, 0.0
      %v1767 = vsel %vm612, %v1765, 0.0
      %v1768 = vpack.c.bf16 %v1718, %v1710
      %v1769 = vpack.c.bf16 %v1719, %v1711
      %v1770 = vpack.c.bf16 %v1734, %v1726
      %v1771 = vpack.c.bf16 %v1735, %v1727
      %v1772 = vpack.c.bf16 %v1742, %v1614
      %v1773 = vpack.c.bf16 %v1743, %v1615
      %v1774 = vpack.c.bf16 %v1758, %v1750
      %v1775 = vpack.c.bf16 %v1759, %v1751
      %v1776 = vpack.c.bf16 %v1766, %v1766
      %v1777 = vpack.c.bf16 %v1767, %v1767
      %v1779 = vsel %vm625, %v1618, 0
      %v1782 = vsel %vm629, %v1776, 0
      %v1785 = vsel %vm629, %v1777, 0
      %1787 = vmatprep.subr.bf16.mxu0 0
      %1788 = vmatpush1.bf16.msra.mxu0 0
      %1789 = vmatprep.subr.bf16.mxu0 0
      %1790 = vmatpush1.bf16.msra.mxu0 0
      %1791 = vmatprep.subr.bf16.mxu0 0
      %1792 = vmatpush1.bf16.msra.mxu0 0
      %1793 = vmatprep.subr.bf16.mxu0 %v1785
      %1794 = vmatpush1.bf16.msra.mxu0 %v1782
      %1795 = vmatprep.subr.bf16.mxu0 %v1775
      %1796 = vmatpush1.bf16.msra.mxu0 %v1774
      %1797 = vmatprep.subr.bf16.mxu0 %v1773
      %1798 = vmatpush1.bf16.msra.mxu0 %v1772
      %1799 = vmatprep.subr.bf16.mxu0 %v1771
      %1800 = vmatpush1.bf16.msra.mxu0 %v1770
      %1801 = vmatprep.subr.bf16.mxu0 %v1769
      %1802 = vmatpush1.bf16.msra.mxu0 %v1768
      %1803 = vmatprep.subr.bf16.mxu0 0
      %1804 = vmatpush2.bf16.msra.mxu0 0
      %1805 = vmatprep.subr.bf16.mxu0 0
      %1806 = vmatpush2.bf16.msra.mxu0 0
      %1807 = vmatprep.subr.bf16.mxu0 0
      %1808 = vmatpush2.bf16.msra.mxu0 0
      %1809 = vmatprep.subr.bf16.mxu0 0
      %1810 = vmatpush2.bf16.msra.mxu0 0
      %1811 = vmatprep.subr.bf16.mxu0 0
      %1812 = vmatpush2.bf16.msra.mxu0 0
      %1813 = vmatprep.subr.bf16.mxu0 0
      %1814 = vmatpush2.bf16.msra.mxu0 0
      %1815 = vmatprep.subr.bf16.mxu0 0
      %1816 = vmatpush2.bf16.msra.mxu0 0
      %1817 = vmatprep.subr.bf16.mxu0 0
      %1818 = vmatpush2.bf16.msra.mxu0 0
      %1819 = vmatprep.mubr.bf16.mxu0 0
      %1820 = vmatmul.mubr.bf16.gmra.mxu0 %v1779
      %v1821 = vpop.f32.mrf.mxu0
      %v1822 = vadd.f32 0.0, %v1821
      %v1823 = vpop.f32.mrf.mxu0
      %v1824 = vadd.f32 0.0, %v1823
      %v1825 = vpop.f32.mrf.mxu0
      %v1826 = vpop.f32.mrf.mxu0
      %1827 = vdwg.mxu0
      %v1829 = vsel %vm625, %v1617, 0
      %v1832 = vsel %vm629, %v1702, 0
      %v1835 = vsel %vm629, %v1703, 0
      %1837 = vmatprep.subr.bf16.mxu0 0
      %1838 = vmatpush1.bf16.msra.mxu0 0
      %1839 = vmatprep.subr.bf16.mxu0 0
      %1840 = vmatpush1.bf16.msra.mxu0 0
      %1841 = vmatprep.subr.bf16.mxu0 0
      %1842 = vmatpush1.bf16.msra.mxu0 0
      %1843 = vmatprep.subr.bf16.mxu0 %v1835
      %1844 = vmatpush1.bf16.msra.mxu0 %v1832
      %1845 = vmatprep.subr.bf16.mxu0 %v1701
      %1846 = vmatpush1.bf16.msra.mxu0 %v1700
      %1847 = vmatprep.subr.bf16.mxu0 %v1699
      %1848 = vmatpush1.bf16.msra.mxu0 %v1698
      %1849 = vmatprep.subr.bf16.mxu0 %v1697
      %1850 = vmatpush1.bf16.msra.mxu0 %v1696
      %1851 = vmatprep.subr.bf16.mxu0 %v1695
      %1852 = vmatpush1.bf16.msra.mxu0 %v1694
      %1853 = vmatprep.subr.bf16.mxu0 0
      %1854 = vmatpush2.bf16.msra.mxu0 0
      %1855 = vmatprep.subr.bf16.mxu0 0
      %1856 = vmatpush2.bf16.msra.mxu0 0
      %1857 = vmatprep.subr.bf16.mxu0 0
      %1858 = vmatpush2.bf16.msra.mxu0 0
      %1859 = vmatprep.subr.bf16.mxu0 0
      %1860 = vmatpush2.bf16.msra.mxu0 0
      %1861 = vmatprep.subr.bf16.mxu0 0
      %1862 = vmatpush2.bf16.msra.mxu0 0
      %1863 = vmatprep.subr.bf16.mxu0 0
      %1864 = vmatpush2.bf16.msra.mxu0 0
      %1865 = vmatprep.subr.bf16.mxu0 0
      %1866 = vmatpush2.bf16.msra.mxu0 0
      %1867 = vmatprep.subr.bf16.mxu0 0
      %1868 = vmatpush2.bf16.msra.mxu0 0
      %1869 = vmatprep.mubr.bf16.mxu0 0
      %1870 = vmatmul.mubr.bf16.gmra.mxu0 %v1829
      %v1871 = vpop.f32.mrf.mxu0
      %v1872 = vadd.f32 %v1822, %v1871
      %v1873 = vpop.f32.mrf.mxu0
      %v1874 = vadd.f32 %v1824, %v1873
      %v1875 = vpop.f32.mrf.mxu0
      %v1876 = vpop.f32.mrf.mxu0
      %1877 = vdwg.mxu0
      %v1878 = vsel %vm736, %v1626, 0.0
      %v1879 = vsel %vm737, %v1627, 0.0
      %v1880 = vsel %vm749, %v1634, 0.0
      %v1881 = vsel %vm750, %v1635, 0.0
      %v1882 = vsel %vm762, %v1642, 0.0
      %v1883 = vsel %vm763, %v1643, 0.0
      %v1884 = vsel %vm775, %v1650, 0.0
      %v1885 = vsel %vm776, %v1651, 0.0
      %v1886 = vsel %vm788, %v1658, 0.0
      %v1887 = vsel %vm789, %v1659, 0.0
      %v1888 = vsel %vm801, %v1666, 0.0
      %v1889 = vsel %vm802, %v1667, 0.0
      %v1890 = vsel %vm814, %v1674, 0.0
      %v1891 = vsel %vm815, %v1675, 0.0
      %v1892 = vsel %vm827, %v1682, 0.0
      %v1893 = vsel %vm828, %v1683, 0.0
      %v1894 = vsel %vm840, %v1690, 0.0
      %v1895 = vsel %vm841, %v1691, 0.0
      %v1896 = vpack.c.bf16 %v1880, %v1878
      %v1897 = vpack.c.bf16 %v1881, %v1879
      %v1898 = vpack.c.bf16 %v1884, %v1882
      %v1899 = vpack.c.bf16 %v1885, %v1883
      %v1900 = vpack.c.bf16 %v1888, %v1886
      %v1901 = vpack.c.bf16 %v1889, %v1887
      %v1902 = vpack.c.bf16 %v1892, %v1890
      %v1903 = vpack.c.bf16 %v1893, %v1891
      %v1904 = vpack.c.bf16 %v1894, %v1894
      %v1905 = vpack.c.bf16 %v1895, %v1895
      %v1907 = vsel %vm625, %v1619, 0
      %v1910 = vsel %vm629, %v1904, 0
      %v1913 = vsel %vm629, %v1905, 0
      %1915 = vmatprep.subr.bf16.mxu0 0
      %1916 = vmatpush1.bf16.msra.mxu0 0
      %1917 = vmatprep.subr.bf16.mxu0 0
      %1918 = vmatpush1.bf16.msra.mxu0 0
      %1919 = vmatprep.subr.bf16.mxu0 0
      %1920 = vmatpush1.bf16.msra.mxu0 0
      %1921 = vmatprep.subr.bf16.mxu0 %v1913
      %1922 = vmatpush1.bf16.msra.mxu0 %v1910
      %1923 = vmatprep.subr.bf16.mxu0 %v1903
      %1924 = vmatpush1.bf16.msra.mxu0 %v1902
      %1925 = vmatprep.subr.bf16.mxu0 %v1901
      %1926 = vmatpush1.bf16.msra.mxu0 %v1900
      %1927 = vmatprep.subr.bf16.mxu0 %v1899
      %1928 = vmatpush1.bf16.msra.mxu0 %v1898
      %1929 = vmatprep.subr.bf16.mxu0 %v1897
      %1930 = vmatpush1.bf16.msra.mxu0 %v1896
      %1931 = vmatprep.subr.bf16.mxu0 0
      %1932 = vmatpush2.bf16.msra.mxu0 0
      %1933 = vmatprep.subr.bf16.mxu0 0
      %1934 = vmatpush2.bf16.msra.mxu0 0
      %1935 = vmatprep.subr.bf16.mxu0 0
      %1936 = vmatpush2.bf16.msra.mxu0 0
      %1937 = vmatprep.subr.bf16.mxu0 0
      %1938 = vmatpush2.bf16.msra.mxu0 0
      %1939 = vmatprep.subr.bf16.mxu0 0
      %1940 = vmatpush2.bf16.msra.mxu0 0
      %1941 = vmatprep.subr.bf16.mxu0 0
      %1942 = vmatpush2.bf16.msra.mxu0 0
      %1943 = vmatprep.subr.bf16.mxu0 0
      %1944 = vmatpush2.bf16.msra.mxu0 0
      %1945 = vmatprep.subr.bf16.mxu0 0
      %1946 = vmatpush2.bf16.msra.mxu0 0
      %1947 = vmatprep.mubr.bf16.mxu0 0
      %1948 = vmatmul.mubr.bf16.gmra.mxu0 %v1907
      %v1949 = vpop.f32.mrf.mxu0
      %v1950 = vadd.f32 0.0, %v1949
      %v1951 = vpop.f32.mrf.mxu0
      %v1952 = vadd.f32 0.0, %v1951
      %v1953 = vpop.f32.mrf.mxu0
      %v1954 = vpop.f32.mrf.mxu0
      %1955 = vdwg.mxu0
      %v1956 = vadd.f32 %v1872, %v1950
      %v1957 = vadd.f32 %v1874, %v1952
      %1959 = vset.pattern.permute.xlu0 0
      %1960 = vperm.xlu0 %1959, %v1621
      %v1961 = vpop.permute.xlu0 %1960
      %v1963 = vadd.f32 %v1956, %v1961
      %v1964 = vadd.f32 %v1957, %v1961
      %v1965 = vadd.f32 %v1263, %v1963
      %v1966 = vadd.f32 %v1264, %v1964
      %v1967 = vmul.f32 %v1965, 0.5
      %v1968 = vmul.f32 %v1966, 0.5
      %s1969 = scalar_lea.vmem %s3, 36
      %v1970 = vld [vmem:[%s1969] sm:$0xf]
      %v1971 = vld [vmem:[%s1969 + $0x4] sm:$0xf]
      %v1972 = vld [vmem:[%s1969 + $0x8] sm:$0xf]
      %s1973 = scalar_lea.vmem %s4, 32
      %v1974 = vld [vmem:[%s1973] sm:$0xff]
      %1975 = vrot.lane.b32.xlu0 %v1967, 73
      %v1976 = vpop.permute.xlu0 %1975
      %1977 = vrot.lane.b32.xlu0 %v1968, 73
      %v1978 = vpop.permute.xlu0 %1977
      %v1979 = vsel %vm269, %v1976, %v1978
      %v1980 = vsel %vm269, %v1978, %v1976
      %v1981 = vsel %vm281, %v1980, 0.0
      %v1982 = vsel %vm282, %v1979, 0.0
      %1983 = vrot.lane.b32.xlu0 %v1967, 72
      %v1984 = vpop.permute.xlu0 %1983
      %1985 = vrot.lane.b32.xlu0 %v1968, 72
      %v1986 = vpop.permute.xlu0 %1985
      %v1987 = vsel %vm289, %v1984, %v1986
      %v1988 = vsel %vm289, %v1986, %v1984
      %v1989 = vsel %vm301, %v1988, 0.0
      %v1990 = vsel %vm302, %v1987, 0.0
      %1991 = vrot.lane.b32.xlu0 %v1967, 71
      %v1992 = vpop.permute.xlu0 %1991
      %1993 = vrot.lane.b32.xlu0 %v1968, 71
      %v1994 = vpop.permute.xlu0 %1993
      %v1995 = vsel %vm309, %v1992, %v1994
      %v1996 = vsel %vm309, %v1994, %v1992
      %v1997 = vsel %vm321, %v1996, 0.0
      %v1998 = vsel %vm322, %v1995, 0.0
      %1999 = vrot.lane.b32.xlu0 %v1967, 65
      %v2000 = vpop.permute.xlu0 %1999
      %2001 = vrot.lane.b32.xlu0 %v1968, 65
      %v2002 = vpop.permute.xlu0 %2001
      %v2003 = vsel %vm329, %v2000, %v2002
      %v2004 = vsel %vm329, %v2002, %v2000
      %v2005 = vsel %vm341, %v2004, 0.0
      %v2006 = vsel %vm342, %v2003, 0.0
      %2007 = vrot.lane.b32.xlu0 %v1967, 64
      %v2008 = vpop.permute.xlu0 %2007
      %2009 = vrot.lane.b32.xlu0 %v1968, 64
      %v2010 = vpop.permute.xlu0 %2009
      %v2011 = vsel %vm349, %v2008, %v2010
      %v2012 = vsel %vm349, %v2010, %v2008
      %v2013 = vsel %vm361, %v2012, 0.0
      %v2014 = vsel %vm362, %v2011, 0.0
      %2015 = vrot.lane.b32.xlu0 %v1967, 63
      %v2016 = vpop.permute.xlu0 %2015
      %2017 = vrot.lane.b32.xlu0 %v1968, 63
      %v2018 = vpop.permute.xlu0 %2017
      %v2019 = vsel %vm369, %v2016, %v2018
      %v2020 = vsel %vm369, %v2018, %v2016
      %v2021 = vsel %vm381, %v2020, 0.0
      %v2022 = vsel %vm382, %v2019, 0.0
      %2023 = vrot.lane.b32.xlu0 %v1967, 57
      %v2024 = vpop.permute.xlu0 %2023
      %2025 = vrot.lane.b32.xlu0 %v1968, 57
      %v2026 = vpop.permute.xlu0 %2025
      %v2027 = vsel %vm389, %v2024, %v2026
      %v2028 = vsel %vm389, %v2026, %v2024
      %v2029 = vsel %vm401, %v2028, 0.0
      %v2030 = vsel %vm402, %v2027, 0.0
      %2031 = vrot.lane.b32.xlu0 %v1967, 56
      %v2032 = vpop.permute.xlu0 %2031
      %2033 = vrot.lane.b32.xlu0 %v1968, 56
      %v2034 = vpop.permute.xlu0 %2033
      %v2035 = vsel %vm409, %v2032, %v2034
      %v2036 = vsel %vm409, %v2034, %v2032
      %v2037 = vsel %vm421, %v2036, 0.0
      %v2038 = vsel %vm422, %v2035, 0.0
      %2039 = vrot.lane.b32.xlu0 %v1967, 55
      %v2040 = vpop.permute.xlu0 %2039
      %2041 = vrot.lane.b32.xlu0 %v1968, 55
      %v2042 = vpop.permute.xlu0 %2041
      %v2043 = vsel %vm429, %v2040, %v2042
      %v2044 = vsel %vm429, %v2042, %v2040
      %v2045 = vsel %vm441, %v2044, 0.0
      %v2046 = vsel %vm442, %v2043, 0.0
      %v2047 = vpack.c.bf16 %v1989, %v1981
      %v2048 = vpack.c.bf16 %v1990, %v1982
      %v2049 = vpack.c.bf16 %v2005, %v1997
      %v2050 = vpack.c.bf16 %v2006, %v1998
      %v2051 = vpack.c.bf16 %v2021, %v2013
      %v2052 = vpack.c.bf16 %v2022, %v2014
      %v2053 = vpack.c.bf16 %v2037, %v2029
      %v2054 = vpack.c.bf16 %v2038, %v2030
      %v2055 = vpack.c.bf16 %v2045, %v2045
      %v2056 = vpack.c.bf16 %v2046, %v2046
      %2057 = vrot.lane.b32.xlu0 %v1967, 9
      %v2058 = vpop.permute.xlu0 %2057
      %2059 = vrot.lane.b32.xlu0 %v1968, 9
      %v2060 = vpop.permute.xlu0 %2059
      %v2061 = vsel %vm459, %v2058, %v2060
      %v2062 = vsel %vm459, %v2060, %v2058
      %v2063 = vsel %vm471, %v2062, 0.0
      %v2064 = vsel %vm472, %v2061, 0.0
      %2065 = vrot.lane.b32.xlu0 %v1967, 8
      %v2066 = vpop.permute.xlu0 %2065
      %2067 = vrot.lane.b32.xlu0 %v1968, 8
      %v2068 = vpop.permute.xlu0 %2067
      %v2069 = vsel %vm479, %v2066, %v2068
      %v2070 = vsel %vm479, %v2068, %v2066
      %v2071 = vsel %vm491, %v2070, 0.0
      %v2072 = vsel %vm492, %v2069, 0.0
      %2073 = vrot.lane.b32.xlu0 %v1967, 7
      %v2074 = vpop.permute.xlu0 %2073
      %2075 = vrot.lane.b32.xlu0 %v1968, 7
      %v2076 = vpop.permute.xlu0 %2075
      %v2077 = vsel %vm499, %v2074, %v2076
      %v2078 = vsel %vm499, %v2076, %v2074
      %v2079 = vsel %vm511, %v2078, 0.0
      %v2080 = vsel %vm512, %v2077, 0.0
      %2081 = vrot.lane.b32.xlu0 %v1967, 1
      %v2082 = vpop.permute.xlu0 %2081
      %2083 = vrot.lane.b32.xlu0 %v1968, 1
      %v2084 = vpop.permute.xlu0 %2083
      %v2085 = vsel %vm519, %v2082, %v2084
      %v2086 = vsel %vm519, %v2084, %v2082
      %v2087 = vsel %vm531, %v2086, 0.0
      %v2088 = vsel %vm532, %v2085, 0.0
      %2089 = vrot.lane.b32.xlu0 %v1967, 127
      %v2090 = vpop.permute.xlu0 %2089
      %2091 = vrot.lane.b32.xlu0 %v1968, 127
      %v2092 = vpop.permute.xlu0 %2091
      %v2093 = vsel %vm539, %v2090, %v2092
      %v2094 = vsel %vm539, %v2092, %v2090
      %v2095 = vsel %vm551, %v2093, 0.0
      %v2096 = vsel %vm552, %v2094, 0.0
      %2097 = vrot.lane.b32.xlu0 %v1967, 121
      %v2098 = vpop.permute.xlu0 %2097
      %2099 = vrot.lane.b32.xlu0 %v1968, 121
      %v2100 = vpop.permute.xlu0 %2099
      %v2101 = vsel %vm559, %v2098, %v2100
      %v2102 = vsel %vm559, %v2100, %v2098
      %v2103 = vsel %vm571, %v2101, 0.0
      %v2104 = vsel %vm572, %v2102, 0.0
      %2105 = vrot.lane.b32.xlu0 %v1967, 120
      %v2106 = vpop.permute.xlu0 %2105
      %2107 = vrot.lane.b32.xlu0 %v1968, 120
      %v2108 = vpop.permute.xlu0 %2107
      %v2109 = vsel %vm579, %v2106, %v2108
      %v2110 = vsel %vm579, %v2108, %v2106
      %v2111 = vsel %vm591, %v2109, 0.0
      %v2112 = vsel %vm592, %v2110, 0.0
      %2113 = vrot.lane.b32.xlu0 %v1967, 119
      %v2114 = vpop.permute.xlu0 %2113
      %2115 = vrot.lane.b32.xlu0 %v1968, 119
      %v2116 = vpop.permute.xlu0 %2115
      %v2117 = vsel %vm599, %v2114, %v2116
      %v2118 = vsel %vm599, %v2116, %v2114
      %v2119 = vsel %vm611, %v2117, 0.0
      %v2120 = vsel %vm612, %v2118, 0.0
      %v2121 = vpack.c.bf16 %v2071, %v2063
      %v2122 = vpack.c.bf16 %v2072, %v2064
      %v2123 = vpack.c.bf16 %v2087, %v2079
      %v2124 = vpack.c.bf16 %v2088, %v2080
      %v2125 = vpack.c.bf16 %v2095, %v1967
      %v2126 = vpack.c.bf16 %v2096, %v1968
      %v2127 = vpack.c.bf16 %v2111, %v2103
      %v2128 = vpack.c.bf16 %v2112, %v2104
      %v2129 = vpack.c.bf16 %v2119, %v2119
      %v2130 = vpack.c.bf16 %v2120, %v2120
      %v2132 = vsel %vm625, %v1971, 0
      %v2135 = vsel %vm629, %v2129, 0
      %v2138 = vsel %vm629, %v2130, 0
      %2140 = vmatprep.subr.bf16.mxu0 0
      %2141 = vmatpush1.bf16.msra.mxu0 0
      %2142 = vmatprep.subr.bf16.mxu0 0
      %2143 = vmatpush1.bf16.msra.mxu0 0
      %2144 = vmatprep.subr.bf16.mxu0 0
      %2145 = vmatpush1.bf16.msra.mxu0 0
      %2146 = vmatprep.subr.bf16.mxu0 %v2138
      %2147 = vmatpush1.bf16.msra.mxu0 %v2135
      %2148 = vmatprep.subr.bf16.mxu0 %v2128
      %2149 = vmatpush1.bf16.msra.mxu0 %v2127
      %2150 = vmatprep.subr.bf16.mxu0 %v2126
      %2151 = vmatpush1.bf16.msra.mxu0 %v2125
      %2152 = vmatprep.subr.bf16.mxu0 %v2124
      %2153 = vmatpush1.bf16.msra.mxu0 %v2123
      %2154 = vmatprep.subr.bf16.mxu0 %v2122
      %2155 = vmatpush1.bf16.msra.mxu0 %v2121
      %2156 = vmatprep.subr.bf16.mxu0 0
      %2157 = vmatpush2.bf16.msra.mxu0 0
      %2158 = vmatprep.subr.bf16.mxu0 0
      %2159 = vmatpush2.bf16.msra.mxu0 0
      %2160 = vmatprep.subr.bf16.mxu0 0
      %2161 = vmatpush2.bf16.msra.mxu0 0
      %2162 = vmatprep.subr.bf16.mxu0 0
      %2163 = vmatpush2.bf16.msra.mxu0 0
      %2164 = vmatprep.subr.bf16.mxu0 0
      %2165 = vmatpush2.bf16.msra.mxu0 0
      %2166 = vmatprep.subr.bf16.mxu0 0
      %2167 = vmatpush2.bf16.msra.mxu0 0
      %2168 = vmatprep.subr.bf16.mxu0 0
      %2169 = vmatpush2.bf16.msra.mxu0 0
      %2170 = vmatprep.subr.bf16.mxu0 0
      %2171 = vmatpush2.bf16.msra.mxu0 0
      %2172 = vmatprep.mubr.bf16.mxu0 0
      %2173 = vmatmul.mubr.bf16.gmra.mxu0 %v2132
      %v2174 = vpop.f32.mrf.mxu0
      %v2175 = vadd.f32 0.0, %v2174
      %v2176 = vpop.f32.mrf.mxu0
      %v2177 = vadd.f32 0.0, %v2176
      %v2178 = vpop.f32.mrf.mxu0
      %v2179 = vpop.f32.mrf.mxu0
      %2180 = vdwg.mxu0
      %v2182 = vsel %vm625, %v1970, 0
      %v2185 = vsel %vm629, %v2055, 0
      %v2188 = vsel %vm629, %v2056, 0
      %2190 = vmatprep.subr.bf16.mxu0 0
      %2191 = vmatpush1.bf16.msra.mxu0 0
      %2192 = vmatprep.subr.bf16.mxu0 0
      %2193 = vmatpush1.bf16.msra.mxu0 0
      %2194 = vmatprep.subr.bf16.mxu0 0
      %2195 = vmatpush1.bf16.msra.mxu0 0
      %2196 = vmatprep.subr.bf16.mxu0 %v2188
      %2197 = vmatpush1.bf16.msra.mxu0 %v2185
      %2198 = vmatprep.subr.bf16.mxu0 %v2054
      %2199 = vmatpush1.bf16.msra.mxu0 %v2053
      %2200 = vmatprep.subr.bf16.mxu0 %v2052
      %2201 = vmatpush1.bf16.msra.mxu0 %v2051
      %2202 = vmatprep.subr.bf16.mxu0 %v2050
      %2203 = vmatpush1.bf16.msra.mxu0 %v2049
      %2204 = vmatprep.subr.bf16.mxu0 %v2048
      %2205 = vmatpush1.bf16.msra.mxu0 %v2047
      %2206 = vmatprep.subr.bf16.mxu0 0
      %2207 = vmatpush2.bf16.msra.mxu0 0
      %2208 = vmatprep.subr.bf16.mxu0 0
      %2209 = vmatpush2.bf16.msra.mxu0 0
      %2210 = vmatprep.subr.bf16.mxu0 0
      %2211 = vmatpush2.bf16.msra.mxu0 0
      %2212 = vmatprep.subr.bf16.mxu0 0
      %2213 = vmatpush2.bf16.msra.mxu0 0
      %2214 = vmatprep.subr.bf16.mxu0 0
      %2215 = vmatpush2.bf16.msra.mxu0 0
      %2216 = vmatprep.subr.bf16.mxu0 0
      %2217 = vmatpush2.bf16.msra.mxu0 0
      %2218 = vmatprep.subr.bf16.mxu0 0
      %2219 = vmatpush2.bf16.msra.mxu0 0
      %2220 = vmatprep.subr.bf16.mxu0 0
      %2221 = vmatpush2.bf16.msra.mxu0 0
      %2222 = vmatprep.mubr.bf16.mxu0 0
      %2223 = vmatmul.mubr.bf16.gmra.mxu0 %v2182
      %v2224 = vpop.f32.mrf.mxu0
      %v2225 = vadd.f32 %v2175, %v2224
      %v2226 = vpop.f32.mrf.mxu0
      %v2227 = vadd.f32 %v2177, %v2226
      %v2228 = vpop.f32.mrf.mxu0
      %v2229 = vpop.f32.mrf.mxu0
      %2230 = vdwg.mxu0
      %v2231 = vsel %vm736, %v1979, 0.0
      %v2232 = vsel %vm737, %v1980, 0.0
      %v2233 = vsel %vm749, %v1987, 0.0
      %v2234 = vsel %vm750, %v1988, 0.0
      %v2235 = vsel %vm762, %v1995, 0.0
      %v2236 = vsel %vm763, %v1996, 0.0
      %v2237 = vsel %vm775, %v2003, 0.0
      %v2238 = vsel %vm776, %v2004, 0.0
      %v2239 = vsel %vm788, %v2011, 0.0
      %v2240 = vsel %vm789, %v2012, 0.0
      %v2241 = vsel %vm801, %v2019, 0.0
      %v2242 = vsel %vm802, %v2020, 0.0
      %v2243 = vsel %vm814, %v2027, 0.0
      %v2244 = vsel %vm815, %v2028, 0.0
      %v2245 = vsel %vm827, %v2035, 0.0
      %v2246 = vsel %vm828, %v2036, 0.0
      %v2247 = vsel %vm840, %v2043, 0.0
      %v2248 = vsel %vm841, %v2044, 0.0
      %v2249 = vpack.c.bf16 %v2233, %v2231
      %v2250 = vpack.c.bf16 %v2234, %v2232
      %v2251 = vpack.c.bf16 %v2237, %v2235
      %v2252 = vpack.c.bf16 %v2238, %v2236
      %v2253 = vpack.c.bf16 %v2241, %v2239
      %v2254 = vpack.c.bf16 %v2242, %v2240
      %v2255 = vpack.c.bf16 %v2245, %v2243
      %v2256 = vpack.c.bf16 %v2246, %v2244
      %v2257 = vpack.c.bf16 %v2247, %v2247
      %v2258 = vpack.c.bf16 %v2248, %v2248
      %v2260 = vsel %vm625, %v1972, 0
      %v2263 = vsel %vm629, %v2257, 0
      %v2266 = vsel %vm629, %v2258, 0
      %2268 = vmatprep.subr.bf16.mxu0 0
      %2269 = vmatpush1.bf16.msra.mxu0 0
      %2270 = vmatprep.subr.bf16.mxu0 0
      %2271 = vmatpush1.bf16.msra.mxu0 0
      %2272 = vmatprep.subr.bf16.mxu0 0
      %2273 = vmatpush1.bf16.msra.mxu0 0
      %2274 = vmatprep.subr.bf16.mxu0 %v2266
      %2275 = vmatpush1.bf16.msra.mxu0 %v2263
      %2276 = vmatprep.subr.bf16.mxu0 %v2256
      %2277 = vmatpush1.bf16.msra.mxu0 %v2255
      %2278 = vmatprep.subr.bf16.mxu0 %v2254
      %2279 = vmatpush1.bf16.msra.mxu0 %v2253
      %2280 = vmatprep.subr.bf16.mxu0 %v2252
      %2281 = vmatpush1.bf16.msra.mxu0 %v2251
      %2282 = vmatprep.subr.bf16.mxu0 %v2250
      %2283 = vmatpush1.bf16.msra.mxu0 %v2249
      %2284 = vmatprep.subr.bf16.mxu0 0
      %2285 = vmatpush2.bf16.msra.mxu0 0
      %2286 = vmatprep.subr.bf16.mxu0 0
      %2287 = vmatpush2.bf16.msra.mxu0 0
      %2288 = vmatprep.subr.bf16.mxu0 0
      %2289 = vmatpush2.bf16.msra.mxu0 0
      %2290 = vmatprep.subr.bf16.mxu0 0
      %2291 = vmatpush2.bf16.msra.mxu0 0
      %2292 = vmatprep.subr.bf16.mxu0 0
      %2293 = vmatpush2.bf16.msra.mxu0 0
      %2294 = vmatprep.subr.bf16.mxu0 0
      %2295 = vmatpush2.bf16.msra.mxu0 0
      %2296 = vmatprep.subr.bf16.mxu0 0
      %2297 = vmatpush2.bf16.msra.mxu0 0
      %2298 = vmatprep.subr.bf16.mxu0 0
      %2299 = vmatpush2.bf16.msra.mxu0 0
      %2300 = vmatprep.mubr.bf16.mxu0 0
      %2301 = vmatmul.mubr.bf16.gmra.mxu0 %v2260
      %v2302 = vpop.f32.mrf.mxu0
      %v2303 = vadd.f32 0.0, %v2302
      %v2304 = vpop.f32.mrf.mxu0
      %v2305 = vadd.f32 0.0, %v2304
      %v2306 = vpop.f32.mrf.mxu0
      %v2307 = vpop.f32.mrf.mxu0
      %2308 = vdwg.mxu0
      %v2309 = vadd.f32 %v2225, %v2303
      %v2310 = vadd.f32 %v2227, %v2305
      %2312 = vset.pattern.permute.xlu0 0
      %2313 = vperm.xlu0 %2312, %v1974
      %v2314 = vpop.permute.xlu0 %2313
      %v2316 = vadd.f32 %v2309, %v2314
      %v2317 = vadd.f32 %v2310, %v2314
      %v2318 = vmax.f32 %v2316, 0.0
      %v2319 = vmax.f32 %v2317, 0.0
      %s2320 = scalar_lea.vmem %s3, 48
      %v2321 = vld [vmem:[%s2320] sm:$0xf]
      %v2322 = vld [vmem:[%s2320 + $0x4] sm:$0xf]
      %v2323 = vld [vmem:[%s2320 + $0x8] sm:$0xf]
      %s2324 = scalar_lea.vmem %s4, 40
      %v2325 = vld [vmem:[%s2324] sm:$0xff]
      %2326 = vrot.lane.b32.xlu0 %v2318, 73
      %v2327 = vpop.permute.xlu0 %2326
      %2328 = vrot.lane.b32.xlu0 %v2319, 73
      %v2329 = vpop.permute.xlu0 %2328
      %v2330 = vsel %vm269, %v2327, %v2329
      %v2331 = vsel %vm269, %v2329, %v2327
      %v2332 = vsel %vm281, %v2331, 0.0
      %v2333 = vsel %vm282, %v2330, 0.0
      %2334 = vrot.lane.b32.xlu0 %v2318, 72
      %v2335 = vpop.permute.xlu0 %2334
      %2336 = vrot.lane.b32.xlu0 %v2319, 72
      %v2337 = vpop.permute.xlu0 %2336
      %v2338 = vsel %vm289, %v2335, %v2337
      %v2339 = vsel %vm289, %v2337, %v2335
      %v2340 = vsel %vm301, %v2339, 0.0
      %v2341 = vsel %vm302, %v2338, 0.0
      %2342 = vrot.lane.b32.xlu0 %v2318, 71
      %v2343 = vpop.permute.xlu0 %2342
      %2344 = vrot.lane.b32.xlu0 %v2319, 71
      %v2345 = vpop.permute.xlu0 %2344
      %v2346 = vsel %vm309, %v2343, %v2345
      %v2347 = vsel %vm309, %v2345, %v2343
      %v2348 = vsel %vm321, %v2347, 0.0
      %v2349 = vsel %vm322, %v2346, 0.0
      %2350 = vrot.lane.b32.xlu0 %v2318, 65
      %v2351 = vpop.permute.xlu0 %2350
      %2352 = vrot.lane.b32.xlu0 %v2319, 65
      %v2353 = vpop.permute.xlu0 %2352
      %v2354 = vsel %vm329, %v2351, %v2353
      %v2355 = vsel %vm329, %v2353, %v2351
      %v2356 = vsel %vm341, %v2355, 0.0
      %v2357 = vsel %vm342, %v2354, 0.0
      %2358 = vrot.lane.b32.xlu0 %v2318, 64
      %v2359 = vpop.permute.xlu0 %2358
      %2360 = vrot.lane.b32.xlu0 %v2319, 64
      %v2361 = vpop.permute.xlu0 %2360
      %v2362 = vsel %vm349, %v2359, %v2361
      %v2363 = vsel %vm349, %v2361, %v2359
      %v2364 = vsel %vm361, %v2363, 0.0
      %v2365 = vsel %vm362, %v2362, 0.0
      %2366 = vrot.lane.b32.xlu0 %v2318, 63
      %v2367 = vpop.permute.xlu0 %2366
      %2368 = vrot.lane.b32.xlu0 %v2319, 63
      %v2369 = vpop.permute.xlu0 %2368
      %v2370 = vsel %vm369, %v2367, %v2369
      %v2371 = vsel %vm369, %v2369, %v2367
      %v2372 = vsel %vm381, %v2371, 0.0
      %v2373 = vsel %vm382, %v2370, 0.0
      %2374 = vrot.lane.b32.xlu0 %v2318, 57
      %v2375 = vpop.permute.xlu0 %2374
      %2376 = vrot.lane.b32.xlu0 %v2319, 57
      %v2377 = vpop.permute.xlu0 %2376
      %v2378 = vsel %vm389, %v2375, %v2377
      %v2379 = vsel %vm389, %v2377, %v2375
      %v2380 = vsel %vm401, %v2379, 0.0
      %v2381 = vsel %vm402, %v2378, 0.0
      %2382 = vrot.lane.b32.xlu0 %v2318, 56
      %v2383 = vpop.permute.xlu0 %2382
      %2384 = vrot.lane.b32.xlu0 %v2319, 56
      %v2385 = vpop.permute.xlu0 %2384
      %v2386 = vsel %vm409, %v2383, %v2385
      %v2387 = vsel %vm409, %v2385, %v2383
      %v2388 = vsel %vm421, %v2387, 0.0
      %v2389 = vsel %vm422, %v2386, 0.0
      %2390 = vrot.lane.b32.xlu0 %v2318, 55
      %v2391 = vpop.permute.xlu0 %2390
      %2392 = vrot.lane.b32.xlu0 %v2319, 55
      %v2393 = vpop.permute.xlu0 %2392
      %v2394 = vsel %vm429, %v2391, %v2393
      %v2395 = vsel %vm429, %v2393, %v2391
      %v2396 = vsel %vm441, %v2395, 0.0
      %v2397 = vsel %vm442, %v2394, 0.0
      %v2398 = vpack.c.bf16 %v2340, %v2332
      %v2399 = vpack.c.bf16 %v2341, %v2333
      %v2400 = vpack.c.bf16 %v2356, %v2348
      %v2401 = vpack.c.bf16 %v2357, %v2349
      %v2402 = vpack.c.bf16 %v2372, %v2364
      %v2403 = vpack.c.bf16 %v2373, %v2365
      %v2404 = vpack.c.bf16 %v2388, %v2380
      %v2405 = vpack.c.bf16 %v2389, %v2381
      %v2406 = vpack.c.bf16 %v2396, %v2396
      %v2407 = vpack.c.bf16 %v2397, %v2397
      %2408 = vrot.lane.b32.xlu0 %v2318, 9
      %v2409 = vpop.permute.xlu0 %2408
      %2410 = vrot.lane.b32.xlu0 %v2319, 9
      %v2411 = vpop.permute.xlu0 %2410
      %v2412 = vsel %vm459, %v2409, %v2411
      %v2413 = vsel %vm459, %v2411, %v2409
      %v2414 = vsel %vm471, %v2413, 0.0
      %v2415 = vsel %vm472, %v2412, 0.0
      %2416 = vrot.lane.b32.xlu0 %v2318, 8
      %v2417 = vpop.permute.xlu0 %2416
      %2418 = vrot.lane.b32.xlu0 %v2319, 8
      %v2419 = vpop.permute.xlu0 %2418
      %v2420 = vsel %vm479, %v2417, %v2419
      %v2421 = vsel %vm479, %v2419, %v2417
      %v2422 = vsel %vm491, %v2421, 0.0
      %v2423 = vsel %vm492, %v2420, 0.0
      %2424 = vrot.lane.b32.xlu0 %v2318, 7
      %v2425 = vpop.permute.xlu0 %2424
      %2426 = vrot.lane.b32.xlu0 %v2319, 7
      %v2427 = vpop.permute.xlu0 %2426
      %v2428 = vsel %vm499, %v2425, %v2427
      %v2429 = vsel %vm499, %v2427, %v2425
      %v2430 = vsel %vm511, %v2429, 0.0
      %v2431 = vsel %vm512, %v2428, 0.0
      %2432 = vrot.lane.b32.xlu0 %v2318, 1
      %v2433 = vpop.permute.xlu0 %2432
      %2434 = vrot.lane.b32.xlu0 %v2319, 1
      %v2435 = vpop.permute.xlu0 %2434
      %v2436 = vsel %vm519, %v2433, %v2435
      %v2437 = vsel %vm519, %v2435, %v2433
      %v2438 = vsel %vm531, %v2437, 0.0
      %v2439 = vsel %vm532, %v2436, 0.0
      %2440 = vrot.lane.b32.xlu0 %v2318, 127
      %v2441 = vpop.permute.xlu0 %2440
      %2442 = vrot.lane.b32.xlu0 %v2319, 127
      %v2443 = vpop.permute.xlu0 %2442
      %v2444 = vsel %vm539, %v2441, %v2443
      %v2445 = vsel %vm539, %v2443, %v2441
      %v2446 = vsel %vm551, %v2444, 0.0
      %v2447 = vsel %vm552, %v2445, 0.0
      %2448 = vrot.lane.b32.xlu0 %v2318, 121
      %v2449 = vpop.permute.xlu0 %2448
      %2450 = vrot.lane.b32.xlu0 %v2319, 121
      %v2451 = vpop.permute.xlu0 %2450
      %v2452 = vsel %vm559, %v2449, %v2451
      %v2453 = vsel %vm559, %v2451, %v2449
      %v2454 = vsel %vm571, %v2452, 0.0
      %v2455 = vsel %vm572, %v2453, 0.0
      %2456 = vrot.lane.b32.xlu0 %v2318, 120
      %v2457 = vpop.permute.xlu0 %2456
      %2458 = vrot.lane.b32.xlu0 %v2319, 120
      %v2459 = vpop.permute.xlu0 %2458
      %v2460 = vsel %vm579, %v2457, %v2459
      %v2461 = vsel %vm579, %v2459, %v2457
      %v2462 = vsel %vm591, %v2460, 0.0
      %v2463 = vsel %vm592, %v2461, 0.0
      %2464 = vrot.lane.b32.xlu0 %v2318, 119
      %v2465 = vpop.permute.xlu0 %2464
      %2466 = vrot.lane.b32.xlu0 %v2319, 119
      %v2467 = vpop.permute.xlu0 %2466
      %v2468 = vsel %vm599, %v2465, %v2467
      %v2469 = vsel %vm599, %v2467, %v2465
      %v2470 = vsel %vm611, %v2468, 0.0
      %v2471 = vsel %vm612, %v2469, 0.0
      %v2472 = vpack.c.bf16 %v2422, %v2414
      %v2473 = vpack.c.bf16 %v2423, %v2415
      %v2474 = vpack.c.bf16 %v2438, %v2430
      %v2475 = vpack.c.bf16 %v2439, %v2431
      %v2476 = vpack.c.bf16 %v2446, %v2318
      %v2477 = vpack.c.bf16 %v2447, %v2319
      %v2478 = vpack.c.bf16 %v2462, %v2454
      %v2479 = vpack.c.bf16 %v2463, %v2455
      %v2480 = vpack.c.bf16 %v2470, %v2470
      %v2481 = vpack.c.bf16 %v2471, %v2471
      %v2483 = vsel %vm625, %v2322, 0
      %v2486 = vsel %vm629, %v2480, 0
      %v2489 = vsel %vm629, %v2481, 0
      %2491 = vmatprep.subr.bf16.mxu0 0
      %2492 = vmatpush1.bf16.msra.mxu0 0
      %2493 = vmatprep.subr.bf16.mxu0 0
      %2494 = vmatpush1.bf16.msra.mxu0 0
      %2495 = vmatprep.subr.bf16.mxu0 0
      %2496 = vmatpush1.bf16.msra.mxu0 0
      %2497 = vmatprep.subr.bf16.mxu0 %v2489
      %2498 = vmatpush1.bf16.msra.mxu0 %v2486
      %2499 = vmatprep.subr.bf16.mxu0 %v2479
      %2500 = vmatpush1.bf16.msra.mxu0 %v2478
      %2501 = vmatprep.subr.bf16.mxu0 %v2477
      %2502 = vmatpush1.bf16.msra.mxu0 %v2476
      %2503 = vmatprep.subr.bf16.mxu0 %v2475
      %2504 = vmatpush1.bf16.msra.mxu0 %v2474
      %2505 = vmatprep.subr.bf16.mxu0 %v2473
      %2506 = vmatpush1.bf16.msra.mxu0 %v2472
      %2507 = vmatprep.subr.bf16.mxu0 0
      %2508 = vmatpush2.bf16.msra.mxu0 0
      %2509 = vmatprep.subr.bf16.mxu0 0
      %2510 = vmatpush2.bf16.msra.mxu0 0
      %2511 = vmatprep.subr.bf16.mxu0 0
      %2512 = vmatpush2.bf16.msra.mxu0 0
      %2513 = vmatprep.subr.bf16.mxu0 0
      %2514 = vmatpush2.bf16.msra.mxu0 0
      %2515 = vmatprep.subr.bf16.mxu0 0
      %2516 = vmatpush2.bf16.msra.mxu0 0
      %2517 = vmatprep.subr.bf16.mxu0 0
      %2518 = vmatpush2.bf16.msra.mxu0 0
      %2519 = vmatprep.subr.bf16.mxu0 0
      %2520 = vmatpush2.bf16.msra.mxu0 0
      %2521 = vmatprep.subr.bf16.mxu0 0
      %2522 = vmatpush2.bf16.msra.mxu0 0
      %2523 = vmatprep.mubr.bf16.mxu0 0
      %2524 = vmatmul.mubr.bf16.gmra.mxu0 %v2483
      %v2525 = vpop.f32.mrf.mxu0
      %v2526 = vadd.f32 0.0, %v2525
      %v2527 = vpop.f32.mrf.mxu0
      %v2528 = vadd.f32 0.0, %v2527
      %v2529 = vpop.f32.mrf.mxu0
      %v2530 = vpop.f32.mrf.mxu0
      %2531 = vdwg.mxu0
      %v2533 = vsel %vm625, %v2321, 0
      %v2536 = vsel %vm629, %v2406, 0
      %v2539 = vsel %vm629, %v2407, 0
      %2541 = vmatprep.subr.bf16.mxu0 0
      %2542 = vmatpush1.bf16.msra.mxu0 0
      %2543 = vmatprep.subr.bf16.mxu0 0
      %2544 = vmatpush1.bf16.msra.mxu0 0
      %2545 = vmatprep.subr.bf16.mxu0 0
      %2546 = vmatpush1.bf16.msra.mxu0 0
      %2547 = vmatprep.subr.bf16.mxu0 %v2539
      %2548 = vmatpush1.bf16.msra.mxu0 %v2536
      %2549 = vmatprep.subr.bf16.mxu0 %v2405
      %2550 = vmatpush1.bf16.msra.mxu0 %v2404
      %2551 = vmatprep.subr.bf16.mxu0 %v2403
      %2552 = vmatpush1.bf16.msra.mxu0 %v2402
      %2553 = vmatprep.subr.bf16.mxu0 %v2401
      %2554 = vmatpush1.bf16.msra.mxu0 %v2400
      %2555 = vmatprep.subr.bf16.mxu0 %v2399
      %2556 = vmatpush1.bf16.msra.mxu0 %v2398
      %2557 = vmatprep.subr.bf16.mxu0 0
      %2558 = vmatpush2.bf16.msra.mxu0 0
      %2559 = vmatprep.subr.bf16.mxu0 0
      %2560 = vmatpush2.bf16.msra.mxu0 0
      %2561 = vmatprep.subr.bf16.mxu0 0
      %2562 = vmatpush2.bf16.msra.mxu0 0
      %2563 = vmatprep.subr.bf16.mxu0 0
      %2564 = vmatpush2.bf16.msra.mxu0 0
      %2565 = vmatprep.subr.bf16.mxu0 0
      %2566 = vmatpush2.bf16.msra.mxu0 0
      %2567 = vmatprep.subr.bf16.mxu0 0
      %2568 = vmatpush2.bf16.msra.mxu0 0
      %2569 = vmatprep.subr.bf16.mxu0 0
      %2570 = vmatpush2.bf16.msra.mxu0 0
      %2571 = vmatprep.subr.bf16.mxu0 0
      %2572 = vmatpush2.bf16.msra.mxu0 0
      %2573 = vmatprep.mubr.bf16.mxu0 0
      %2574 = vmatmul.mubr.bf16.gmra.mxu0 %v2533
      %v2575 = vpop.f32.mrf.mxu0
      %v2576 = vadd.f32 %v2526, %v2575
      %v2577 = vpop.f32.mrf.mxu0
      %v2578 = vadd.f32 %v2528, %v2577
      %v2579 = vpop.f32.mrf.mxu0
      %v2580 = vpop.f32.mrf.mxu0
      %2581 = vdwg.mxu0
      %v2582 = vsel %vm736, %v2330, 0.0
      %v2583 = vsel %vm737, %v2331, 0.0
      %v2584 = vsel %vm749, %v2338, 0.0
      %v2585 = vsel %vm750, %v2339, 0.0
      %v2586 = vsel %vm762, %v2346, 0.0
      %v2587 = vsel %vm763, %v2347, 0.0
      %v2588 = vsel %vm775, %v2354, 0.0
      %v2589 = vsel %vm776, %v2355, 0.0
      %v2590 = vsel %vm788, %v2362, 0.0
      %v2591 = vsel %vm789, %v2363, 0.0
      %v2592 = vsel %vm801, %v2370, 0.0
      %v2593 = vsel %vm802, %v2371, 0.0
      %v2594 = vsel %vm814, %v2378, 0.0
      %v2595 = vsel %vm815, %v2379, 0.0
      %v2596 = vsel %vm827, %v2386, 0.0
      %v2597 = vsel %vm828, %v2387, 0.0
      %v2598 = vsel %vm840, %v2394, 0.0
      %v2599 = vsel %vm841, %v2395, 0.0
      %v2600 = vpack.c.bf16 %v2584, %v2582
      %v2601 = vpack.c.bf16 %v2585, %v2583
      %v2602 = vpack.c.bf16 %v2588, %v2586
      %v2603 = vpack.c.bf16 %v2589, %v2587
      %v2604 = vpack.c.bf16 %v2592, %v2590
      %v2605 = vpack.c.bf16 %v2593, %v2591
      %v2606 = vpack.c.bf16 %v2596, %v2594
      %v2607 = vpack.c.bf16 %v2597, %v2595
      %v2608 = vpack.c.bf16 %v2598, %v2598
      %v2609 = vpack.c.bf16 %v2599, %v2599
      %v2611 = vsel %vm625, %v2323, 0
      %v2614 = vsel %vm629, %v2608, 0
      %v2617 = vsel %vm629, %v2609, 0
      %2619 = vmatprep.subr.bf16.mxu0 0
      %2620 = vmatpush1.bf16.msra.mxu0 0
      %2621 = vmatprep.subr.bf16.mxu0 0
      %2622 = vmatpush1.bf16.msra.mxu0 0
      %2623 = vmatprep.subr.bf16.mxu0 0
      %2624 = vmatpush1.bf16.msra.mxu0 0
      %2625 = vmatprep.subr.bf16.mxu0 %v2617
      %2626 = vmatpush1.bf16.msra.mxu0 %v2614
      %2627 = vmatprep.subr.bf16.mxu0 %v2607
      %2628 = vmatpush1.bf16.msra.mxu0 %v2606
      %2629 = vmatprep.subr.bf16.mxu0 %v2605
      %2630 = vmatpush1.bf16.msra.mxu0 %v2604
      %2631 = vmatprep.subr.bf16.mxu0 %v2603
      %2632 = vmatpush1.bf16.msra.mxu0 %v2602
      %2633 = vmatprep.subr.bf16.mxu0 %v2601
      %2634 = vmatpush1.bf16.msra.mxu0 %v2600
      %2635 = vmatprep.subr.bf16.mxu0 0
      %2636 = vmatpush2.bf16.msra.mxu0 0
      %2637 = vmatprep.subr.bf16.mxu0 0
      %2638 = vmatpush2.bf16.msra.mxu0 0
      %2639 = vmatprep.subr.bf16.mxu0 0
      %2640 = vmatpush2.bf16.msra.mxu0 0
      %2641 = vmatprep.subr.bf16.mxu0 0
      %2642 = vmatpush2.bf16.msra.mxu0 0
      %2643 = vmatprep.subr.bf16.mxu0 0
      %2644 = vmatpush2.bf16.msra.mxu0 0
      %2645 = vmatprep.subr.bf16.mxu0 0
      %2646 = vmatpush2.bf16.msra.mxu0 0
      %2647 = vmatprep.subr.bf16.mxu0 0
      %2648 = vmatpush2.bf16.msra.mxu0 0
      %2649 = vmatprep.subr.bf16.mxu0 0
      %2650 = vmatpush2.bf16.msra.mxu0 0
      %2651 = vmatprep.mubr.bf16.mxu0 0
      %2652 = vmatmul.mubr.bf16.gmra.mxu0 %v2611
      %v2653 = vpop.f32.mrf.mxu0
      %v2654 = vadd.f32 0.0, %v2653
      %v2655 = vpop.f32.mrf.mxu0
      %v2656 = vadd.f32 0.0, %v2655
      %v2657 = vpop.f32.mrf.mxu0
      %v2658 = vpop.f32.mrf.mxu0
      %2659 = vdwg.mxu0
      %v2660 = vadd.f32 %v2576, %v2654
      %v2661 = vadd.f32 %v2578, %v2656
      %2663 = vset.pattern.permute.xlu0 0
      %2664 = vperm.xlu0 %2663, %v2325
      %v2665 = vpop.permute.xlu0 %2664
      %v2667 = vadd.f32 %v2660, %v2665
      %v2668 = vadd.f32 %v2661, %v2665
      %v2669 = vadd.f32 %v1967, %v2667
      %v2670 = vadd.f32 %v1968, %v2668
      %v2671 = vmul.f32 %v2669, 0.5
      %v2672 = vmul.f32 %v2670, 0.5
      %2673 = vst [vmem:[%s224] sm:$0xff] %v2671
      %2674 = vst [vmem:[%s224 + $0x8] sm:$0xff] %v2672
      %p2675 = scmp.lt.s32.totalorder %s16, 1
      %s2676 = scalar_select %p2675, %s16, 1
      %s2677 = smul.addr %s2676, 2
      %s2678 = smul.addr %s2677, 8
      %s2679 = scalar_lea.vmem %s5, %s2678
      // Predicated region
      $region41: #{basic_forward.1} parent=39 // pred_check
        %p2680 = pneg %p144
      $region42: #{basic_forward.1} parent=39 // pred_check_branch
        %2682 = sbr.rel (%p2680) target = $region44
      $region43: #{basic_forward.1} parent=39 // pred_region
        _
      $region44: #{basic_forward.1} parent=39 // pred_fallthru
        _
    $region40: #{basic_forward.1} parent=5 // pred_fallthru
      _
    %p2683 = scmp.le.s32.totalorder 2, %s11
    // Predicated region
    $region45: #{basic_forward.1} parent=5 // pred_check
      %p2684 = pneg %p2683
    $region46: #{basic_forward.1} parent=5 // pred_check_branch
      %2686 = sbr.rel (%p2684) target = $region48
    $region47: #{basic_forward.1} parent=5 // pred_region
      %s2687 = ssub.s32 %s11, 2
      // Predicated region
      $region49: #{basic_forward.1} parent=47 // pred_check
        %p2688 = pneg %p150
      $region50: #{basic_forward.1} parent=47 // pred_check_branch
        %2690 = sbr.rel (%p2688) target = $region52
      $region51: #{basic_forward.1} parent=47 // pred_region
        %p2691 = scmp.lt.s32.totalorder %s17, 1
        %s2692 = scalar_select %p2691, %s17, 1
        %s2693 = smul.addr %s2692, 2
        %s2694 = smul.addr %s2693, 8
        %s2695 = scalar_lea.vmem %s5, %s2694
      $region52: #{basic_forward.1} parent=47 // pred_fallthru
        _
    $region48: #{basic_forward.1} parent=5 // pred_fallthru
      _
  $region6: #{basic_forward.1} parent=0 // loop_footer
    %s15 = sadd.s32 1, %s11
  $region7: #{basic_forward.1} parent=0 // loop_footer_branch
    %10 = sbr.rel target = $region3
  $region8: #{basic_forward.1} parent=0 // loop_exit
    _

</llo_original>
